<compile_context>
chip_gen: v6e
topology: v6e:2x2x1
jax: 0.10.0
libtpu: 0.0.40
codegen_flags: <defaults>
</compile_context>

<pallas_src>
import jax
import jax.numpy as jnp
from jax import lax
from jax.experimental import pallas as pl
from jax.experimental.pallas import tpu as pltpu

# ---------------- hyperparameters (small, deterministic) ----------------
N_EMBD = 64
N_HEADS = 4
HEAD_SIZE = N_EMBD // N_HEADS
N_LAYER = 2
BLOCK_SIZE = 16          # max context length (positional table rows)
VOCAB_SIZE = 65
VOCAB_PAD = 128          # lane-dense lm_head output width
HIDDEN = 4 * N_EMBD
LN_EPS = 1e-5            # torch nn.LayerNorm default


def _layernorm(x, gamma, beta):
    # x: (N, C); gamma/beta: (C,)
    mean = jnp.mean(x, axis=-1, keepdims=True)
    var = jnp.mean(jnp.square(x - mean), axis=-1, keepdims=True)
    return (x - mean) * lax.rsqrt(var + LN_EPS) * gamma + beta


# ---------------- fused whole-model kernel ----------------
def model_kernel(x_ref, mask_ref,
                 wqkv_ref, wo_ref, w1_ref, w2_ref, vecs_ref, b1_ref,
                 lnf_ref, wlm_ref, blm_ref,
                 o_ref):
    """All N_LAYER transformer blocks + final LN + lm_head in one invocation.

    x_ref   : (B*T, C)    activations, batch flattened into the sublane axis
    mask_ref: (B*T, B*T)  additive attention mask (0 allowed / -1e9 blocked);
                          encodes both causality and the batch-block structure
    vecs_ref: (L, 6, C)   per-layer small vectors: ln1_g, ln1_b, bo, ln2_g, ln2_b, b2
    """
    C, H, HS = N_EMBD, N_HEADS, HEAD_SIZE
    scale = float(N_EMBD) ** -0.5   # torch code scales by C**-0.5 with C = n_embd

    x = x_ref[...]                   # (N, C)
    mask = mask_ref[...]             # (N, N)

    for li in range(N_LAYER):        # static unroll, N_LAYER is tiny
        vec = vecs_ref[li]           # (6, C)

        # ---- x = x + sa(ln1(x)) ----
        h = _layernorm(x, vec[0], vec[1])
        qkv = jnp.dot(h, wqkv_ref[li], preferred_element_type=jnp.float32)  # (N, 3C)
        q = qkv[:, 0 * C:1 * C]
        k = qkv[:, 1 * C:2 * C]
        v = qkv[:, 2 * C:3 * C]

        # (H, N, hs) per-head views; one batched contraction over all heads
        qh = jnp.stack([q[:, hh * HS:(hh + 1) * HS] for hh in range(H)], axis=0)
        kh = jnp.stack([k[:, hh * HS:(hh + 1) * HS] for hh in range(H)], axis=0)
        vh = jnp.stack([v[:, hh * HS:(hh + 1) * HS] for hh in range(H)], axis=0)

        s = jnp.einsum("hnd,hmd->hnm", qh, kh,
                       preferred_element_type=jnp.float32) * scale          # (H, N, N)
        s = s + mask[None, :, :]                       # additive causal/batch mask
        m = jnp.max(s, axis=-1, keepdims=True)
        e = jnp.exp(s - m)
        wei = e * pl.reciprocal(jnp.sum(e, axis=-1, keepdims=True), approx=True)
        # dropout(wei) -> identity (eval mode)
        ah = jnp.einsum("hnm,hmd->hnd", wei, vh,
                        preferred_element_type=jnp.float32)                  # (H, N, hs)
        attn = jnp.concatenate([ah[hh] for hh in range(H)], axis=-1)         # (N, C)

        sa = jnp.dot(attn, wo_ref[li], preferred_element_type=jnp.float32) + vec[2]
        # dropout(proj) -> identity
        x = x + sa

        # ---- x = x + ffwd(ln2(x)) ----
        h2 = _layernorm(x, vec[3], vec[4])
        ff = jnp.dot(h2, w1_ref[li], preferred_element_type=jnp.float32) + b1_ref[li]
        ff = jnp.maximum(ff, 0.0)                                            # ReLU
        ff = jnp.dot(ff, w2_ref[li], preferred_element_type=jnp.float32) + vec[5]
        # dropout -> identity
        x = x + ff

    # ---- final LN + lm_head (vocab padded to 128 lanes -> dense stores) ----
    xf = _layernorm(x, lnf_ref[0], lnf_ref[1])
    o_ref[...] = (jnp.dot(xf, wlm_ref[...], preferred_element_type=jnp.float32)
                  + blm_ref[0])


# ---------------- full model forward (single Pallas call) ----------------
@jax.jit
def bigram_lm_forward(idx, params):
    """idx: (B, T) int32 token ids.  Returns logits (B, T, vocab).  loss=None path."""
    B, T = idx.shape
    C = N_EMBD
    N = B * T

    tok_emb = jnp.take(params["tok_emb"], idx, axis=0)           # (B, T, C)
    pos_emb = params["pos_emb"][:T]                              # (T, C)
    x = (tok_emb + pos_emb[None, :, :]).astype(jnp.float32).reshape(N, C)

    # additive mask over the flattened batch: attend only within the same batch
    # element AND causally (replaces tril + masked_fill(-inf)).
    row_b = jnp.repeat(jnp.arange(B), T)
    row_t = jnp.tile(jnp.arange(T), B)
    allow = (row_b[:, None] == row_b[None, :]) & (row_t[:, None] >= row_t[None, :])
    mask = jnp.where(allow, 0.0, -1e9).astype(jnp.float32)       # (N, N)

    # lm_head weights zero-padded to 128 output lanes (sliced back below)
    w_lm_p = jnp.zeros((C, VOCAB_PAD), jnp.float32).at[:, :VOCAB_SIZE].set(params["w_lm"])
    b_lm_p = jnp.zeros((1, VOCAB_PAD), jnp.float32).at[0, :VOCAB_SIZE].set(params["b_lm"])

    vmem = pl.BlockSpec(memory_space=pltpu.MemorySpace.VMEM)     # whole array in VMEM
    out = pl.pallas_call(
        model_kernel,
        out_shape=jax.ShapeDtypeStruct((N, VOCAB_PAD), jnp.float32),
        in_specs=[vmem] * 11,
        out_specs=vmem,
    )(x, mask,
      params["wqkv"], params["wo"], params["w1"], params["w2"],
      params["vecs"], params["b1"],
      params["lnf"], w_lm_p, b_lm_p)

    logits = out.reshape(B, T, VOCAB_PAD)[:, :, :VOCAB_SIZE]
    return logits
    # TODO(synk): cross-entropy loss branch (targets is not None) and generate()
    # sampling loop are not needed for this forward path (targets=None).


# ---------------- parameter init (deterministic, synthetic) ----------------
def init_params(key):
    def nrm(k, shape, scale=0.02):
        return (scale * jax.random.normal(k, shape)).astype(jnp.float32)

    k_tok, k_pos, k_lmw, k_lmb, k_lnf, k_blocks = jax.random.split(key, 6)
    kf1, kf2 = jax.random.split(k_lnf)
    layer_keys = jax.random.split(k_blocks, N_LAYER)

    wqkv, wo, w1, w2, vecs, b1 = [], [], [], [], [], []
    for lk in layer_keys:
        ks = jax.random.split(lk, 11)
        wqkv.append(nrm(ks[0], (N_EMBD, 3 * N_EMBD)))      # [Wq | Wk | Wv]
        wo.append(nrm(ks[1], (N_EMBD, N_EMBD)))            # attention proj
        w1.append(nrm(ks[2], (N_EMBD, HIDDEN)))            # ffwd up
        w2.append(nrm(ks[3], (HIDDEN, N_EMBD)))            # ffwd down
        vecs.append(jnp.stack([
            1.0 + nrm(ks[4], (N_EMBD,)),                   # ln1 gamma
            nrm(ks[5], (N_EMBD,)),                         # ln1 beta
            nrm(ks[6], (N_EMBD,)),                         # proj bias (bo)
            1.0 + nrm(ks[7], (N_EMBD,)),                   # ln2 gamma
            nrm(ks[8], (N_EMBD,)),                         # ln2 beta
            nrm(ks[9], (N_EMBD,)),                         # ffwd second bias (b2)
        ]))
        b1.append(nrm(ks[10], (HIDDEN,)))                  # ffwd first bias

    return {
        "tok_emb": nrm(k_tok, (VOCAB_SIZE, N_EMBD)),
        "pos_emb": nrm(k_pos, (BLOCK_SIZE, N_EMBD)),
        "wqkv": jnp.stack(wqkv),     # (L, C, 3C)
        "wo": jnp.stack(wo),         # (L, C, C)
        "w1": jnp.stack(w1),         # (L, C, 4C)
        "w2": jnp.stack(w2),         # (L, 4C, C)
        "vecs": jnp.stack(vecs),     # (L, 6, C)
        "b1": jnp.stack(b1),         # (L, 4C)
        "lnf": jnp.stack([1.0 + nrm(kf1, (N_EMBD,)), nrm(kf2, (N_EMBD,))]),  # (2, C)
        "w_lm": nrm(k_lmw, (N_EMBD, VOCAB_SIZE)),
        "b_lm": nrm(k_lmb, (VOCAB_SIZE,)),
    }


# ---------------- pure-JAX reference for verification ----------------
def reference_forward(idx, params):
    B, T = idx.shape
    C = N_EMBD
    x = jnp.take(params["tok_emb"], idx, axis=0) + params["pos_emb"][:T][None]
    tril = jnp.tril(jnp.ones((T, T), jnp.float32))

    def ln(z, g, b):
        m = jnp.mean(z, -1, keepdims=True)
        v = jnp.mean((z - m) ** 2, -1, keepdims=True)
        return (z - m) / jnp.sqrt(v + LN_EPS) * g + b

    for li in range(N_LAYER):
        vec = params["vecs"][li]
        h = ln(x, vec[0], vec[1])
        qkv = h @ params["wqkv"][li]
        q, k, v = qkv[..., :C], qkv[..., C:2 * C], qkv[..., 2 * C:]
        outs = []
        for hh in range(N_HEADS):
            sl = slice(hh * HEAD_SIZE, (hh + 1) * HEAD_SIZE)
            wei = jnp.einsum("btd,bsd->bts", q[..., sl], k[..., sl]) * (C ** -0.5)
            wei = jnp.where(tril == 0.0, -jnp.inf, wei)
            wei = jax.nn.softmax(wei, axis=-1)
            outs.append(jnp.einsum("bts,bsd->btd", wei, v[..., sl]))
        sa = jnp.concatenate(outs, -1) @ params["wo"][li] + vec[2]
        x = x + sa
        h2 = ln(x, vec[3], vec[4])
        x = x + (jnp.maximum(h2 @ params["w1"][li] + params["b1"][li], 0.0)
                 @ params["w2"][li] + vec[5])
    x = ln(x, params["lnf"][0], params["lnf"][1])
    return x @ params["w_lm"] + params["b_lm"]


if __name__ == "__main__":
    key = jax.random.PRNGKey(0)
    pkey, ikey = jax.random.split(key)
    params = init_params(pkey)

    B, T = 2, 8
    idx = jax.random.randint(ikey, (B, T), 0, VOCAB_SIZE, dtype=jnp.int32)

    logits = bigram_lm_forward(idx, params)
    logits = jax.block_until_ready(logits)
    assert logits.shape == (B, T, VOCAB_SIZE), logits.shape

    ref = reference_forward(idx, params)
    max_err = float(jnp.max(jnp.abs(logits - ref)))
    assert jnp.allclose(logits, ref, rtol=2e-2, atol=2e-2), max_err

    print("KERNEL_OK")
</pallas_src>

<mosaic_0001>
module attributes {stable_mosaic.version = 11 : i64} {
  func.func @model_kernel(%arg0: memref<16x64xf32, #tpu.memory_space<vmem>>, %arg1: memref<16x16xf32, #tpu.memory_space<vmem>>, %arg2: memref<2x64x192xf32, #tpu.memory_space<vmem>>, %arg3: memref<2x64x64xf32, #tpu.memory_space<vmem>>, %arg4: memref<2x64x256xf32, #tpu.memory_space<vmem>>, %arg5: memref<2x256x64xf32, #tpu.memory_space<vmem>>, %arg6: memref<2x6x64xf32, #tpu.memory_space<vmem>>, %arg7: memref<2x256xf32, #tpu.memory_space<vmem>>, %arg8: memref<2x64xf32, #tpu.memory_space<vmem>>, %arg9: memref<64x128xf32, #tpu.memory_space<vmem>>, %arg10: memref<1x128xf32, #tpu.memory_space<vmem>>, %arg11: memref<16x128xf32, #tpu.memory_space<vmem>>) attributes {dimension_semantics = [], scalar_prefetch = 0 : i64, scratch_operands = 0 : i64, tpu.core_type = #tpu.core_type<tc>} {
    %c0 = arith.constant 0 : index
    %c0_0 = arith.constant 0 : index
    %0 = vector.load %arg0[%c0, %c0_0] : memref<16x64xf32, #tpu.memory_space<vmem>>, vector<16x64xf32>
    %c0_1 = arith.constant 0 : index
    %c0_2 = arith.constant 0 : index
    %1 = vector.load %arg1[%c0_1, %c0_2] : memref<16x16xf32, #tpu.memory_space<vmem>>, vector<16x16xf32>
    %c0_3 = arith.constant 0 : index
    %c0_4 = arith.constant 0 : index
    %c0_5 = arith.constant 0 : index
    %2 = vector.load %arg6[%c0_3, %c0_4, %c0_5] : memref<2x6x64xf32, #tpu.memory_space<vmem>>, vector<1x6x64xf32>
    %3 = vector.shape_cast %2 : vector<1x6x64xf32> to vector<6x64xf32>
    %4 = vector.extract_strided_slice %3 {offsets = [0, 0], sizes = [1, 64], strides = [1, 1]} : vector<6x64xf32> to vector<1x64xf32>
    %5 = vector.shape_cast %4 : vector<1x64xf32> to vector<64xf32>
    %6 = vector.extract_strided_slice %3 {offsets = [1, 0], sizes = [1, 64], strides = [1, 1]} : vector<6x64xf32> to vector<1x64xf32>
    %7 = vector.shape_cast %6 : vector<1x64xf32> to vector<64xf32>
    %cst = arith.constant dense<0.000000e+00> : vector<16xf32>
    %8 = vector.multi_reduction <add>, %0, %cst [1] : vector<16x64xf32> to vector<16xf32>
    %9 = vector.shape_cast %8 : vector<16xf32> to vector<16x1xf32>
    %cst_6 = arith.constant 6.400000e+01 : f32
    %10 = vector.broadcast %cst_6 : f32 to vector<16x1xf32>
    %11 = arith.divf %9, %10 : vector<16x1xf32>
    %12 = vector.broadcast %11 : vector<16x1xf32> to vector<16x64xf32>
    %13 = arith.subf %0, %12 : vector<16x64xf32>
    %14 = arith.mulf %13, %13 : vector<16x64xf32>
    %cst_7 = arith.constant dense<0.000000e+00> : vector<16xf32>
    %15 = vector.multi_reduction <add>, %14, %cst_7 [1] : vector<16x64xf32> to vector<16xf32>
    %16 = vector.shape_cast %15 : vector<16xf32> to vector<16x1xf32>
    %cst_8 = arith.constant 6.400000e+01 : f32
    %17 = vector.broadcast %cst_8 : f32 to vector<16x1xf32>
    %18 = arith.divf %16, %17 : vector<16x1xf32>
    %19 = vector.broadcast %11 : vector<16x1xf32> to vector<16x64xf32>
    %20 = arith.subf %0, %19 : vector<16x64xf32>
    %cst_9 = arith.constant 9.99999974E-6 : f32
    %21 = vector.broadcast %cst_9 : f32 to vector<16x1xf32>
    %22 = arith.addf %18, %21 : vector<16x1xf32>
    %23 = math.rsqrt %22 : vector<16x1xf32>
    %24 = vector.broadcast %23 : vector<16x1xf32> to vector<16x64xf32>
    %25 = arith.mulf %20, %24 : vector<16x64xf32>
    %26 = vector.shape_cast %5 : vector<64xf32> to vector<1x64xf32>
    %27 = vector.broadcast %26 : vector<1x64xf32> to vector<16x64xf32>
    %28 = arith.mulf %25, %27 : vector<16x64xf32>
    %29 = vector.shape_cast %7 : vector<64xf32> to vector<1x64xf32>
    %30 = vector.broadcast %29 : vector<1x64xf32> to vector<16x64xf32>
    %31 = arith.addf %28, %30 : vector<16x64xf32>
    %c0_10 = arith.constant 0 : index
    %c0_11 = arith.constant 0 : index
    %c0_12 = arith.constant 0 : index
    %32 = vector.load %arg2[%c0_10, %c0_11, %c0_12] : memref<2x64x192xf32, #tpu.memory_space<vmem>>, vector<1x64x192xf32>
    %33 = vector.shape_cast %32 : vector<1x64x192xf32> to vector<64x192xf32>
    %cst_13 = arith.constant dense<0.000000e+00> : vector<16x192xf32>
    %34 = tpu.matmul %31, %33, %cst_13 {dimension_numbers = #tpu.dot_dimension_numbers<[1], [0], [0], [1], [0, 0, 1, 1], [], []>} : vector<16x64xf32>, vector<64x192xf32>, vector<16x192xf32> -> vector<16x192xf32>
    %35 = vector.extract_strided_slice %34 {offsets = [0, 0], sizes = [16, 64], strides = [1, 1]} : vector<16x192xf32> to vector<16x64xf32>
    %36 = vector.extract_strided_slice %34 {offsets = [0, 64], sizes = [16, 64], strides = [1, 1]} : vector<16x192xf32> to vector<16x64xf32>
    %37 = vector.extract_strided_slice %34 {offsets = [0, 128], sizes = [16, 64], strides = [1, 1]} : vector<16x192xf32> to vector<16x64xf32>
    %38 = vector.extract_strided_slice %35 {offsets = [0, 0], sizes = [16, 16], strides = [1, 1]} : vector<16x64xf32> to vector<16x16xf32>
    %39 = vector.extract_strided_slice %35 {offsets = [0, 16], sizes = [16, 16], strides = [1, 1]} : vector<16x64xf32> to vector<16x16xf32>
    %40 = vector.extract_strided_slice %35 {offsets = [0, 32], sizes = [16, 16], strides = [1, 1]} : vector<16x64xf32> to vector<16x16xf32>
    %41 = vector.extract_strided_slice %35 {offsets = [0, 48], sizes = [16, 16], strides = [1, 1]} : vector<16x64xf32> to vector<16x16xf32>
    %42 = vector.shape_cast %38 : vector<16x16xf32> to vector<1x16x16xf32>
    %43 = vector.shape_cast %39 : vector<16x16xf32> to vector<1x16x16xf32>
    %44 = vector.shape_cast %40 : vector<16x16xf32> to vector<1x16x16xf32>
    %45 = vector.shape_cast %41 : vector<16x16xf32> to vector<1x16x16xf32>
    %46 = tpu.concatenate %42, %43, %44, %45 in 0 : vector<1x16x16xf32>, vector<1x16x16xf32>, vector<1x16x16xf32>, vector<1x16x16xf32> -> vector<4x16x16xf32>
    %47 = vector.extract_strided_slice %36 {offsets = [0, 0], sizes = [16, 16], strides = [1, 1]} : vector<16x64xf32> to vector<16x16xf32>
    %48 = vector.extract_strided_slice %36 {offsets = [0, 16], sizes = [16, 16], strides = [1, 1]} : vector<16x64xf32> to vector<16x16xf32>
    %49 = vector.extract_strided_slice %36 {offsets = [0, 32], sizes = [16, 16], strides = [1, 1]} : vector<16x64xf32> to vector<16x16xf32>
    %50 = vector.extract_strided_slice %36 {offsets = [0, 48], sizes = [16, 16], strides = [1, 1]} : vector<16x64xf32> to vector<16x16xf32>
    %51 = vector.shape_cast %47 : vector<16x16xf32> to vector<1x16x16xf32>
    %52 = vector.shape_cast %48 : vector<16x16xf32> to vector<1x16x16xf32>
    %53 = vector.shape_cast %49 : vector<16x16xf32> to vector<1x16x16xf32>
    %54 = vector.shape_cast %50 : vector<16x16xf32> to vector<1x16x16xf32>
    %55 = tpu.concatenate %51, %52, %53, %54 in 0 : vector<1x16x16xf32>, vector<1x16x16xf32>, vector<1x16x16xf32>, vector<1x16x16xf32> -> vector<4x16x16xf32>
    %56 = vector.extract_strided_slice %37 {offsets = [0, 0], sizes = [16, 16], strides = [1, 1]} : vector<16x64xf32> to vector<16x16xf32>
    %57 = vector.extract_strided_slice %37 {offsets = [0, 16], sizes = [16, 16], strides = [1, 1]} : vector<16x64xf32> to vector<16x16xf32>
    %58 = vector.extract_strided_slice %37 {offsets = [0, 32], sizes = [16, 16], strides = [1, 1]} : vector<16x64xf32> to vector<16x16xf32>
    %59 = vector.extract_strided_slice %37 {offsets = [0, 48], sizes = [16, 16], strides = [1, 1]} : vector<16x64xf32> to vector<16x16xf32>
    %60 = vector.shape_cast %56 : vector<16x16xf32> to vector<1x16x16xf32>
    %61 = vector.shape_cast %57 : vector<16x16xf32> to vector<1x16x16xf32>
    %62 = vector.shape_cast %58 : vector<16x16xf32> to vector<1x16x16xf32>
    %63 = vector.shape_cast %59 : vector<16x16xf32> to vector<1x16x16xf32>
    %64 = tpu.concatenate %60, %61, %62, %63 in 0 : vector<1x16x16xf32>, vector<1x16x16xf32>, vector<1x16x16xf32>, vector<1x16x16xf32> -> vector<4x16x16xf32>
    "tpu.trace_start"() <{level = 10 : i32, message = "hnd,hmd->hnm"}> : () -> ()
    %cst_14 = arith.constant dense<0.000000e+00> : vector<4x16x16xf32>
    %65 = tpu.matmul %46, %55, %cst_14 {dimension_numbers = #tpu.dot_dimension_numbers<[2], [2], [1], [1], [0, 0, 0, 1, 1, 1], [0], [0]>} : vector<4x16x16xf32>, vector<4x16x16xf32>, vector<4x16x16xf32> -> vector<4x16x16xf32>
    "tpu.trace_stop"() : () -> ()
    %cst_15 = arith.constant 1.250000e-01 : f32
    %66 = vector.broadcast %cst_15 : f32 to vector<4x16x16xf32>
    %67 = arith.mulf %65, %66 : vector<4x16x16xf32>
    %68 = vector.shape_cast %1 : vector<16x16xf32> to vector<1x16x16xf32>
    %69 = vector.broadcast %68 : vector<1x16x16xf32> to vector<4x16x16xf32>
    %70 = arith.addf %67, %69 : vector<4x16x16xf32>
    %cst_16 = arith.constant dense<0xFF800000> : vector<4x16xf32>
    %71 = vector.multi_reduction <maximumf>, %70, %cst_16 [2] : vector<4x16x16xf32> to vector<4x16xf32>
    %72 = vector.shape_cast %71 : vector<4x16xf32> to vector<4x16x1xf32>
    %73 = vector.broadcast %72 : vector<4x16x1xf32> to vector<4x16x16xf32>
    %74 = arith.subf %70, %73 : vector<4x16x16xf32>
    %75 = math.exp %74 : vector<4x16x16xf32>
    %cst_17 = arith.constant dense<0.000000e+00> : vector<4x16xf32>
    %76 = vector.multi_reduction <add>, %75, %cst_17 [2] : vector<4x16x16xf32> to vector<4x16xf32>
    %77 = vector.shape_cast %76 : vector<4x16xf32> to vector<4x16x1xf32>
    %78 = tpu.reciprocal %77 {approx = true} : vector<4x16x1xf32> -> vector<4x16x1xf32>
    %79 = vector.broadcast %78 : vector<4x16x1xf32> to vector<4x16x16xf32>
    %80 = arith.mulf %75, %79 : vector<4x16x16xf32>
    "tpu.trace_start"() <{level = 10 : i32, message = "hnm,hmd->hnd"}> : () -> ()
    %cst_18 = arith.constant dense<0.000000e+00> : vector<4x16x16xf32>
    %81 = tpu.matmul %80, %64, %cst_18 {dimension_numbers = #tpu.dot_dimension_numbers<[2], [1], [1], [2], [0, 0, 0, 1, 1, 2], [0], [0]>} : vector<4x16x16xf32>, vector<4x16x16xf32>, vector<4x16x16xf32> -> vector<4x16x16xf32>
    "tpu.trace_stop"() : () -> ()
    %82 = vector.extract_strided_slice %81 {offsets = [0, 0, 0], sizes = [1, 16, 16], strides = [1, 1, 1]} : vector<4x16x16xf32> to vector<1x16x16xf32>
    %83 = vector.shape_cast %82 : vector<1x16x16xf32> to vector<16x16xf32>
    %84 = vector.extract_strided_slice %81 {offsets = [1, 0, 0], sizes = [1, 16, 16], strides = [1, 1, 1]} : vector<4x16x16xf32> to vector<1x16x16xf32>
    %85 = vector.shape_cast %84 : vector<1x16x16xf32> to vector<16x16xf32>
    %86 = vector.extract_strided_slice %81 {offsets = [2, 0, 0], sizes = [1, 16, 16], strides = [1, 1, 1]} : vector<4x16x16xf32> to vector<1x16x16xf32>
    %87 = vector.shape_cast %86 : vector<1x16x16xf32> to vector<16x16xf32>
    %88 = vector.extract_strided_slice %81 {offsets = [3, 0, 0], sizes = [1, 16, 16], strides = [1, 1, 1]} : vector<4x16x16xf32> to vector<1x16x16xf32>
    %89 = vector.shape_cast %88 : vector<1x16x16xf32> to vector<16x16xf32>
    %90 = tpu.concatenate %83, %85, %87, %89 in 1 : vector<16x16xf32>, vector<16x16xf32>, vector<16x16xf32>, vector<16x16xf32> -> vector<16x64xf32>
    %c0_19 = arith.constant 0 : index
    %c0_20 = arith.constant 0 : index
    %c0_21 = arith.constant 0 : index
    %91 = vector.load %arg3[%c0_19, %c0_20, %c0_21] : memref<2x64x64xf32, #tpu.memory_space<vmem>>, vector<1x64x64xf32>
    %92 = vector.shape_cast %91 : vector<1x64x64xf32> to vector<64x64xf32>
    %cst_22 = arith.constant dense<0.000000e+00> : vector<16x64xf32>
    %93 = tpu.matmul %90, %92, %cst_22 {dimension_numbers = #tpu.dot_dimension_numbers<[1], [0], [0], [1], [0, 0, 1, 1], [], []>} : vector<16x64xf32>, vector<64x64xf32>, vector<16x64xf32> -> vector<16x64xf32>
    %94 = vector.extract_strided_slice %3 {offsets = [2, 0], sizes = [1, 64], strides = [1, 1]} : vector<6x64xf32> to vector<1x64xf32>
    %95 = vector.shape_cast %94 : vector<1x64xf32> to vector<64xf32>
    %96 = vector.shape_cast %95 : vector<64xf32> to vector<1x64xf32>
    %97 = vector.broadcast %96 : vector<1x64xf32> to vector<16x64xf32>
    %98 = arith.addf %93, %97 : vector<16x64xf32>
    %99 = arith.addf %0, %98 : vector<16x64xf32>
    %100 = vector.extract_strided_slice %3 {offsets = [3, 0], sizes = [1, 64], strides = [1, 1]} : vector<6x64xf32> to vector<1x64xf32>
    %101 = vector.shape_cast %100 : vector<1x64xf32> to vector<64xf32>
    %102 = vector.extract_strided_slice %3 {offsets = [4, 0], sizes = [1, 64], strides = [1, 1]} : vector<6x64xf32> to vector<1x64xf32>
    %103 = vector.shape_cast %102 : vector<1x64xf32> to vector<64xf32>
    %cst_23 = arith.constant dense<0.000000e+00> : vector<16xf32>
    %104 = vector.multi_reduction <add>, %99, %cst_23 [1] : vector<16x64xf32> to vector<16xf32>
    %105 = vector.shape_cast %104 : vector<16xf32> to vector<16x1xf32>
    %cst_24 = arith.constant 6.400000e+01 : f32
    %106 = vector.broadcast %cst_24 : f32 to vector<16x1xf32>
    %107 = arith.divf %105, %106 : vector<16x1xf32>
    %108 = vector.broadcast %107 : vector<16x1xf32> to vector<16x64xf32>
    %109 = arith.subf %99, %108 : vector<16x64xf32>
    %110 = arith.mulf %109, %109 : vector<16x64xf32>
    %cst_25 = arith.constant dense<0.000000e+00> : vector<16xf32>
    %111 = vector.multi_reduction <add>, %110, %cst_25 [1] : vector<16x64xf32> to vector<16xf32>
    %112 = vector.shape_cast %111 : vector<16xf32> to vector<16x1xf32>
    %cst_26 = arith.constant 6.400000e+01 : f32
    %113 = vector.broadcast %cst_26 : f32 to vector<16x1xf32>
    %114 = arith.divf %112, %113 : vector<16x1xf32>
    %115 = vector.broadcast %107 : vector<16x1xf32> to vector<16x64xf32>
    %116 = arith.subf %99, %115 : vector<16x64xf32>
    %cst_27 = arith.constant 9.99999974E-6 : f32
    %117 = vector.broadcast %cst_27 : f32 to vector<16x1xf32>
    %118 = arith.addf %114, %117 : vector<16x1xf32>
    %119 = math.rsqrt %118 : vector<16x1xf32>
    %120 = vector.broadcast %119 : vector<16x1xf32> to vector<16x64xf32>
    %121 = arith.mulf %116, %120 : vector<16x64xf32>
    %122 = vector.shape_cast %101 : vector<64xf32> to vector<1x64xf32>
    %123 = vector.broadcast %122 : vector<1x64xf32> to vector<16x64xf32>
    %124 = arith.mulf %121, %123 : vector<16x64xf32>
    %125 = vector.shape_cast %103 : vector<64xf32> to vector<1x64xf32>
    %126 = vector.broadcast %125 : vector<1x64xf32> to vector<16x64xf32>
    %127 = arith.addf %124, %126 : vector<16x64xf32>
    %c0_28 = arith.constant 0 : index
    %c0_29 = arith.constant 0 : index
    %c0_30 = arith.constant 0 : index
    %128 = vector.load %arg4[%c0_28, %c0_29, %c0_30] : memref<2x64x256xf32, #tpu.memory_space<vmem>>, vector<1x64x256xf32>
    %129 = vector.shape_cast %128 : vector<1x64x256xf32> to vector<64x256xf32>
    %cst_31 = arith.constant dense<0.000000e+00> : vector<16x256xf32>
    %130 = tpu.matmul %127, %129, %cst_31 {dimension_numbers = #tpu.dot_dimension_numbers<[1], [0], [0], [1], [0, 0, 1, 1], [], []>} : vector<16x64xf32>, vector<64x256xf32>, vector<16x256xf32> -> vector<16x256xf32>
    %c0_32 = arith.constant 0 : index
    %c0_33 = arith.constant 0 : index
    %131 = vector.load %arg7[%c0_32, %c0_33] : memref<2x256xf32, #tpu.memory_space<vmem>>, vector<1x256xf32>
    %132 = vector.shape_cast %131 : vector<1x256xf32> to vector<256xf32>
    %133 = vector.shape_cast %132 : vector<256xf32> to vector<1x256xf32>
    %134 = vector.broadcast %133 : vector<1x256xf32> to vector<16x256xf32>
    %135 = arith.addf %130, %134 : vector<16x256xf32>
    %cst_34 = arith.constant 0.000000e+00 : f32
    %136 = vector.broadcast %cst_34 : f32 to vector<16x256xf32>
    %137 = arith.maximumf %135, %136 : vector<16x256xf32>
    %c0_35 = arith.constant 0 : index
    %c0_36 = arith.constant 0 : index
    %c0_37 = arith.constant 0 : index
    %138 = vector.load %arg5[%c0_35, %c0_36, %c0_37] : memref<2x256x64xf32, #tpu.memory_space<vmem>>, vector<1x256x64xf32>
    %139 = vector.shape_cast %138 : vector<1x256x64xf32> to vector<256x64xf32>
    %cst_38 = arith.constant dense<0.000000e+00> : vector<16x64xf32>
    %140 = tpu.matmul %137, %139, %cst_38 {dimension_numbers = #tpu.dot_dimension_numbers<[1], [0], [0], [1], [0, 0, 1, 1], [], []>} : vector<16x256xf32>, vector<256x64xf32>, vector<16x64xf32> -> vector<16x64xf32>
    %141 = vector.extract_strided_slice %3 {offsets = [5, 0], sizes = [1, 64], strides = [1, 1]} : vector<6x64xf32> to vector<1x64xf32>
    %142 = vector.shape_cast %141 : vector<1x64xf32> to vector<64xf32>
    %143 = vector.shape_cast %142 : vector<64xf32> to vector<1x64xf32>
    %144 = vector.broadcast %143 : vector<1x64xf32> to vector<16x64xf32>
    %145 = arith.addf %140, %144 : vector<16x64xf32>
    %146 = arith.addf %99, %145 : vector<16x64xf32>
    %c1 = arith.constant 1 : index
    %c0_39 = arith.constant 0 : index
    %c0_40 = arith.constant 0 : index
    %147 = vector.load %arg6[%c1, %c0_39, %c0_40] : memref<2x6x64xf32, #tpu.memory_space<vmem>>, vector<1x6x64xf32>
    %148 = vector.shape_cast %147 : vector<1x6x64xf32> to vector<6x64xf32>
    %149 = vector.extract_strided_slice %148 {offsets = [0, 0], sizes = [1, 64], strides = [1, 1]} : vector<6x64xf32> to vector<1x64xf32>
    %150 = vector.shape_cast %149 : vector<1x64xf32> to vector<64xf32>
    %151 = vector.extract_strided_slice %148 {offsets = [1, 0], sizes = [1, 64], strides = [1, 1]} : vector<6x64xf32> to vector<1x64xf32>
    %152 = vector.shape_cast %151 : vector<1x64xf32> to vector<64xf32>
    %cst_41 = arith.constant dense<0.000000e+00> : vector<16xf32>
    %153 = vector.multi_reduction <add>, %146, %cst_41 [1] : vector<16x64xf32> to vector<16xf32>
    %154 = vector.shape_cast %153 : vector<16xf32> to vector<16x1xf32>
    %cst_42 = arith.constant 6.400000e+01 : f32
    %155 = vector.broadcast %cst_42 : f32 to vector<16x1xf32>
    %156 = arith.divf %154, %155 : vector<16x1xf32>
    %157 = vector.broadcast %156 : vector<16x1xf32> to vector<16x64xf32>
    %158 = arith.subf %146, %157 : vector<16x64xf32>
    %159 = arith.mulf %158, %158 : vector<16x64xf32>
    %cst_43 = arith.constant dense<0.000000e+00> : vector<16xf32>
    %160 = vector.multi_reduction <add>, %159, %cst_43 [1] : vector<16x64xf32> to vector<16xf32>
    %161 = vector.shape_cast %160 : vector<16xf32> to vector<16x1xf32>
    %cst_44 = arith.constant 6.400000e+01 : f32
    %162 = vector.broadcast %cst_44 : f32 to vector<16x1xf32>
    %163 = arith.divf %161, %162 : vector<16x1xf32>
    %164 = vector.broadcast %156 : vector<16x1xf32> to vector<16x64xf32>
    %165 = arith.subf %146, %164 : vector<16x64xf32>
    %cst_45 = arith.constant 9.99999974E-6 : f32
    %166 = vector.broadcast %cst_45 : f32 to vector<16x1xf32>
    %167 = arith.addf %163, %166 : vector<16x1xf32>
    %168 = math.rsqrt %167 : vector<16x1xf32>
    %169 = vector.broadcast %168 : vector<16x1xf32> to vector<16x64xf32>
    %170 = arith.mulf %165, %169 : vector<16x64xf32>
    %171 = vector.shape_cast %150 : vector<64xf32> to vector<1x64xf32>
    %172 = vector.broadcast %171 : vector<1x64xf32> to vector<16x64xf32>
    %173 = arith.mulf %170, %172 : vector<16x64xf32>
    %174 = vector.shape_cast %152 : vector<64xf32> to vector<1x64xf32>
    %175 = vector.broadcast %174 : vector<1x64xf32> to vector<16x64xf32>
    %176 = arith.addf %173, %175 : vector<16x64xf32>
    %c1_46 = arith.constant 1 : index
    %c0_47 = arith.constant 0 : index
    %c0_48 = arith.constant 0 : index
    %177 = vector.load %arg2[%c1_46, %c0_47, %c0_48] : memref<2x64x192xf32, #tpu.memory_space<vmem>>, vector<1x64x192xf32>
    %178 = vector.shape_cast %177 : vector<1x64x192xf32> to vector<64x192xf32>
    %cst_49 = arith.constant dense<0.000000e+00> : vector<16x192xf32>
    %179 = tpu.matmul %176, %178, %cst_49 {dimension_numbers = #tpu.dot_dimension_numbers<[1], [0], [0], [1], [0, 0, 1, 1], [], []>} : vector<16x64xf32>, vector<64x192xf32>, vector<16x192xf32> -> vector<16x192xf32>
    %180 = vector.extract_strided_slice %179 {offsets = [0, 0], sizes = [16, 64], strides = [1, 1]} : vector<16x192xf32> to vector<16x64xf32>
    %181 = vector.extract_strided_slice %179 {offsets = [0, 64], sizes = [16, 64], strides = [1, 1]} : vector<16x192xf32> to vector<16x64xf32>
    %182 = vector.extract_strided_slice %179 {offsets = [0, 128], sizes = [16, 64], strides = [1, 1]} : vector<16x192xf32> to vector<16x64xf32>
    %183 = vector.extract_strided_slice %180 {offsets = [0, 0], sizes = [16, 16], strides = [1, 1]} : vector<16x64xf32> to vector<16x16xf32>
    %184 = vector.extract_strided_slice %180 {offsets = [0, 16], sizes = [16, 16], strides = [1, 1]} : vector<16x64xf32> to vector<16x16xf32>
    %185 = vector.extract_strided_slice %180 {offsets = [0, 32], sizes = [16, 16], strides = [1, 1]} : vector<16x64xf32> to vector<16x16xf32>
    %186 = vector.extract_strided_slice %180 {offsets = [0, 48], sizes = [16, 16], strides = [1, 1]} : vector<16x64xf32> to vector<16x16xf32>
    %187 = vector.shape_cast %183 : vector<16x16xf32> to vector<1x16x16xf32>
    %188 = vector.shape_cast %184 : vector<16x16xf32> to vector<1x16x16xf32>
    %189 = vector.shape_cast %185 : vector<16x16xf32> to vector<1x16x16xf32>
    %190 = vector.shape_cast %186 : vector<16x16xf32> to vector<1x16x16xf32>
    %191 = tpu.concatenate %187, %188, %189, %190 in 0 : vector<1x16x16xf32>, vector<1x16x16xf32>, vector<1x16x16xf32>, vector<1x16x16xf32> -> vector<4x16x16xf32>
    %192 = vector.extract_strided_slice %181 {offsets = [0, 0], sizes = [16, 16], strides = [1, 1]} : vector<16x64xf32> to vector<16x16xf32>
    %193 = vector.extract_strided_slice %181 {offsets = [0, 16], sizes = [16, 16], strides = [1, 1]} : vector<16x64xf32> to vector<16x16xf32>
    %194 = vector.extract_strided_slice %181 {offsets = [0, 32], sizes = [16, 16], strides = [1, 1]} : vector<16x64xf32> to vector<16x16xf32>
    %195 = vector.extract_strided_slice %181 {offsets = [0, 48], sizes = [16, 16], strides = [1, 1]} : vector<16x64xf32> to vector<16x16xf32>
    %196 = vector.shape_cast %192 : vector<16x16xf32> to vector<1x16x16xf32>
    %197 = vector.shape_cast %193 : vector<16x16xf32> to vector<1x16x16xf32>
    %198 = vector.shape_cast %194 : vector<16x16xf32> to vector<1x16x16xf32>
    %199 = vector.shape_cast %195 : vector<16x16xf32> to vector<1x16x16xf32>
    %200 = tpu.concatenate %196, %197, %198, %199 in 0 : vector<1x16x16xf32>, vector<1x16x16xf32>, vector<1x16x16xf32>, vector<1x16x16xf32> -> vector<4x16x16xf32>
    %201 = vector.extract_strided_slice %182 {offsets = [0, 0], sizes = [16, 16], strides = [1, 1]} : vector<16x64xf32> to vector<16x16xf32>
    %202 = vector.extract_strided_slice %182 {offsets = [0, 16], sizes = [16, 16], strides = [1, 1]} : vector<16x64xf32> to vector<16x16xf32>
    %203 = vector.extract_strided_slice %182 {offsets = [0, 32], sizes = [16, 16], strides = [1, 1]} : vector<16x64xf32> to vector<16x16xf32>
    %204 = vector.extract_strided_slice %182 {offsets = [0, 48], sizes = [16, 16], strides = [1, 1]} : vector<16x64xf32> to vector<16x16xf32>
    %205 = vector.shape_cast %201 : vector<16x16xf32> to vector<1x16x16xf32>
    %206 = vector.shape_cast %202 : vector<16x16xf32> to vector<1x16x16xf32>
    %207 = vector.shape_cast %203 : vector<16x16xf32> to vector<1x16x16xf32>
    %208 = vector.shape_cast %204 : vector<16x16xf32> to vector<1x16x16xf32>
    %209 = tpu.concatenate %205, %206, %207, %208 in 0 : vector<1x16x16xf32>, vector<1x16x16xf32>, vector<1x16x16xf32>, vector<1x16x16xf32> -> vector<4x16x16xf32>
    "tpu.trace_start"() <{level = 10 : i32, message = "hnd,hmd->hnm"}> : () -> ()
    %cst_50 = arith.constant dense<0.000000e+00> : vector<4x16x16xf32>
    %210 = tpu.matmul %191, %200, %cst_50 {dimension_numbers = #tpu.dot_dimension_numbers<[2], [2], [1], [1], [0, 0, 0, 1, 1, 1], [0], [0]>} : vector<4x16x16xf32>, vector<4x16x16xf32>, vector<4x16x16xf32> -> vector<4x16x16xf32>
    "tpu.trace_stop"() : () -> ()
    %cst_51 = arith.constant 1.250000e-01 : f32
    %211 = vector.broadcast %cst_51 : f32 to vector<4x16x16xf32>
    %212 = arith.mulf %210, %211 : vector<4x16x16xf32>
    %213 = vector.shape_cast %1 : vector<16x16xf32> to vector<1x16x16xf32>
    %214 = vector.broadcast %213 : vector<1x16x16xf32> to vector<4x16x16xf32>
    %215 = arith.addf %212, %214 : vector<4x16x16xf32>
    %cst_52 = arith.constant dense<0xFF800000> : vector<4x16xf32>
    %216 = vector.multi_reduction <maximumf>, %215, %cst_52 [2] : vector<4x16x16xf32> to vector<4x16xf32>
    %217 = vector.shape_cast %216 : vector<4x16xf32> to vector<4x16x1xf32>
    %218 = vector.broadcast %217 : vector<4x16x1xf32> to vector<4x16x16xf32>
    %219 = arith.subf %215, %218 : vector<4x16x16xf32>
    %220 = math.exp %219 : vector<4x16x16xf32>
    %cst_53 = arith.constant dense<0.000000e+00> : vector<4x16xf32>
    %221 = vector.multi_reduction <add>, %220, %cst_53 [2] : vector<4x16x16xf32> to vector<4x16xf32>
    %222 = vector.shape_cast %221 : vector<4x16xf32> to vector<4x16x1xf32>
    %223 = tpu.reciprocal %222 {approx = true} : vector<4x16x1xf32> -> vector<4x16x1xf32>
    %224 = vector.broadcast %223 : vector<4x16x1xf32> to vector<4x16x16xf32>
    %225 = arith.mulf %220, %224 : vector<4x16x16xf32>
    "tpu.trace_start"() <{level = 10 : i32, message = "hnm,hmd->hnd"}> : () -> ()
    %cst_54 = arith.constant dense<0.000000e+00> : vector<4x16x16xf32>
    %226 = tpu.matmul %225, %209, %cst_54 {dimension_numbers = #tpu.dot_dimension_numbers<[2], [1], [1], [2], [0, 0, 0, 1, 1, 2], [0], [0]>} : vector<4x16x16xf32>, vector<4x16x16xf32>, vector<4x16x16xf32> -> vector<4x16x16xf32>
    "tpu.trace_stop"() : () -> ()
    %227 = vector.extract_strided_slice %226 {offsets = [0, 0, 0], sizes = [1, 16, 16], strides = [1, 1, 1]} : vector<4x16x16xf32> to vector<1x16x16xf32>
    %228 = vector.shape_cast %227 : vector<1x16x16xf32> to vector<16x16xf32>
    %229 = vector.extract_strided_slice %226 {offsets = [1, 0, 0], sizes = [1, 16, 16], strides = [1, 1, 1]} : vector<4x16x16xf32> to vector<1x16x16xf32>
    %230 = vector.shape_cast %229 : vector<1x16x16xf32> to vector<16x16xf32>
    %231 = vector.extract_strided_slice %226 {offsets = [2, 0, 0], sizes = [1, 16, 16], strides = [1, 1, 1]} : vector<4x16x16xf32> to vector<1x16x16xf32>
    %232 = vector.shape_cast %231 : vector<1x16x16xf32> to vector<16x16xf32>
    %233 = vector.extract_strided_slice %226 {offsets = [3, 0, 0], sizes = [1, 16, 16], strides = [1, 1, 1]} : vector<4x16x16xf32> to vector<1x16x16xf32>
    %234 = vector.shape_cast %233 : vector<1x16x16xf32> to vector<16x16xf32>
    %235 = tpu.concatenate %228, %230, %232, %234 in 1 : vector<16x16xf32>, vector<16x16xf32>, vector<16x16xf32>, vector<16x16xf32> -> vector<16x64xf32>
    %c1_55 = arith.constant 1 : index
    %c0_56 = arith.constant 0 : index
    %c0_57 = arith.constant 0 : index
    %236 = vector.load %arg3[%c1_55, %c0_56, %c0_57] : memref<2x64x64xf32, #tpu.memory_space<vmem>>, vector<1x64x64xf32>
    %237 = vector.shape_cast %236 : vector<1x64x64xf32> to vector<64x64xf32>
    %cst_58 = arith.constant dense<0.000000e+00> : vector<16x64xf32>
    %238 = tpu.matmul %235, %237, %cst_58 {dimension_numbers = #tpu.dot_dimension_numbers<[1], [0], [0], [1], [0, 0, 1, 1], [], []>} : vector<16x64xf32>, vector<64x64xf32>, vector<16x64xf32> -> vector<16x64xf32>
    %239 = vector.extract_strided_slice %148 {offsets = [2, 0], sizes = [1, 64], strides = [1, 1]} : vector<6x64xf32> to vector<1x64xf32>
    %240 = vector.shape_cast %239 : vector<1x64xf32> to vector<64xf32>
    %241 = vector.shape_cast %240 : vector<64xf32> to vector<1x64xf32>
    %242 = vector.broadcast %241 : vector<1x64xf32> to vector<16x64xf32>
    %243 = arith.addf %238, %242 : vector<16x64xf32>
    %244 = arith.addf %146, %243 : vector<16x64xf32>
    %245 = vector.extract_strided_slice %148 {offsets = [3, 0], sizes = [1, 64], strides = [1, 1]} : vector<6x64xf32> to vector<1x64xf32>
    %246 = vector.shape_cast %245 : vector<1x64xf32> to vector<64xf32>
    %247 = vector.extract_strided_slice %148 {offsets = [4, 0], sizes = [1, 64], strides = [1, 1]} : vector<6x64xf32> to vector<1x64xf32>
    %248 = vector.shape_cast %247 : vector<1x64xf32> to vector<64xf32>
    %cst_59 = arith.constant dense<0.000000e+00> : vector<16xf32>
    %249 = vector.multi_reduction <add>, %244, %cst_59 [1] : vector<16x64xf32> to vector<16xf32>
    %250 = vector.shape_cast %249 : vector<16xf32> to vector<16x1xf32>
    %cst_60 = arith.constant 6.400000e+01 : f32
    %251 = vector.broadcast %cst_60 : f32 to vector<16x1xf32>
    %252 = arith.divf %250, %251 : vector<16x1xf32>
    %253 = vector.broadcast %252 : vector<16x1xf32> to vector<16x64xf32>
    %254 = arith.subf %244, %253 : vector<16x64xf32>
    %255 = arith.mulf %254, %254 : vector<16x64xf32>
    %cst_61 = arith.constant dense<0.000000e+00> : vector<16xf32>
    %256 = vector.multi_reduction <add>, %255, %cst_61 [1] : vector<16x64xf32> to vector<16xf32>
    %257 = vector.shape_cast %256 : vector<16xf32> to vector<16x1xf32>
    %cst_62 = arith.constant 6.400000e+01 : f32
    %258 = vector.broadcast %cst_62 : f32 to vector<16x1xf32>
    %259 = arith.divf %257, %258 : vector<16x1xf32>
    %260 = vector.broadcast %252 : vector<16x1xf32> to vector<16x64xf32>
    %261 = arith.subf %244, %260 : vector<16x64xf32>
    %cst_63 = arith.constant 9.99999974E-6 : f32
    %262 = vector.broadcast %cst_63 : f32 to vector<16x1xf32>
    %263 = arith.addf %259, %262 : vector<16x1xf32>
    %264 = math.rsqrt %263 : vector<16x1xf32>
    %265 = vector.broadcast %264 : vector<16x1xf32> to vector<16x64xf32>
    %266 = arith.mulf %261, %265 : vector<16x64xf32>
    %267 = vector.shape_cast %246 : vector<64xf32> to vector<1x64xf32>
    %268 = vector.broadcast %267 : vector<1x64xf32> to vector<16x64xf32>
    %269 = arith.mulf %266, %268 : vector<16x64xf32>
    %270 = vector.shape_cast %248 : vector<64xf32> to vector<1x64xf32>
    %271 = vector.broadcast %270 : vector<1x64xf32> to vector<16x64xf32>
    %272 = arith.addf %269, %271 : vector<16x64xf32>
    %c1_64 = arith.constant 1 : index
    %c0_65 = arith.constant 0 : index
    %c0_66 = arith.constant 0 : index
    %273 = vector.load %arg4[%c1_64, %c0_65, %c0_66] : memref<2x64x256xf32, #tpu.memory_space<vmem>>, vector<1x64x256xf32>
    %274 = vector.shape_cast %273 : vector<1x64x256xf32> to vector<64x256xf32>
    %cst_67 = arith.constant dense<0.000000e+00> : vector<16x256xf32>
    %275 = tpu.matmul %272, %274, %cst_67 {dimension_numbers = #tpu.dot_dimension_numbers<[1], [0], [0], [1], [0, 0, 1, 1], [], []>} : vector<16x64xf32>, vector<64x256xf32>, vector<16x256xf32> -> vector<16x256xf32>
    %c1_68 = arith.constant 1 : index
    %c0_69 = arith.constant 0 : index
    %276 = vector.load %arg7[%c1_68, %c0_69] : memref<2x256xf32, #tpu.memory_space<vmem>>, vector<1x256xf32>
    %277 = vector.shape_cast %276 : vector<1x256xf32> to vector<256xf32>
    %278 = vector.shape_cast %277 : vector<256xf32> to vector<1x256xf32>
    %279 = vector.broadcast %278 : vector<1x256xf32> to vector<16x256xf32>
    %280 = arith.addf %275, %279 : vector<16x256xf32>
    %cst_70 = arith.constant 0.000000e+00 : f32
    %281 = vector.broadcast %cst_70 : f32 to vector<16x256xf32>
    %282 = arith.maximumf %280, %281 : vector<16x256xf32>
    %c1_71 = arith.constant 1 : index
    %c0_72 = arith.constant 0 : index
    %c0_73 = arith.constant 0 : index
    %283 = vector.load %arg5[%c1_71, %c0_72, %c0_73] : memref<2x256x64xf32, #tpu.memory_space<vmem>>, vector<1x256x64xf32>
    %284 = vector.shape_cast %283 : vector<1x256x64xf32> to vector<256x64xf32>
    %cst_74 = arith.constant dense<0.000000e+00> : vector<16x64xf32>
    %285 = tpu.matmul %282, %284, %cst_74 {dimension_numbers = #tpu.dot_dimension_numbers<[1], [0], [0], [1], [0, 0, 1, 1], [], []>} : vector<16x256xf32>, vector<256x64xf32>, vector<16x64xf32> -> vector<16x64xf32>
    %286 = vector.extract_strided_slice %148 {offsets = [5, 0], sizes = [1, 64], strides = [1, 1]} : vector<6x64xf32> to vector<1x64xf32>
    %287 = vector.shape_cast %286 : vector<1x64xf32> to vector<64xf32>
    %288 = vector.shape_cast %287 : vector<64xf32> to vector<1x64xf32>
    %289 = vector.broadcast %288 : vector<1x64xf32> to vector<16x64xf32>
    %290 = arith.addf %285, %289 : vector<16x64xf32>
    %291 = arith.addf %244, %290 : vector<16x64xf32>
    %c0_75 = arith.constant 0 : index
    %c0_76 = arith.constant 0 : index
    %292 = vector.load %arg8[%c0_75, %c0_76] : memref<2x64xf32, #tpu.memory_space<vmem>>, vector<1x64xf32>
    %293 = vector.shape_cast %292 : vector<1x64xf32> to vector<64xf32>
    %c1_77 = arith.constant 1 : index
    %c0_78 = arith.constant 0 : index
    %294 = vector.load %arg8[%c1_77, %c0_78] : memref<2x64xf32, #tpu.memory_space<vmem>>, vector<1x64xf32>
    %295 = vector.shape_cast %294 : vector<1x64xf32> to vector<64xf32>
    %cst_79 = arith.constant dense<0.000000e+00> : vector<16xf32>
    %296 = vector.multi_reduction <add>, %291, %cst_79 [1] : vector<16x64xf32> to vector<16xf32>
    %297 = vector.shape_cast %296 : vector<16xf32> to vector<16x1xf32>
    %cst_80 = arith.constant 6.400000e+01 : f32
    %298 = vector.broadcast %cst_80 : f32 to vector<16x1xf32>
    %299 = arith.divf %297, %298 : vector<16x1xf32>
    %300 = vector.broadcast %299 : vector<16x1xf32> to vector<16x64xf32>
    %301 = arith.subf %291, %300 : vector<16x64xf32>
    %302 = arith.mulf %301, %301 : vector<16x64xf32>
    %cst_81 = arith.constant dense<0.000000e+00> : vector<16xf32>
    %303 = vector.multi_reduction <add>, %302, %cst_81 [1] : vector<16x64xf32> to vector<16xf32>
    %304 = vector.shape_cast %303 : vector<16xf32> to vector<16x1xf32>
    %cst_82 = arith.constant 6.400000e+01 : f32
    %305 = vector.broadcast %cst_82 : f32 to vector<16x1xf32>
    %306 = arith.divf %304, %305 : vector<16x1xf32>
    %307 = vector.broadcast %299 : vector<16x1xf32> to vector<16x64xf32>
    %308 = arith.subf %291, %307 : vector<16x64xf32>
    %cst_83 = arith.constant 9.99999974E-6 : f32
    %309 = vector.broadcast %cst_83 : f32 to vector<16x1xf32>
    %310 = arith.addf %306, %309 : vector<16x1xf32>
    %311 = math.rsqrt %310 : vector<16x1xf32>
    %312 = vector.broadcast %311 : vector<16x1xf32> to vector<16x64xf32>
    %313 = arith.mulf %308, %312 : vector<16x64xf32>
    %314 = vector.shape_cast %293 : vector<64xf32> to vector<1x64xf32>
    %315 = vector.broadcast %314 : vector<1x64xf32> to vector<16x64xf32>
    %316 = arith.mulf %313, %315 : vector<16x64xf32>
    %317 = vector.shape_cast %295 : vector<64xf32> to vector<1x64xf32>
    %318 = vector.broadcast %317 : vector<1x64xf32> to vector<16x64xf32>
    %319 = arith.addf %316, %318 : vector<16x64xf32>
    %c0_84 = arith.constant 0 : index
    %c0_85 = arith.constant 0 : index
    %320 = vector.load %arg9[%c0_84, %c0_85] : memref<64x128xf32, #tpu.memory_space<vmem>>, vector<64x128xf32>
    %cst_86 = arith.constant dense<0.000000e+00> : vector<16x128xf32>
    %321 = tpu.matmul %319, %320, %cst_86 {dimension_numbers = #tpu.dot_dimension_numbers<[1], [0], [0], [1], [0, 0, 1, 1], [], []>} : vector<16x64xf32>, vector<64x128xf32>, vector<16x128xf32> -> vector<16x128xf32>
    %c0_87 = arith.constant 0 : index
    %c0_88 = arith.constant 0 : index
    %322 = vector.load %arg10[%c0_87, %c0_88] : memref<1x128xf32, #tpu.memory_space<vmem>>, vector<1x128xf32>
    %323 = vector.shape_cast %322 : vector<1x128xf32> to vector<128xf32>
    %324 = vector.shape_cast %323 : vector<128xf32> to vector<1x128xf32>
    %325 = vector.broadcast %324 : vector<1x128xf32> to vector<16x128xf32>
    %326 = arith.addf %321, %325 : vector<16x128xf32>
    %c0_89 = arith.constant 0 : index
    %c0_90 = arith.constant 0 : index
    %327 = vector.load %arg11[%c0_89, %c0_90] : memref<16x128xf32, #tpu.memory_space<vmem>>, vector<16x128xf32>
    tpu.vector_store %arg11[%c0_89, %c0_90], %326 {strides = array<i32>} : memref<16x128xf32, #tpu.memory_space<vmem>>, vector<16x128xf32>,
    return
  }
}

</mosaic_0001>

<llo_original>
// kernel: bigram_lm_forward.1
$region0: #{bigram_lm_forward.1}
  #allocation0 [shape = 'u32[]', space=smem, size = 0x4, offset = 0x4, fixed_abs, tag = 'smem constant byte address 0x4 - core index']
  #allocation1 [shape = 'u32[144,128]{1,0:T(1,128)}', space=vmem, size = 0x12000, scoped, tag = 'internal scratch']
  %s0 = inlined_call_operand.vmem [shape: f32[16,64], index: 0, kind: input, shape index: {}]
  %s1 = inlined_call_operand.vmem [shape: f32[16,16], index: 1, kind: input, shape index: {}]
  %s2 = inlined_call_operand.vmem [shape: f32[2,64,192], index: 2, kind: input, shape index: {}]
  %s3 = inlined_call_operand.vmem [shape: f32[2,64,64], index: 3, kind: input, shape index: {}]
  %s4 = inlined_call_operand.vmem [shape: f32[2,64,256], index: 4, kind: input, shape index: {}]
  %s5 = inlined_call_operand.vmem [shape: f32[2,256,64], index: 5, kind: input, shape index: {}]
  %s6 = inlined_call_operand.vmem [shape: f32[2,6,64], index: 6, kind: input, shape index: {}]
  %s7 = inlined_call_operand.vmem [shape: f32[2,256], index: 7, kind: input, shape index: {}]
  %s8 = inlined_call_operand.vmem [shape: f32[2,64], index: 8, kind: input, shape index: {}]
  %s9 = inlined_call_operand.vmem [shape: f32[64,128], index: 9, kind: input, shape index: {}]
  %s10 = inlined_call_operand.vmem [shape: f32[1,128], index: 10, kind: input, shape index: {}]
  %s11 = inlined_call_operand.hbm [shape: f32[16,128], index: 11, kind: output, shape index: {}]
  %s12 = sld [smem:[#allocation0]]
  $region54: #{bigram_lm_forward.1} parent=0
    _
  %s14 = ssub.s32 1, %s12
  %s15 = scalar_select 0, %s14, %s12
  $region1: #{bigram_lm_forward.1} parent=0
    #allocation2 [shape = 'u8[8192]{0}', space=vmem, size = 0x2000, scoped, tag = 'output window, operand 0, single buffered']
    #allocation3 [shape = 's32[1]{0}', space=sflag, size = 0x4, scoped, tag = 'scoped memory for bigram_lm_forward.1']
    %16 = vsyncpa [#allocation3], 0
    // Predicated region
    $region2: #{bigram_lm_forward.1} parent=1 // pred_check
      _
    $region3: #{bigram_lm_forward.1} parent=1 // pred_check_branch
      %18 = sbr.rel (0) target = $region5
    $region4: #{bigram_lm_forward.1} parent=1 // pred_region
      _
    $region5: #{bigram_lm_forward.1} parent=1 // pred_fallthru
      _
    // Predicated region
    $region6: #{bigram_lm_forward.1} parent=1 // pred_check
      _
    $region7: #{bigram_lm_forward.1} parent=1 // pred_check_branch
      %20 = sbr.rel (0) target = $region9
    $region8: #{bigram_lm_forward.1} parent=1 // pred_region
      _
    $region9: #{bigram_lm_forward.1} parent=1 // pred_fallthru
      _
    // Predicated region
    $region10: #{bigram_lm_forward.1} parent=1 // pred_check
      _
    $region11: #{bigram_lm_forward.1} parent=1 // pred_check_branch
      %22 = sbr.rel (0) target = $region13
    $region12: #{bigram_lm_forward.1} parent=1 // pred_region
      _
    $region13: #{bigram_lm_forward.1} parent=1 // pred_fallthru
      _
    // Predicated region
    $region14: #{bigram_lm_forward.1} parent=1 // pred_check
      _
    $region15: #{bigram_lm_forward.1} parent=1 // pred_check_branch
      %24 = sbr.rel (0) target = $region17
    $region16: #{bigram_lm_forward.1} parent=1 // pred_region
      _
    $region17: #{bigram_lm_forward.1} parent=1 // pred_fallthru
      _
    // Predicated region
    $region18: #{bigram_lm_forward.1} parent=1 // pred_check
      _
    $region19: #{bigram_lm_forward.1} parent=1 // pred_check_branch
      %26 = sbr.rel (0) target = $region21
    $region20: #{bigram_lm_forward.1} parent=1 // pred_region
      _
    $region21: #{bigram_lm_forward.1} parent=1 // pred_fallthru
      _
    // Predicated region
    $region22: #{bigram_lm_forward.1} parent=1 // pred_check
      _
    $region23: #{bigram_lm_forward.1} parent=1 // pred_check_branch
      %28 = sbr.rel (0) target = $region25
    $region24: #{bigram_lm_forward.1} parent=1 // pred_region
      _
    $region25: #{bigram_lm_forward.1} parent=1 // pred_fallthru
      _
    // Predicated region
    $region26: #{bigram_lm_forward.1} parent=1 // pred_check
      _
    $region27: #{bigram_lm_forward.1} parent=1 // pred_check_branch
      %30 = sbr.rel (0) target = $region29
    $region28: #{bigram_lm_forward.1} parent=1 // pred_region
      _
    $region29: #{bigram_lm_forward.1} parent=1 // pred_fallthru
      _
    // Predicated region
    $region30: #{bigram_lm_forward.1} parent=1 // pred_check
      _
    $region31: #{bigram_lm_forward.1} parent=1 // pred_check_branch
      %32 = sbr.rel (0) target = $region33
    $region32: #{bigram_lm_forward.1} parent=1 // pred_region
      _
    $region33: #{bigram_lm_forward.1} parent=1 // pred_fallthru
      _
    // Predicated region
    $region34: #{bigram_lm_forward.1} parent=1 // pred_check
      _
    $region35: #{bigram_lm_forward.1} parent=1 // pred_check_branch
      %34 = sbr.rel (0) target = $region37
    $region36: #{bigram_lm_forward.1} parent=1 // pred_region
      _
    $region37: #{bigram_lm_forward.1} parent=1 // pred_fallthru
      _
    // Predicated region
    $region38: #{bigram_lm_forward.1} parent=1 // pred_check
      _
    $region39: #{bigram_lm_forward.1} parent=1 // pred_check_branch
      %36 = sbr.rel (0) target = $region41
    $region40: #{bigram_lm_forward.1} parent=1 // pred_region
      _
    $region41: #{bigram_lm_forward.1} parent=1 // pred_fallthru
      _
    // Predicated region
    $region42: #{bigram_lm_forward.1} parent=1 // pred_check
      _
    $region43: #{bigram_lm_forward.1} parent=1 // pred_check_branch
      %38 = sbr.rel (0) target = $region45
    $region44: #{bigram_lm_forward.1} parent=1 // pred_region
      _
    $region45: #{bigram_lm_forward.1} parent=1 // pred_fallthru
      _
    %v39 = vld [vmem:[%s0] sm:$0xff]
    %v40 = vld [vmem:[%s0 + $0x8] sm:$0xff]
    %v41 = vld [vmem:[%s1] sm:$0xff]
    %v42 = vld [vmem:[%s1 + $0x8] sm:$0xff]
    %v43 = vld [vmem:[%s6] sm:$0x3f]
    %vm44 = vcmask 523264
    %v45 = vsel %vm44, %v39, 0.0
    %46 = vadd.xlane.f32.xlu0 %v45
    %v47 = vpop.xlane.xlu0 %46
    %v48 = vsel %vm44, %v40, 0.0
    %49 = vadd.xlane.f32.xlu0 %v48
    %v50 = vpop.xlane.xlu0 %49
    %v51 = vrcp.pop 64.0
    %v52 = vmul.f32 %v47, %v51
    %v53 = vmul.f32 %v50, %v51
    %v54 = vsub.f32 %v39, %v52
    %v55 = vsub.f32 %v40, %v53
    %v56 = vmul.f32 %v54, %v54
    %v57 = vmul.f32 %v55, %v55
    %v58 = vsel %vm44, %v56, 0.0
    %59 = vadd.xlane.f32.xlu0 %v58
    %v60 = vpop.xlane.xlu0 %59
    %v61 = vsel %vm44, %v57, 0.0
    %62 = vadd.xlane.f32.xlu0 %v61
    %v63 = vpop.xlane.xlu0 %62
    %v64 = vmul.f32 %v60, %v51
    %v65 = vmul.f32 %v63, %v51
    %v66 = vadd.f32 %v64, 1e-05
    %v67 = vadd.f32 %v65, 1e-05
    %v68 = vrsqrt.pop %v66
    %v69 = vrsqrt.pop %v67
    %v70 = vmul.f32 %v54, %v68
    %v71 = vmul.f32 %v55, %v69
    %v72 = vlaneseq
    %v73 = vshrl.u32 %v72, 7
    %v74 = vsub.s32 0, %v73
    %v75 = vrot.slane %v43, %v74
    %v76 = vmul.f32 %v70, %v75
    %v77 = vmul.f32 %v71, %v75
    %v78 = vlaneseq
    %v79 = vshrl.u32 %v78, 7
    %v80 = vsub.s32 1, %v79
    %v81 = vrot.slane %v43, %v80
    %v82 = vadd.f32 %v76, %v81
    %v83 = vadd.f32 %v77, %v81
    %v84 = vld [vmem:[%s2] sm:$0xff]
    %v85 = vld [vmem:[%s2 + $0x8] sm:$0xff]
    %v86 = vld [vmem:[%s2 + $0x10] sm:$0xff]
    %v87 = vld [vmem:[%s2 + $0x18] sm:$0xff]
    %v88 = vld [vmem:[%s2 + $0x20] sm:$0xff]
    %v89 = vld [vmem:[%s2 + $0x28] sm:$0xff]
    %v90 = vld [vmem:[%s2 + $0x30] sm:$0xff]
    %v91 = vld [vmem:[%s2 + $0x38] sm:$0xff]
    %v92 = vld [vmem:[%s2 + $0x40] sm:$0xff]
    %v93 = vld [vmem:[%s2 + $0x48] sm:$0xff]
    %v94 = vld [vmem:[%s2 + $0x50] sm:$0xff]
    %v95 = vld [vmem:[%s2 + $0x58] sm:$0xff]
    %v96 = vld [vmem:[%s2 + $0x60] sm:$0xff]
    %v97 = vld [vmem:[%s2 + $0x68] sm:$0xff]
    %v98 = vld [vmem:[%s2 + $0x70] sm:$0xff]
    %v99 = vld [vmem:[%s2 + $0x78] sm:$0xff]
    %v101 = vsel %vm44, %v82, 0
    %v104 = vsel %vm44, %v83, 0
    %106 = vmatprep.subr.mxu0 0.0
    %107 = vmatpush1.msra.mxu0 0.0
    %108 = vmatprep.subr.mxu0 0.0
    %109 = vmatpush1.msra.mxu0 0.0
    %110 = vmatprep.subr.mxu0 0.0
    %111 = vmatpush1.msra.mxu0 0.0
    %112 = vmatprep.subr.mxu0 0.0
    %113 = vmatpush1.msra.mxu0 0.0
    %114 = vmatprep.subr.mxu0 0.0
    %115 = vmatpush1.msra.mxu0 0.0
    %116 = vmatprep.subr.mxu0 0.0
    %117 = vmatpush1.msra.mxu0 0.0
    %118 = vmatprep.subr.mxu0 0.0
    %119 = vmatpush1.msra.mxu0 0.0
    %120 = vmatprep.subr.mxu0 0.0
    %121 = vmatpush1.msra.mxu0 0.0
    %122 = vmatprep.subr.mxu0 %v99
    %123 = vmatpush1.msra.mxu0 %v98
    %124 = vmatprep.subr.mxu0 %v97
    %125 = vmatpush1.msra.mxu0 %v96
    %126 = vmatprep.subr.mxu0 %v95
    %127 = vmatpush1.msra.mxu0 %v94
    %128 = vmatprep.subr.mxu0 %v93
    %129 = vmatpush1.msra.mxu0 %v92
    %130 = vmatprep.subr.mxu0 %v91
    %131 = vmatpush1.msra.mxu0 %v90
    %132 = vmatprep.subr.mxu0 %v89
    %133 = vmatpush1.msra.mxu0 %v88
    %134 = vmatprep.subr.mxu0 %v87
    %135 = vmatpush1.msra.mxu0 %v86
    %136 = vmatprep.subr.mxu0 %v85
    %137 = vmatpush1.msra.mxu0 %v84
    %138 = vmatprep.subr.mxu0 0.0
    %139 = vmatpush2.msra.mxu0 0.0
    %140 = vmatprep.subr.mxu0 0.0
    %141 = vmatpush2.msra.mxu0 0.0
    %142 = vmatprep.subr.mxu0 0.0
    %143 = vmatpush2.msra.mxu0 0.0
    %144 = vmatprep.subr.mxu0 0.0
    %145 = vmatpush2.msra.mxu0 0.0
    %146 = vmatprep.subr.mxu0 0.0
    %147 = vmatpush2.msra.mxu0 0.0
    %148 = vmatprep.subr.mxu0 0.0
    %149 = vmatpush2.msra.mxu0 0.0
    %150 = vmatprep.subr.mxu0 0.0
    %151 = vmatpush2.msra.mxu0 0.0
    %152 = vmatprep.subr.mxu0 0.0
    %153 = vmatpush2.msra.mxu0 0.0
    %154 = vmatprep.subr.mxu0 0.0
    %155 = vmatpush2.msra.mxu0 0.0
    %156 = vmatprep.subr.mxu0 0.0
    %157 = vmatpush2.msra.mxu0 0.0
    %158 = vmatprep.subr.mxu0 0.0
    %159 = vmatpush2.msra.mxu0 0.0
    %160 = vmatprep.subr.mxu0 0.0
    %161 = vmatpush2.msra.mxu0 0.0
    %162 = vmatprep.subr.mxu0 0.0
    %163 = vmatpush2.msra.mxu0 0.0
    %164 = vmatprep.subr.mxu0 0.0
    %165 = vmatpush2.msra.mxu0 0.0
    %166 = vmatprep.subr.mxu0 0.0
    %167 = vmatpush2.msra.mxu0 0.0
    %168 = vmatprep.subr.mxu0 0.0
    %169 = vmatpush2.msra.mxu0 0.0
    %170 = vmatprep.mubr.f32.mxu0 0.0
    %171 = vmatmul.mubr.f32.gmra.mxu0 %v101
    %v172 = vpop.f32.mrf.mxu0
    %v173 = vadd.f32 0.0, %v172
    %v174 = vpop.f32.mrf.mxu0
    %v175 = vadd.f32 0.0, %v174
    %176 = vmatprep.mubr.f32.mxu0 0.0
    %177 = vmatmul.mubr.f32.gmra.mxu0 %v104
    %v178 = vpop.f32.mrf.mxu0
    %v179 = vadd.f32 0.0, %v178
    %v180 = vpop.f32.mrf.mxu0
    %v181 = vadd.f32 0.0, %v180
    %182 = vdwg.mxu0
    %185 = vrot.lane.b32.xlu0 %v173, 112
    %v186 = vpop.permute.xlu0 %185
    %187 = vrot.lane.b32.xlu0 %v179, 112
    %v188 = vpop.permute.xlu0 %187
    %189 = vrot.lane.b32.xlu0 %v173, 96
    %v190 = vpop.permute.xlu0 %189
    %191 = vrot.lane.b32.xlu0 %v179, 96
    %v192 = vpop.permute.xlu0 %191
    %193 = vrot.lane.b32.xlu0 %v173, 80
    %v194 = vpop.permute.xlu0 %193
    %195 = vrot.lane.b32.xlu0 %v179, 80
    %v196 = vpop.permute.xlu0 %195
    %199 = vrot.lane.b32.xlu0 %v175, 112
    %v200 = vpop.permute.xlu0 %199
    %201 = vrot.lane.b32.xlu0 %v181, 112
    %v202 = vpop.permute.xlu0 %201
    %205 = vrot.lane.b32.xlu0 %v175, 96
    %v206 = vpop.permute.xlu0 %205
    %207 = vrot.lane.b32.xlu0 %v181, 96
    %v208 = vpop.permute.xlu0 %207
    %211 = vrot.lane.b32.xlu0 %v175, 80
    %v212 = vpop.permute.xlu0 %211
    %213 = vrot.lane.b32.xlu0 %v181, 80
    %v214 = vpop.permute.xlu0 %213
    %217 = vrot.lane.b32.xlu0 %v173, 64
    %v218 = vpop.permute.xlu0 %217
    %219 = vrot.lane.b32.xlu0 %v179, 64
    %v220 = vpop.permute.xlu0 %219
    %vm221 = vcmask 130048
    %v222 = vsel %vm221, %v173, 0
    %v224 = vsel %vm221, %v179, 0
    %v226 = vsel %vm221, %v218, 0
    %v228 = vsel %vm221, %v220, 0
    %230 = vmatprep.subr.mxu0 0.0
    %231 = vmatpush1.xpose.msra.mxu0 0.0
    %232 = vmatprep.subr.mxu0 0.0
    %233 = vmatpush1.xpose.msra.mxu0 0.0
    %234 = vmatprep.subr.mxu0 0.0
    %235 = vmatpush1.xpose.msra.mxu0 0.0
    %236 = vmatprep.subr.mxu0 0.0
    %237 = vmatpush1.xpose.msra.mxu0 0.0
    %238 = vmatprep.subr.mxu0 0.0
    %239 = vmatpush1.xpose.msra.mxu0 0.0
    %240 = vmatprep.subr.mxu0 0.0
    %241 = vmatpush1.xpose.msra.mxu0 0.0
    %242 = vmatprep.subr.mxu0 0.0
    %243 = vmatpush1.xpose.msra.mxu0 0.0
    %244 = vmatprep.subr.mxu0 0.0
    %245 = vmatpush1.xpose.msra.mxu0 0.0
    %246 = vmatprep.subr.mxu0 0.0
    %247 = vmatpush1.xpose.msra.mxu0 0.0
    %248 = vmatprep.subr.mxu0 0.0
    %249 = vmatpush1.xpose.msra.mxu0 0.0
    %250 = vmatprep.subr.mxu0 0.0
    %251 = vmatpush1.xpose.msra.mxu0 0.0
    %252 = vmatprep.subr.mxu0 0.0
    %253 = vmatpush1.xpose.msra.mxu0 0.0
    %254 = vmatprep.subr.mxu0 0.0
    %255 = vmatpush1.xpose.msra.mxu0 0.0
    %256 = vmatprep.subr.mxu0 0.0
    %257 = vmatpush1.xpose.msra.mxu0 0.0
    %258 = vmatprep.subr.mxu0 0.0
    %259 = vmatpush1.xpose.msra.mxu0 %v228
    %260 = vmatprep.subr.mxu0 0.0
    %261 = vmatpush1.xpose.msra.mxu0 %v226
    %262 = vmatprep.subr.mxu0 0.0
    %263 = vmatpush2.xpose.msra.mxu0 0.0
    %264 = vmatprep.subr.mxu0 0.0
    %265 = vmatpush2.xpose.msra.mxu0 0.0
    %266 = vmatprep.subr.mxu0 0.0
    %267 = vmatpush2.xpose.msra.mxu0 0.0
    %268 = vmatprep.subr.mxu0 0.0
    %269 = vmatpush2.xpose.msra.mxu0 0.0
    %270 = vmatprep.subr.mxu0 0.0
    %271 = vmatpush2.xpose.msra.mxu0 0.0
    %272 = vmatprep.subr.mxu0 0.0
    %273 = vmatpush2.xpose.msra.mxu0 0.0
    %274 = vmatprep.subr.mxu0 0.0
    %275 = vmatpush2.xpose.msra.mxu0 0.0
    %276 = vmatprep.subr.mxu0 0.0
    %277 = vmatpush2.xpose.msra.mxu0 0.0
    %278 = vmatprep.subr.mxu0 0.0
    %279 = vmatpush2.xpose.msra.mxu0 0.0
    %280 = vmatprep.subr.mxu0 0.0
    %281 = vmatpush2.xpose.msra.mxu0 0.0
    %282 = vmatprep.subr.mxu0 0.0
    %283 = vmatpush2.xpose.msra.mxu0 0.0
    %284 = vmatprep.subr.mxu0 0.0
    %285 = vmatpush2.xpose.msra.mxu0 0.0
    %286 = vmatprep.subr.mxu0 0.0
    %287 = vmatpush2.xpose.msra.mxu0 0.0
    %288 = vmatprep.subr.mxu0 0.0
    %289 = vmatpush2.xpose.msra.mxu0 0.0
    %290 = vmatprep.subr.mxu0 0.0
    %291 = vmatpush2.xpose.msra.mxu0 0.0
    %292 = vmatprep.subr.mxu0 0.0
    %293 = vmatpush2.xpose.msra.mxu0 0.0
    %294 = vmatprep.mubr.f32.mxu0 0.0
    %295 = vmatmul.mubr.f32.gmra.mxu0 %v222
    %v296 = vpop.f32.mrf.mxu0
    %v297 = vadd.f32 0.0, %v296
    %v298 = vpop.f32.mrf.mxu0
    %299 = vmatprep.mubr.f32.mxu0 0.0
    %300 = vmatmul.mubr.f32.gmra.mxu0 %v224
    %v301 = vpop.f32.mrf.mxu0
    %v302 = vadd.f32 0.0, %v301
    %v303 = vpop.f32.mrf.mxu0
    %304 = vdwg.mxu0
    %305 = vrot.lane.b32.xlu0 %v186, 64
    %v306 = vpop.permute.xlu0 %305
    %307 = vrot.lane.b32.xlu0 %v188, 64
    %v308 = vpop.permute.xlu0 %307
    %v309 = vsel %vm221, %v186, 0
    %v311 = vsel %vm221, %v188, 0
    %v313 = vsel %vm221, %v306, 0
    %v315 = vsel %vm221, %v308, 0
    %317 = vmatprep.subr.mxu0 0.0
    %318 = vmatpush1.xpose.msra.mxu0 0.0
    %319 = vmatprep.subr.mxu0 0.0
    %320 = vmatpush1.xpose.msra.mxu0 0.0
    %321 = vmatprep.subr.mxu0 0.0
    %322 = vmatpush1.xpose.msra.mxu0 0.0
    %323 = vmatprep.subr.mxu0 0.0
    %324 = vmatpush1.xpose.msra.mxu0 0.0
    %325 = vmatprep.subr.mxu0 0.0
    %326 = vmatpush1.xpose.msra.mxu0 0.0
    %327 = vmatprep.subr.mxu0 0.0
    %328 = vmatpush1.xpose.msra.mxu0 0.0
    %329 = vmatprep.subr.mxu0 0.0
    %330 = vmatpush1.xpose.msra.mxu0 0.0
    %331 = vmatprep.subr.mxu0 0.0
    %332 = vmatpush1.xpose.msra.mxu0 0.0
    %333 = vmatprep.subr.mxu0 0.0
    %334 = vmatpush1.xpose.msra.mxu0 0.0
    %335 = vmatprep.subr.mxu0 0.0
    %336 = vmatpush1.xpose.msra.mxu0 0.0
    %337 = vmatprep.subr.mxu0 0.0
    %338 = vmatpush1.xpose.msra.mxu0 0.0
    %339 = vmatprep.subr.mxu0 0.0
    %340 = vmatpush1.xpose.msra.mxu0 0.0
    %341 = vmatprep.subr.mxu0 0.0
    %342 = vmatpush1.xpose.msra.mxu0 0.0
    %343 = vmatprep.subr.mxu0 0.0
    %344 = vmatpush1.xpose.msra.mxu0 0.0
    %345 = vmatprep.subr.mxu0 0.0
    %346 = vmatpush1.xpose.msra.mxu0 %v315
    %347 = vmatprep.subr.mxu0 0.0
    %348 = vmatpush1.xpose.msra.mxu0 %v313
    %349 = vmatprep.subr.mxu0 0.0
    %350 = vmatpush2.xpose.msra.mxu0 0.0
    %351 = vmatprep.subr.mxu0 0.0
    %352 = vmatpush2.xpose.msra.mxu0 0.0
    %353 = vmatprep.subr.mxu0 0.0
    %354 = vmatpush2.xpose.msra.mxu0 0.0
    %355 = vmatprep.subr.mxu0 0.0
    %356 = vmatpush2.xpose.msra.mxu0 0.0
    %357 = vmatprep.subr.mxu0 0.0
    %358 = vmatpush2.xpose.msra.mxu0 0.0
    %359 = vmatprep.subr.mxu0 0.0
    %360 = vmatpush2.xpose.msra.mxu0 0.0
    %361 = vmatprep.subr.mxu0 0.0
    %362 = vmatpush2.xpose.msra.mxu0 0.0
    %363 = vmatprep.subr.mxu0 0.0
    %364 = vmatpush2.xpose.msra.mxu0 0.0
    %365 = vmatprep.subr.mxu0 0.0
    %366 = vmatpush2.xpose.msra.mxu0 0.0
    %367 = vmatprep.subr.mxu0 0.0
    %368 = vmatpush2.xpose.msra.mxu0 0.0
    %369 = vmatprep.subr.mxu0 0.0
    %370 = vmatpush2.xpose.msra.mxu0 0.0
    %371 = vmatprep.subr.mxu0 0.0
    %372 = vmatpush2.xpose.msra.mxu0 0.0
    %373 = vmatprep.subr.mxu0 0.0
    %374 = vmatpush2.xpose.msra.mxu0 0.0
    %375 = vmatprep.subr.mxu0 0.0
    %376 = vmatpush2.xpose.msra.mxu0 0.0
    %377 = vmatprep.subr.mxu0 0.0
    %378 = vmatpush2.xpose.msra.mxu0 0.0
    %379 = vmatprep.subr.mxu0 0.0
    %380 = vmatpush2.xpose.msra.mxu0 0.0
    %381 = vmatprep.mubr.f32.mxu0 0.0
    %382 = vmatmul.mubr.f32.gmra.mxu0 %v309
    %v383 = vpop.f32.mrf.mxu0
    %v384 = vadd.f32 0.0, %v383
    %v385 = vpop.f32.mrf.mxu0
    %386 = vmatprep.mubr.f32.mxu0 0.0
    %387 = vmatmul.mubr.f32.gmra.mxu0 %v311
    %v388 = vpop.f32.mrf.mxu0
    %v389 = vadd.f32 0.0, %v388
    %v390 = vpop.f32.mrf.mxu0
    %391 = vdwg.mxu0
    %392 = vrot.lane.b32.xlu0 %v190, 64
    %v393 = vpop.permute.xlu0 %392
    %394 = vrot.lane.b32.xlu0 %v192, 64
    %v395 = vpop.permute.xlu0 %394
    %v396 = vsel %vm221, %v190, 0
    %v398 = vsel %vm221, %v192, 0
    %v400 = vsel %vm221, %v393, 0
    %v402 = vsel %vm221, %v395, 0
    %404 = vmatprep.subr.mxu0 0.0
    %405 = vmatpush1.xpose.msra.mxu0 0.0
    %406 = vmatprep.subr.mxu0 0.0
    %407 = vmatpush1.xpose.msra.mxu0 0.0
    %408 = vmatprep.subr.mxu0 0.0
    %409 = vmatpush1.xpose.msra.mxu0 0.0
    %410 = vmatprep.subr.mxu0 0.0
    %411 = vmatpush1.xpose.msra.mxu0 0.0
    %412 = vmatprep.subr.mxu0 0.0
    %413 = vmatpush1.xpose.msra.mxu0 0.0
    %414 = vmatprep.subr.mxu0 0.0
    %415 = vmatpush1.xpose.msra.mxu0 0.0
    %416 = vmatprep.subr.mxu0 0.0
    %417 = vmatpush1.xpose.msra.mxu0 0.0
    %418 = vmatprep.subr.mxu0 0.0
    %419 = vmatpush1.xpose.msra.mxu0 0.0
    %420 = vmatprep.subr.mxu0 0.0
    %421 = vmatpush1.xpose.msra.mxu0 0.0
    %422 = vmatprep.subr.mxu0 0.0
    %423 = vmatpush1.xpose.msra.mxu0 0.0
    %424 = vmatprep.subr.mxu0 0.0
    %425 = vmatpush1.xpose.msra.mxu0 0.0
    %426 = vmatprep.subr.mxu0 0.0
    %427 = vmatpush1.xpose.msra.mxu0 0.0
    %428 = vmatprep.subr.mxu0 0.0
    %429 = vmatpush1.xpose.msra.mxu0 0.0
    %430 = vmatprep.subr.mxu0 0.0
    %431 = vmatpush1.xpose.msra.mxu0 0.0
    %432 = vmatprep.subr.mxu0 0.0
    %433 = vmatpush1.xpose.msra.mxu0 %v402
    %434 = vmatprep.subr.mxu0 0.0
    %435 = vmatpush1.xpose.msra.mxu0 %v400
    %436 = vmatprep.subr.mxu0 0.0
    %437 = vmatpush2.xpose.msra.mxu0 0.0
    %438 = vmatprep.subr.mxu0 0.0
    %439 = vmatpush2.xpose.msra.mxu0 0.0
    %440 = vmatprep.subr.mxu0 0.0
    %441 = vmatpush2.xpose.msra.mxu0 0.0
    %442 = vmatprep.subr.mxu0 0.0
    %443 = vmatpush2.xpose.msra.mxu0 0.0
    %444 = vmatprep.subr.mxu0 0.0
    %445 = vmatpush2.xpose.msra.mxu0 0.0
    %446 = vmatprep.subr.mxu0 0.0
    %447 = vmatpush2.xpose.msra.mxu0 0.0
    %448 = vmatprep.subr.mxu0 0.0
    %449 = vmatpush2.xpose.msra.mxu0 0.0
    %450 = vmatprep.subr.mxu0 0.0
    %451 = vmatpush2.xpose.msra.mxu0 0.0
    %452 = vmatprep.subr.mxu0 0.0
    %453 = vmatpush2.xpose.msra.mxu0 0.0
    %454 = vmatprep.subr.mxu0 0.0
    %455 = vmatpush2.xpose.msra.mxu0 0.0
    %456 = vmatprep.subr.mxu0 0.0
    %457 = vmatpush2.xpose.msra.mxu0 0.0
    %458 = vmatprep.subr.mxu0 0.0
    %459 = vmatpush2.xpose.msra.mxu0 0.0
    %460 = vmatprep.subr.mxu0 0.0
    %461 = vmatpush2.xpose.msra.mxu0 0.0
    %462 = vmatprep.subr.mxu0 0.0
    %463 = vmatpush2.xpose.msra.mxu0 0.0
    %464 = vmatprep.subr.mxu0 0.0
    %465 = vmatpush2.xpose.msra.mxu0 0.0
    %466 = vmatprep.subr.mxu0 0.0
    %467 = vmatpush2.xpose.msra.mxu0 0.0
    %468 = vmatprep.mubr.f32.mxu0 0.0
    %469 = vmatmul.mubr.f32.gmra.mxu0 %v396
    %v470 = vpop.f32.mrf.mxu0
    %v471 = vadd.f32 0.0, %v470
    %v472 = vpop.f32.mrf.mxu0
    %473 = vmatprep.mubr.f32.mxu0 0.0
    %474 = vmatmul.mubr.f32.gmra.mxu0 %v398
    %v475 = vpop.f32.mrf.mxu0
    %v476 = vadd.f32 0.0, %v475
    %v477 = vpop.f32.mrf.mxu0
    %478 = vdwg.mxu0
    %479 = vrot.lane.b32.xlu0 %v194, 64
    %v480 = vpop.permute.xlu0 %479
    %481 = vrot.lane.b32.xlu0 %v196, 64
    %v482 = vpop.permute.xlu0 %481
    %v483 = vsel %vm221, %v194, 0
    %v485 = vsel %vm221, %v196, 0
    %v487 = vsel %vm221, %v480, 0
    %v489 = vsel %vm221, %v482, 0
    %491 = vmatprep.subr.mxu0 0.0
    %492 = vmatpush1.xpose.msra.mxu0 0.0
    %493 = vmatprep.subr.mxu0 0.0
    %494 = vmatpush1.xpose.msra.mxu0 0.0
    %495 = vmatprep.subr.mxu0 0.0
    %496 = vmatpush1.xpose.msra.mxu0 0.0
    %497 = vmatprep.subr.mxu0 0.0
    %498 = vmatpush1.xpose.msra.mxu0 0.0
    %499 = vmatprep.subr.mxu0 0.0
    %500 = vmatpush1.xpose.msra.mxu0 0.0
    %501 = vmatprep.subr.mxu0 0.0
    %502 = vmatpush1.xpose.msra.mxu0 0.0
    %503 = vmatprep.subr.mxu0 0.0
    %504 = vmatpush1.xpose.msra.mxu0 0.0
    %505 = vmatprep.subr.mxu0 0.0
    %506 = vmatpush1.xpose.msra.mxu0 0.0
    %507 = vmatprep.subr.mxu0 0.0
    %508 = vmatpush1.xpose.msra.mxu0 0.0
    %509 = vmatprep.subr.mxu0 0.0
    %510 = vmatpush1.xpose.msra.mxu0 0.0
    %511 = vmatprep.subr.mxu0 0.0
    %512 = vmatpush1.xpose.msra.mxu0 0.0
    %513 = vmatprep.subr.mxu0 0.0
    %514 = vmatpush1.xpose.msra.mxu0 0.0
    %515 = vmatprep.subr.mxu0 0.0
    %516 = vmatpush1.xpose.msra.mxu0 0.0
    %517 = vmatprep.subr.mxu0 0.0
    %518 = vmatpush1.xpose.msra.mxu0 0.0
    %519 = vmatprep.subr.mxu0 0.0
    %520 = vmatpush1.xpose.msra.mxu0 %v489
    %521 = vmatprep.subr.mxu0 0.0
    %522 = vmatpush1.xpose.msra.mxu0 %v487
    %523 = vmatprep.subr.mxu0 0.0
    %524 = vmatpush2.xpose.msra.mxu0 0.0
    %525 = vmatprep.subr.mxu0 0.0
    %526 = vmatpush2.xpose.msra.mxu0 0.0
    %527 = vmatprep.subr.mxu0 0.0
    %528 = vmatpush2.xpose.msra.mxu0 0.0
    %529 = vmatprep.subr.mxu0 0.0
    %530 = vmatpush2.xpose.msra.mxu0 0.0
    %531 = vmatprep.subr.mxu0 0.0
    %532 = vmatpush2.xpose.msra.mxu0 0.0
    %533 = vmatprep.subr.mxu0 0.0
    %534 = vmatpush2.xpose.msra.mxu0 0.0
    %535 = vmatprep.subr.mxu0 0.0
    %536 = vmatpush2.xpose.msra.mxu0 0.0
    %537 = vmatprep.subr.mxu0 0.0
    %538 = vmatpush2.xpose.msra.mxu0 0.0
    %539 = vmatprep.subr.mxu0 0.0
    %540 = vmatpush2.xpose.msra.mxu0 0.0
    %541 = vmatprep.subr.mxu0 0.0
    %542 = vmatpush2.xpose.msra.mxu0 0.0
    %543 = vmatprep.subr.mxu0 0.0
    %544 = vmatpush2.xpose.msra.mxu0 0.0
    %545 = vmatprep.subr.mxu0 0.0
    %546 = vmatpush2.xpose.msra.mxu0 0.0
    %547 = vmatprep.subr.mxu0 0.0
    %548 = vmatpush2.xpose.msra.mxu0 0.0
    %549 = vmatprep.subr.mxu0 0.0
    %550 = vmatpush2.xpose.msra.mxu0 0.0
    %551 = vmatprep.subr.mxu0 0.0
    %552 = vmatpush2.xpose.msra.mxu0 0.0
    %553 = vmatprep.subr.mxu0 0.0
    %554 = vmatpush2.xpose.msra.mxu0 0.0
    %555 = vmatprep.mubr.f32.mxu0 0.0
    %556 = vmatmul.mubr.f32.gmra.mxu0 %v483
    %v557 = vpop.f32.mrf.mxu0
    %v558 = vadd.f32 0.0, %v557
    %v559 = vpop.f32.mrf.mxu0
    %560 = vmatprep.mubr.f32.mxu0 0.0
    %561 = vmatmul.mubr.f32.gmra.mxu0 %v485
    %v562 = vpop.f32.mrf.mxu0
    %v563 = vadd.f32 0.0, %v562
    %v564 = vpop.f32.mrf.mxu0
    %565 = vdwg.mxu0
    %v566 = vmul.f32 %v297, 0.125
    %v567 = vmul.f32 %v302, 0.125
    %v568 = vmul.f32 %v384, 0.125
    %v569 = vmul.f32 %v389, 0.125
    %v570 = vmul.f32 %v471, 0.125
    %v571 = vmul.f32 %v476, 0.125
    %v572 = vmul.f32 %v558, 0.125
    %v573 = vmul.f32 %v563, 0.125
    %v574 = vadd.f32 %v566, %v41
    %v575 = vadd.f32 %v567, %v42
    %v576 = vadd.f32 %v568, %v41
    %v577 = vadd.f32 %v569, %v42
    %v578 = vadd.f32 %v570, %v41
    %v579 = vadd.f32 %v571, %v42
    %v580 = vadd.f32 %v572, %v41
    %v581 = vadd.f32 %v573, %v42
    %v582 = vsel %vm221, %v574, -inf
    %583 = vmax.xlane.f32.xlu0 %v582
    %v584 = vpop.xlane.xlu0 %583
    %v585 = vsel %vm221, %v575, -inf
    %586 = vmax.xlane.f32.xlu0 %v585
    %v587 = vpop.xlane.xlu0 %586
    %v588 = vsel %vm221, %v576, -inf
    %589 = vmax.xlane.f32.xlu0 %v588
    %v590 = vpop.xlane.xlu0 %589
    %v591 = vsel %vm221, %v577, -inf
    %592 = vmax.xlane.f32.xlu0 %v591
    %v593 = vpop.xlane.xlu0 %592
    %v594 = vsel %vm221, %v578, -inf
    %595 = vmax.xlane.f32.xlu0 %v594
    %v596 = vpop.xlane.xlu0 %595
    %v597 = vsel %vm221, %v579, -inf
    %598 = vmax.xlane.f32.xlu0 %v597
    %v599 = vpop.xlane.xlu0 %598
    %v600 = vsel %vm221, %v580, -inf
    %601 = vmax.xlane.f32.xlu0 %v600
    %v602 = vpop.xlane.xlu0 %601
    %v603 = vsel %vm221, %v581, -inf
    %604 = vmax.xlane.f32.xlu0 %v603
    %v605 = vpop.xlane.xlu0 %604
    %v606 = vsub.f32 %v574, %v584
    %v607 = vsub.f32 %v575, %v587
    %v608 = vsub.f32 %v576, %v590
    %v609 = vsub.f32 %v577, %v593
    %v610 = vsub.f32 %v578, %v596
    %v611 = vsub.f32 %v579, %v599
    %v612 = vsub.f32 %v580, %v602
    %v613 = vsub.f32 %v581, %v605
    %v614 = vmul.f32 %v606, 1.442695
    %v615 = vpow.pop %v614
    %v616 = vmul.f32 %v607, 1.442695
    %v617 = vpow.pop %v616
    %v618 = vmul.f32 %v608, 1.442695
    %v619 = vpow.pop %v618
    %v620 = vmul.f32 %v609, 1.442695
    %v621 = vpow.pop %v620
    %v622 = vmul.f32 %v610, 1.442695
    %v623 = vpow.pop %v622
    %v624 = vmul.f32 %v611, 1.442695
    %v625 = vpow.pop %v624
    %v626 = vmul.f32 %v612, 1.442695
    %v627 = vpow.pop %v626
    %v628 = vmul.f32 %v613, 1.442695
    %v629 = vpow.pop %v628
    %v630 = vsel %vm221, %v615, 0.0
    %631 = vadd.xlane.f32.xlu0 %v630
    %v632 = vpop.xlane.xlu0 %631
    %v633 = vsel %vm221, %v617, 0.0
    %634 = vadd.xlane.f32.xlu0 %v633
    %v635 = vpop.xlane.xlu0 %634
    %v636 = vsel %vm221, %v619, 0.0
    %637 = vadd.xlane.f32.xlu0 %v636
    %v638 = vpop.xlane.xlu0 %637
    %v639 = vsel %vm221, %v621, 0.0
    %640 = vadd.xlane.f32.xlu0 %v639
    %v641 = vpop.xlane.xlu0 %640
    %v642 = vsel %vm221, %v623, 0.0
    %643 = vadd.xlane.f32.xlu0 %v642
    %v644 = vpop.xlane.xlu0 %643
    %v645 = vsel %vm221, %v625, 0.0
    %646 = vadd.xlane.f32.xlu0 %v645
    %v647 = vpop.xlane.xlu0 %646
    %v648 = vsel %vm221, %v627, 0.0
    %649 = vadd.xlane.f32.xlu0 %v648
    %v650 = vpop.xlane.xlu0 %649
    %v651 = vsel %vm221, %v629, 0.0
    %652 = vadd.xlane.f32.xlu0 %v651
    %v653 = vpop.xlane.xlu0 %652
    %v654 = vrcp.pop %v632
    %v655 = vrcp.pop %v635
    %v656 = vrcp.pop %v638
    %v657 = vrcp.pop %v641
    %v658 = vrcp.pop %v644
    %v659 = vrcp.pop %v647
    %v660 = vrcp.pop %v650
    %v661 = vrcp.pop %v653
    %v662 = vmul.f32 %v615, %v654
    %v663 = vmul.f32 %v617, %v655
    %v664 = vmul.f32 %v619, %v656
    %v665 = vmul.f32 %v621, %v657
    %v666 = vmul.f32 %v623, %v658
    %v667 = vmul.f32 %v625, %v659
    %v668 = vmul.f32 %v627, %v660
    %v669 = vmul.f32 %v629, %v661
    %v671 = vsel %vm221, %v662, 0
    %v674 = vsel %vm221, %v663, 0
    %676 = vmatprep.subr.mxu0 0.0
    %677 = vmatpush1.msra.mxu0 0.0
    %678 = vmatprep.subr.mxu0 0.0
    %679 = vmatpush1.msra.mxu0 0.0
    %680 = vmatprep.subr.mxu0 0.0
    %681 = vmatpush1.msra.mxu0 0.0
    %682 = vmatprep.subr.mxu0 0.0
    %683 = vmatpush1.msra.mxu0 0.0
    %684 = vmatprep.subr.mxu0 0.0
    %685 = vmatpush1.msra.mxu0 0.0
    %686 = vmatprep.subr.mxu0 0.0
    %687 = vmatpush1.msra.mxu0 0.0
    %688 = vmatprep.subr.mxu0 0.0
    %689 = vmatpush1.msra.mxu0 0.0
    %690 = vmatprep.subr.mxu0 0.0
    %691 = vmatpush1.msra.mxu0 0.0
    %692 = vmatprep.subr.mxu0 0.0
    %693 = vmatpush1.msra.mxu0 0.0
    %694 = vmatprep.subr.mxu0 0.0
    %695 = vmatpush1.msra.mxu0 0.0
    %696 = vmatprep.subr.mxu0 0.0
    %697 = vmatpush1.msra.mxu0 0.0
    %698 = vmatprep.subr.mxu0 0.0
    %699 = vmatpush1.msra.mxu0 0.0
    %700 = vmatprep.subr.mxu0 0.0
    %701 = vmatpush1.msra.mxu0 0.0
    %702 = vmatprep.subr.mxu0 0.0
    %703 = vmatpush1.msra.mxu0 0.0
    %704 = vmatprep.subr.mxu0 0.0
    %705 = vmatpush1.msra.mxu0 %v181
    %706 = vmatprep.subr.mxu0 0.0
    %707 = vmatpush1.msra.mxu0 %v175
    %708 = vmatprep.subr.mxu0 0.0
    %709 = vmatpush2.msra.mxu0 0.0
    %710 = vmatprep.subr.mxu0 0.0
    %711 = vmatpush2.msra.mxu0 0.0
    %712 = vmatprep.subr.mxu0 0.0
    %713 = vmatpush2.msra.mxu0 0.0
    %714 = vmatprep.subr.mxu0 0.0
    %715 = vmatpush2.msra.mxu0 0.0
    %716 = vmatprep.subr.mxu0 0.0
    %717 = vmatpush2.msra.mxu0 0.0
    %718 = vmatprep.subr.mxu0 0.0
    %719 = vmatpush2.msra.mxu0 0.0
    %720 = vmatprep.subr.mxu0 0.0
    %721 = vmatpush2.msra.mxu0 0.0
    %722 = vmatprep.subr.mxu0 0.0
    %723 = vmatpush2.msra.mxu0 0.0
    %724 = vmatprep.subr.mxu0 0.0
    %725 = vmatpush2.msra.mxu0 0.0
    %726 = vmatprep.subr.mxu0 0.0
    %727 = vmatpush2.msra.mxu0 0.0
    %728 = vmatprep.subr.mxu0 0.0
    %729 = vmatpush2.msra.mxu0 0.0
    %730 = vmatprep.subr.mxu0 0.0
    %731 = vmatpush2.msra.mxu0 0.0
    %732 = vmatprep.subr.mxu0 0.0
    %733 = vmatpush2.msra.mxu0 0.0
    %734 = vmatprep.subr.mxu0 0.0
    %735 = vmatpush2.msra.mxu0 0.0
    %736 = vmatprep.subr.mxu0 0.0
    %737 = vmatpush2.msra.mxu0 0.0
    %738 = vmatprep.subr.mxu0 0.0
    %739 = vmatpush2.msra.mxu0 0.0
    %740 = vmatprep.mubr.f32.mxu0 0.0
    %741 = vmatmul.mubr.f32.gmra.mxu0 %v671
    %v742 = vpop.f32.mrf.mxu0
    %v743 = vadd.f32 0.0, %v742
    %v744 = vpop.f32.mrf.mxu0
    %745 = vmatprep.mubr.f32.mxu0 0.0
    %746 = vmatmul.mubr.f32.gmra.mxu0 %v674
    %v747 = vpop.f32.mrf.mxu0
    %v748 = vadd.f32 0.0, %v747
    %v749 = vpop.f32.mrf.mxu0
    %750 = vdwg.mxu0
    %v752 = vsel %vm221, %v664, 0
    %v755 = vsel %vm221, %v665, 0
    %757 = vmatprep.subr.mxu0 0.0
    %758 = vmatpush1.msra.mxu0 0.0
    %759 = vmatprep.subr.mxu0 0.0
    %760 = vmatpush1.msra.mxu0 0.0
    %761 = vmatprep.subr.mxu0 0.0
    %762 = vmatpush1.msra.mxu0 0.0
    %763 = vmatprep.subr.mxu0 0.0
    %764 = vmatpush1.msra.mxu0 0.0
    %765 = vmatprep.subr.mxu0 0.0
    %766 = vmatpush1.msra.mxu0 0.0
    %767 = vmatprep.subr.mxu0 0.0
    %768 = vmatpush1.msra.mxu0 0.0
    %769 = vmatprep.subr.mxu0 0.0
    %770 = vmatpush1.msra.mxu0 0.0
    %771 = vmatprep.subr.mxu0 0.0
    %772 = vmatpush1.msra.mxu0 0.0
    %773 = vmatprep.subr.mxu0 0.0
    %774 = vmatpush1.msra.mxu0 0.0
    %775 = vmatprep.subr.mxu0 0.0
    %776 = vmatpush1.msra.mxu0 0.0
    %777 = vmatprep.subr.mxu0 0.0
    %778 = vmatpush1.msra.mxu0 0.0
    %779 = vmatprep.subr.mxu0 0.0
    %780 = vmatpush1.msra.mxu0 0.0
    %781 = vmatprep.subr.mxu0 0.0
    %782 = vmatpush1.msra.mxu0 0.0
    %783 = vmatprep.subr.mxu0 0.0
    %784 = vmatpush1.msra.mxu0 0.0
    %785 = vmatprep.subr.mxu0 0.0
    %786 = vmatpush1.msra.mxu0 %v202
    %787 = vmatprep.subr.mxu0 0.0
    %788 = vmatpush1.msra.mxu0 %v200
    %789 = vmatprep.subr.mxu0 0.0
    %790 = vmatpush2.msra.mxu0 0.0
    %791 = vmatprep.subr.mxu0 0.0
    %792 = vmatpush2.msra.mxu0 0.0
    %793 = vmatprep.subr.mxu0 0.0
    %794 = vmatpush2.msra.mxu0 0.0
    %795 = vmatprep.subr.mxu0 0.0
    %796 = vmatpush2.msra.mxu0 0.0
    %797 = vmatprep.subr.mxu0 0.0
    %798 = vmatpush2.msra.mxu0 0.0
    %799 = vmatprep.subr.mxu0 0.0
    %800 = vmatpush2.msra.mxu0 0.0
    %801 = vmatprep.subr.mxu0 0.0
    %802 = vmatpush2.msra.mxu0 0.0
    %803 = vmatprep.subr.mxu0 0.0
    %804 = vmatpush2.msra.mxu0 0.0
    %805 = vmatprep.subr.mxu0 0.0
    %806 = vmatpush2.msra.mxu0 0.0
    %807 = vmatprep.subr.mxu0 0.0
    %808 = vmatpush2.msra.mxu0 0.0
    %809 = vmatprep.subr.mxu0 0.0
    %810 = vmatpush2.msra.mxu0 0.0
    %811 = vmatprep.subr.mxu0 0.0
    %812 = vmatpush2.msra.mxu0 0.0
    %813 = vmatprep.subr.mxu0 0.0
    %814 = vmatpush2.msra.mxu0 0.0
    %815 = vmatprep.subr.mxu0 0.0
    %816 = vmatpush2.msra.mxu0 0.0
    %817 = vmatprep.subr.mxu0 0.0
    %818 = vmatpush2.msra.mxu0 0.0
    %819 = vmatprep.subr.mxu0 0.0
    %820 = vmatpush2.msra.mxu0 0.0
    %821 = vmatprep.mubr.f32.mxu0 0.0
    %822 = vmatmul.mubr.f32.gmra.mxu0 %v752
    %v823 = vpop.f32.mrf.mxu0
    %v824 = vadd.f32 0.0, %v823
    %v825 = vpop.f32.mrf.mxu0
    %826 = vmatprep.mubr.f32.mxu0 0.0
    %827 = vmatmul.mubr.f32.gmra.mxu0 %v755
    %v828 = vpop.f32.mrf.mxu0
    %v829 = vadd.f32 0.0, %v828
    %v830 = vpop.f32.mrf.mxu0
    %831 = vdwg.mxu0
    %v833 = vsel %vm221, %v666, 0
    %v836 = vsel %vm221, %v667, 0
    %838 = vmatprep.subr.mxu0 0.0
    %839 = vmatpush1.msra.mxu0 0.0
    %840 = vmatprep.subr.mxu0 0.0
    %841 = vmatpush1.msra.mxu0 0.0
    %842 = vmatprep.subr.mxu0 0.0
    %843 = vmatpush1.msra.mxu0 0.0
    %844 = vmatprep.subr.mxu0 0.0
    %845 = vmatpush1.msra.mxu0 0.0
    %846 = vmatprep.subr.mxu0 0.0
    %847 = vmatpush1.msra.mxu0 0.0
    %848 = vmatprep.subr.mxu0 0.0
    %849 = vmatpush1.msra.mxu0 0.0
    %850 = vmatprep.subr.mxu0 0.0
    %851 = vmatpush1.msra.mxu0 0.0
    %852 = vmatprep.subr.mxu0 0.0
    %853 = vmatpush1.msra.mxu0 0.0
    %854 = vmatprep.subr.mxu0 0.0
    %855 = vmatpush1.msra.mxu0 0.0
    %856 = vmatprep.subr.mxu0 0.0
    %857 = vmatpush1.msra.mxu0 0.0
    %858 = vmatprep.subr.mxu0 0.0
    %859 = vmatpush1.msra.mxu0 0.0
    %860 = vmatprep.subr.mxu0 0.0
    %861 = vmatpush1.msra.mxu0 0.0
    %862 = vmatprep.subr.mxu0 0.0
    %863 = vmatpush1.msra.mxu0 0.0
    %864 = vmatprep.subr.mxu0 0.0
    %865 = vmatpush1.msra.mxu0 0.0
    %866 = vmatprep.subr.mxu0 0.0
    %867 = vmatpush1.msra.mxu0 %v208
    %868 = vmatprep.subr.mxu0 0.0
    %869 = vmatpush1.msra.mxu0 %v206
    %870 = vmatprep.subr.mxu0 0.0
    %871 = vmatpush2.msra.mxu0 0.0
    %872 = vmatprep.subr.mxu0 0.0
    %873 = vmatpush2.msra.mxu0 0.0
    %874 = vmatprep.subr.mxu0 0.0
    %875 = vmatpush2.msra.mxu0 0.0
    %876 = vmatprep.subr.mxu0 0.0
    %877 = vmatpush2.msra.mxu0 0.0
    %878 = vmatprep.subr.mxu0 0.0
    %879 = vmatpush2.msra.mxu0 0.0
    %880 = vmatprep.subr.mxu0 0.0
    %881 = vmatpush2.msra.mxu0 0.0
    %882 = vmatprep.subr.mxu0 0.0
    %883 = vmatpush2.msra.mxu0 0.0
    %884 = vmatprep.subr.mxu0 0.0
    %885 = vmatpush2.msra.mxu0 0.0
    %886 = vmatprep.subr.mxu0 0.0
    %887 = vmatpush2.msra.mxu0 0.0
    %888 = vmatprep.subr.mxu0 0.0
    %889 = vmatpush2.msra.mxu0 0.0
    %890 = vmatprep.subr.mxu0 0.0
    %891 = vmatpush2.msra.mxu0 0.0
    %892 = vmatprep.subr.mxu0 0.0
    %893 = vmatpush2.msra.mxu0 0.0
    %894 = vmatprep.subr.mxu0 0.0
    %895 = vmatpush2.msra.mxu0 0.0
    %896 = vmatprep.subr.mxu0 0.0
    %897 = vmatpush2.msra.mxu0 0.0
    %898 = vmatprep.subr.mxu0 0.0
    %899 = vmatpush2.msra.mxu0 0.0
    %900 = vmatprep.subr.mxu0 0.0
    %901 = vmatpush2.msra.mxu0 0.0
    %902 = vmatprep.mubr.f32.mxu0 0.0
    %903 = vmatmul.mubr.f32.gmra.mxu0 %v833
    %v904 = vpop.f32.mrf.mxu0
    %v905 = vadd.f32 0.0, %v904
    %v906 = vpop.f32.mrf.mxu0
    %907 = vmatprep.mubr.f32.mxu0 0.0
    %908 = vmatmul.mubr.f32.gmra.mxu0 %v836
    %v909 = vpop.f32.mrf.mxu0
    %v910 = vadd.f32 0.0, %v909
    %v911 = vpop.f32.mrf.mxu0
    %912 = vdwg.mxu0
    %v914 = vsel %vm221, %v668, 0
    %v917 = vsel %vm221, %v669, 0
    %919 = vmatprep.subr.mxu0 0.0
    %920 = vmatpush1.msra.mxu0 0.0
    %921 = vmatprep.subr.mxu0 0.0
    %922 = vmatpush1.msra.mxu0 0.0
    %923 = vmatprep.subr.mxu0 0.0
    %924 = vmatpush1.msra.mxu0 0.0
    %925 = vmatprep.subr.mxu0 0.0
    %926 = vmatpush1.msra.mxu0 0.0
    %927 = vmatprep.subr.mxu0 0.0
    %928 = vmatpush1.msra.mxu0 0.0
    %929 = vmatprep.subr.mxu0 0.0
    %930 = vmatpush1.msra.mxu0 0.0
    %931 = vmatprep.subr.mxu0 0.0
    %932 = vmatpush1.msra.mxu0 0.0
    %933 = vmatprep.subr.mxu0 0.0
    %934 = vmatpush1.msra.mxu0 0.0
    %935 = vmatprep.subr.mxu0 0.0
    %936 = vmatpush1.msra.mxu0 0.0
    %937 = vmatprep.subr.mxu0 0.0
    %938 = vmatpush1.msra.mxu0 0.0
    %939 = vmatprep.subr.mxu0 0.0
    %940 = vmatpush1.msra.mxu0 0.0
    %941 = vmatprep.subr.mxu0 0.0
    %942 = vmatpush1.msra.mxu0 0.0
    %943 = vmatprep.subr.mxu0 0.0
    %944 = vmatpush1.msra.mxu0 0.0
    %945 = vmatprep.subr.mxu0 0.0
    %946 = vmatpush1.msra.mxu0 0.0
    %947 = vmatprep.subr.mxu0 0.0
    %948 = vmatpush1.msra.mxu0 %v214
    %949 = vmatprep.subr.mxu0 0.0
    %950 = vmatpush1.msra.mxu0 %v212
    %951 = vmatprep.subr.mxu0 0.0
    %952 = vmatpush2.msra.mxu0 0.0
    %953 = vmatprep.subr.mxu0 0.0
    %954 = vmatpush2.msra.mxu0 0.0
    %955 = vmatprep.subr.mxu0 0.0
    %956 = vmatpush2.msra.mxu0 0.0
    %957 = vmatprep.subr.mxu0 0.0
    %958 = vmatpush2.msra.mxu0 0.0
    %959 = vmatprep.subr.mxu0 0.0
    %960 = vmatpush2.msra.mxu0 0.0
    %961 = vmatprep.subr.mxu0 0.0
    %962 = vmatpush2.msra.mxu0 0.0
    %963 = vmatprep.subr.mxu0 0.0
    %964 = vmatpush2.msra.mxu0 0.0
    %965 = vmatprep.subr.mxu0 0.0
    %966 = vmatpush2.msra.mxu0 0.0
    %967 = vmatprep.subr.mxu0 0.0
    %968 = vmatpush2.msra.mxu0 0.0
    %969 = vmatprep.subr.mxu0 0.0
    %970 = vmatpush2.msra.mxu0 0.0
    %971 = vmatprep.subr.mxu0 0.0
    %972 = vmatpush2.msra.mxu0 0.0
    %973 = vmatprep.subr.mxu0 0.0
    %974 = vmatpush2.msra.mxu0 0.0
    %975 = vmatprep.subr.mxu0 0.0
    %976 = vmatpush2.msra.mxu0 0.0
    %977 = vmatprep.subr.mxu0 0.0
    %978 = vmatpush2.msra.mxu0 0.0
    %979 = vmatprep.subr.mxu0 0.0
    %980 = vmatpush2.msra.mxu0 0.0
    %981 = vmatprep.subr.mxu0 0.0
    %982 = vmatpush2.msra.mxu0 0.0
    %983 = vmatprep.mubr.f32.mxu0 0.0
    %984 = vmatmul.mubr.f32.gmra.mxu0 %v914
    %v985 = vpop.f32.mrf.mxu0
    %v986 = vadd.f32 0.0, %v985
    %v987 = vpop.f32.mrf.mxu0
    %988 = vmatprep.mubr.f32.mxu0 0.0
    %989 = vmatmul.mubr.f32.gmra.mxu0 %v917
    %v990 = vpop.f32.mrf.mxu0
    %v991 = vadd.f32 0.0, %v990
    %v992 = vpop.f32.mrf.mxu0
    %993 = vdwg.mxu0
    %996 = vrot.lane.b32.xlu0 %v824, 16
    %v997 = vpop.permute.xlu0 %996
    %998 = vrot.lane.b32.xlu0 %v829, 16
    %v999 = vpop.permute.xlu0 %998
    %1004 = vrot.lane.b32.xlu0 %v905, 32
    %v1005 = vpop.permute.xlu0 %1004
    %1006 = vrot.lane.b32.xlu0 %v910, 32
    %v1007 = vpop.permute.xlu0 %1006
    %1012 = vrot.lane.b32.xlu0 %v986, 48
    %v1013 = vpop.permute.xlu0 %1012
    %1014 = vrot.lane.b32.xlu0 %v991, 48
    %v1015 = vpop.permute.xlu0 %1014
    %v1018 = vsel %vm221, %v743, %v997
    %v1019 = vsel %vm221, %v748, %v999
    %vm1020 = vcmask 261120
    %v1021 = vsel %vm1020, %v1018, %v1005
    %v1022 = vsel %vm1020, %v1019, %v1007
    %vm1023 = vcmask 392192
    %v1024 = vsel %vm1023, %v1021, %v1013
    %v1025 = vsel %vm1023, %v1022, %v1015
    %v1026 = vld [vmem:[%s3] sm:$0xff]
    %v1027 = vld [vmem:[%s3 + $0x8] sm:$0xff]
    %v1028 = vld [vmem:[%s3 + $0x10] sm:$0xff]
    %v1029 = vld [vmem:[%s3 + $0x18] sm:$0xff]
    %v1030 = vld [vmem:[%s3 + $0x20] sm:$0xff]
    %v1031 = vld [vmem:[%s3 + $0x28] sm:$0xff]
    %v1032 = vld [vmem:[%s3 + $0x30] sm:$0xff]
    %v1033 = vld [vmem:[%s3 + $0x38] sm:$0xff]
    %v1034 = vlaneseq
    %v1035 = vshrl.u32 %v1034, 7
    %v1036 = vsub.s32 2, %v1035
    %v1037 = vrot.slane %v43, %v1036
    %v1039 = vsel %vm44, %v1024, 0
    %v1042 = vsel %vm44, %v1025, 0
    %1044 = vmatprep.subr.mxu0 0.0
    %1045 = vmatpush1.msra.mxu0 0.0
    %1046 = vmatprep.subr.mxu0 0.0
    %1047 = vmatpush1.msra.mxu0 0.0
    %1048 = vmatprep.subr.mxu0 0.0
    %1049 = vmatpush1.msra.mxu0 0.0
    %1050 = vmatprep.subr.mxu0 0.0
    %1051 = vmatpush1.msra.mxu0 0.0
    %1052 = vmatprep.subr.mxu0 0.0
    %1053 = vmatpush1.msra.mxu0 0.0
    %1054 = vmatprep.subr.mxu0 0.0
    %1055 = vmatpush1.msra.mxu0 0.0
    %1056 = vmatprep.subr.mxu0 0.0
    %1057 = vmatpush1.msra.mxu0 0.0
    %1058 = vmatprep.subr.mxu0 0.0
    %1059 = vmatpush1.msra.mxu0 0.0
    %1060 = vmatprep.subr.mxu0 0.0
    %1061 = vmatpush1.msra.mxu0 %v1033
    %1062 = vmatprep.subr.mxu0 0.0
    %1063 = vmatpush1.msra.mxu0 %v1032
    %1064 = vmatprep.subr.mxu0 0.0
    %1065 = vmatpush1.msra.mxu0 %v1031
    %1066 = vmatprep.subr.mxu0 0.0
    %1067 = vmatpush1.msra.mxu0 %v1030
    %1068 = vmatprep.subr.mxu0 0.0
    %1069 = vmatpush1.msra.mxu0 %v1029
    %1070 = vmatprep.subr.mxu0 0.0
    %1071 = vmatpush1.msra.mxu0 %v1028
    %1072 = vmatprep.subr.mxu0 0.0
    %1073 = vmatpush1.msra.mxu0 %v1027
    %1074 = vmatprep.subr.mxu0 0.0
    %1075 = vmatpush1.msra.mxu0 %v1026
    %1076 = vmatprep.subr.mxu0 0.0
    %1077 = vmatpush2.msra.mxu0 0.0
    %1078 = vmatprep.subr.mxu0 0.0
    %1079 = vmatpush2.msra.mxu0 0.0
    %1080 = vmatprep.subr.mxu0 0.0
    %1081 = vmatpush2.msra.mxu0 0.0
    %1082 = vmatprep.subr.mxu0 0.0
    %1083 = vmatpush2.msra.mxu0 0.0
    %1084 = vmatprep.subr.mxu0 0.0
    %1085 = vmatpush2.msra.mxu0 0.0
    %1086 = vmatprep.subr.mxu0 0.0
    %1087 = vmatpush2.msra.mxu0 0.0
    %1088 = vmatprep.subr.mxu0 0.0
    %1089 = vmatpush2.msra.mxu0 0.0
    %1090 = vmatprep.subr.mxu0 0.0
    %1091 = vmatpush2.msra.mxu0 0.0
    %1092 = vmatprep.subr.mxu0 0.0
    %1093 = vmatpush2.msra.mxu0 0.0
    %1094 = vmatprep.subr.mxu0 0.0
    %1095 = vmatpush2.msra.mxu0 0.0
    %1096 = vmatprep.subr.mxu0 0.0
    %1097 = vmatpush2.msra.mxu0 0.0
    %1098 = vmatprep.subr.mxu0 0.0
    %1099 = vmatpush2.msra.mxu0 0.0
    %1100 = vmatprep.subr.mxu0 0.0
    %1101 = vmatpush2.msra.mxu0 0.0
    %1102 = vmatprep.subr.mxu0 0.0
    %1103 = vmatpush2.msra.mxu0 0.0
    %1104 = vmatprep.subr.mxu0 0.0
    %1105 = vmatpush2.msra.mxu0 0.0
    %1106 = vmatprep.subr.mxu0 0.0
    %1107 = vmatpush2.msra.mxu0 0.0
    %1108 = vmatprep.mubr.f32.mxu0 0.0
    %1109 = vmatmul.mubr.f32.gmra.mxu0 %v1039
    %v1110 = vpop.f32.mrf.mxu0
    %v1111 = vadd.f32 %v1037, %v1110
    %v1112 = vpop.f32.mrf.mxu0
    %1113 = vmatprep.mubr.f32.mxu0 0.0
    %1114 = vmatmul.mubr.f32.gmra.mxu0 %v1042
    %v1115 = vpop.f32.mrf.mxu0
    %v1116 = vadd.f32 %v1037, %v1115
    %v1117 = vpop.f32.mrf.mxu0
    %1118 = vdwg.mxu0
    %v1119 = vadd.f32 %v39, %v1111
    %v1120 = vadd.f32 %v40, %v1116
    %v1121 = vsel %vm44, %v1119, 0.0
    %1122 = vadd.xlane.f32.xlu0 %v1121
    %v1123 = vpop.xlane.xlu0 %1122
    %v1124 = vsel %vm44, %v1120, 0.0
    %1125 = vadd.xlane.f32.xlu0 %v1124
    %v1126 = vpop.xlane.xlu0 %1125
    %v1127 = vmul.f32 %v1123, %v51
    %v1128 = vmul.f32 %v1126, %v51
    %v1129 = vsub.f32 %v1119, %v1127
    %v1130 = vsub.f32 %v1120, %v1128
    %v1131 = vmul.f32 %v1129, %v1129
    %v1132 = vmul.f32 %v1130, %v1130
    %v1133 = vsel %vm44, %v1131, 0.0
    %1134 = vadd.xlane.f32.xlu0 %v1133
    %v1135 = vpop.xlane.xlu0 %1134
    %v1136 = vsel %vm44, %v1132, 0.0
    %1137 = vadd.xlane.f32.xlu0 %v1136
    %v1138 = vpop.xlane.xlu0 %1137
    %v1139 = vmul.f32 %v1135, %v51
    %v1140 = vmul.f32 %v1138, %v51
    %v1141 = vadd.f32 %v1139, 1e-05
    %v1142 = vadd.f32 %v1140, 1e-05
    %v1143 = vrsqrt.pop %v1141
    %v1144 = vrsqrt.pop %v1142
    %v1145 = vmul.f32 %v1129, %v1143
    %v1146 = vmul.f32 %v1130, %v1144
    %v1147 = vlaneseq
    %v1148 = vshrl.u32 %v1147, 7
    %v1149 = vsub.s32 3, %v1148
    %v1150 = vrot.slane %v43, %v1149
    %v1151 = vmul.f32 %v1145, %v1150
    %v1152 = vmul.f32 %v1146, %v1150
    %v1153 = vlaneseq
    %v1154 = vshrl.u32 %v1153, 7
    %v1155 = vsub.s32 4, %v1154
    %v1156 = vrot.slane %v43, %v1155
    %v1157 = vadd.f32 %v1151, %v1156
    %v1158 = vadd.f32 %v1152, %v1156
    %v1159 = vld [vmem:[%s4] sm:$0xff]
    %v1160 = vld [vmem:[%s4 + $0x8] sm:$0xff]
    %v1161 = vld [vmem:[%s4 + $0x10] sm:$0xff]
    %v1162 = vld [vmem:[%s4 + $0x18] sm:$0xff]
    %v1163 = vld [vmem:[%s4 + $0x20] sm:$0xff]
    %v1164 = vld [vmem:[%s4 + $0x28] sm:$0xff]
    %v1165 = vld [vmem:[%s4 + $0x30] sm:$0xff]
    %v1166 = vld [vmem:[%s4 + $0x38] sm:$0xff]
    %v1167 = vld [vmem:[%s4 + $0x40] sm:$0xff]
    %v1168 = vld [vmem:[%s4 + $0x48] sm:$0xff]
    %v1169 = vld [vmem:[%s4 + $0x50] sm:$0xff]
    %v1170 = vld [vmem:[%s4 + $0x58] sm:$0xff]
    %v1171 = vld [vmem:[%s4 + $0x60] sm:$0xff]
    %v1172 = vld [vmem:[%s4 + $0x68] sm:$0xff]
    %v1173 = vld [vmem:[%s4 + $0x70] sm:$0xff]
    %v1174 = vld [vmem:[%s4 + $0x78] sm:$0xff]
    %v1175 = vld [vmem:[%s7] ss:$2 sm:$0x3]
    %v1177 = vlaneseq
    %v1178 = vshrl.u32 %v1177, 7
    %v1179 = vsub.s32 0, %v1178
    %v1180 = vrot.slane %v1175, %v1179
    %v1181 = vlaneseq
    %v1182 = vshrl.u32 %v1181, 7
    %v1183 = vsub.s32 1, %v1182
    %v1184 = vrot.slane %v1175, %v1183
    %v1188 = vsel %vm44, %v1157, 0
    %v1191 = vsel %vm44, %v1158, 0
    %1193 = vmatprep.subr.mxu0 0.0
    %1194 = vmatpush1.msra.mxu0 0.0
    %1195 = vmatprep.subr.mxu0 0.0
    %1196 = vmatpush1.msra.mxu0 0.0
    %1197 = vmatprep.subr.mxu0 0.0
    %1198 = vmatpush1.msra.mxu0 0.0
    %1199 = vmatprep.subr.mxu0 0.0
    %1200 = vmatpush1.msra.mxu0 0.0
    %1201 = vmatprep.subr.mxu0 0.0
    %1202 = vmatpush1.msra.mxu0 0.0
    %1203 = vmatprep.subr.mxu0 0.0
    %1204 = vmatpush1.msra.mxu0 0.0
    %1205 = vmatprep.subr.mxu0 0.0
    %1206 = vmatpush1.msra.mxu0 0.0
    %1207 = vmatprep.subr.mxu0 0.0
    %1208 = vmatpush1.msra.mxu0 0.0
    %1209 = vmatprep.subr.mxu0 %v1174
    %1210 = vmatpush1.msra.mxu0 %v1173
    %1211 = vmatprep.subr.mxu0 %v1172
    %1212 = vmatpush1.msra.mxu0 %v1171
    %1213 = vmatprep.subr.mxu0 %v1170
    %1214 = vmatpush1.msra.mxu0 %v1169
    %1215 = vmatprep.subr.mxu0 %v1168
    %1216 = vmatpush1.msra.mxu0 %v1167
    %1217 = vmatprep.subr.mxu0 %v1166
    %1218 = vmatpush1.msra.mxu0 %v1165
    %1219 = vmatprep.subr.mxu0 %v1164
    %1220 = vmatpush1.msra.mxu0 %v1163
    %1221 = vmatprep.subr.mxu0 %v1162
    %1222 = vmatpush1.msra.mxu0 %v1161
    %1223 = vmatprep.subr.mxu0 %v1160
    %1224 = vmatpush1.msra.mxu0 %v1159
    %1225 = vmatprep.subr.mxu0 0.0
    %1226 = vmatpush2.msra.mxu0 0.0
    %1227 = vmatprep.subr.mxu0 0.0
    %1228 = vmatpush2.msra.mxu0 0.0
    %1229 = vmatprep.subr.mxu0 0.0
    %1230 = vmatpush2.msra.mxu0 0.0
    %1231 = vmatprep.subr.mxu0 0.0
    %1232 = vmatpush2.msra.mxu0 0.0
    %1233 = vmatprep.subr.mxu0 0.0
    %1234 = vmatpush2.msra.mxu0 0.0
    %1235 = vmatprep.subr.mxu0 0.0
    %1236 = vmatpush2.msra.mxu0 0.0
    %1237 = vmatprep.subr.mxu0 0.0
    %1238 = vmatpush2.msra.mxu0 0.0
    %1239 = vmatprep.subr.mxu0 0.0
    %1240 = vmatpush2.msra.mxu0 0.0
    %1241 = vmatprep.subr.mxu0 0.0
    %1242 = vmatpush2.msra.mxu0 0.0
    %1243 = vmatprep.subr.mxu0 0.0
    %1244 = vmatpush2.msra.mxu0 0.0
    %1245 = vmatprep.subr.mxu0 0.0
    %1246 = vmatpush2.msra.mxu0 0.0
    %1247 = vmatprep.subr.mxu0 0.0
    %1248 = vmatpush2.msra.mxu0 0.0
    %1249 = vmatprep.subr.mxu0 0.0
    %1250 = vmatpush2.msra.mxu0 0.0
    %1251 = vmatprep.subr.mxu0 0.0
    %1252 = vmatpush2.msra.mxu0 0.0
    %1253 = vmatprep.subr.mxu0 0.0
    %1254 = vmatpush2.msra.mxu0 0.0
    %1255 = vmatprep.subr.mxu0 0.0
    %1256 = vmatpush2.msra.mxu0 0.0
    %1257 = vmatprep.mubr.f32.mxu0 0.0
    %1258 = vmatmul.mubr.f32.gmra.mxu0 %v1188
    %v1259 = vpop.f32.mrf.mxu0
    %v1260 = vadd.f32 %v1180, %v1259
    %v1261 = vpop.f32.mrf.mxu0
    %v1262 = vadd.f32 %v1184, %v1261
    %1263 = vmatprep.mubr.f32.mxu0 0.0
    %1264 = vmatmul.mubr.f32.gmra.mxu0 %v1191
    %v1265 = vpop.f32.mrf.mxu0
    %v1266 = vadd.f32 %v1180, %v1265
    %v1267 = vpop.f32.mrf.mxu0
    %v1268 = vadd.f32 %v1184, %v1267
    %1269 = vdwg.mxu0
    %v1270 = vmax.f32 %v1260, 0.0
    %v1271 = vmax.f32 %v1262, 0.0
    %v1272 = vmax.f32 %v1266, 0.0
    %v1273 = vmax.f32 %v1268, 0.0
    %v1274 = vld [vmem:[%s5] sm:$0xff]
    %v1275 = vld [vmem:[%s5 + $0x8] sm:$0xff]
    %v1276 = vld [vmem:[%s5 + $0x10] sm:$0xff]
    %v1277 = vld [vmem:[%s5 + $0x18] sm:$0xff]
    %v1278 = vld [vmem:[%s5 + $0x20] sm:$0xff]
    %v1279 = vld [vmem:[%s5 + $0x28] sm:$0xff]
    %v1280 = vld [vmem:[%s5 + $0x30] sm:$0xff]
    %v1281 = vld [vmem:[%s5 + $0x38] sm:$0xff]
    %v1282 = vld [vmem:[%s5 + $0x40] sm:$0xff]
    %v1283 = vld [vmem:[%s5 + $0x48] sm:$0xff]
    %v1284 = vld [vmem:[%s5 + $0x50] sm:$0xff]
    %v1285 = vld [vmem:[%s5 + $0x58] sm:$0xff]
    %v1286 = vld [vmem:[%s5 + $0x60] sm:$0xff]
    %v1287 = vld [vmem:[%s5 + $0x68] sm:$0xff]
    %v1288 = vld [vmem:[%s5 + $0x70] sm:$0xff]
    %v1289 = vld [vmem:[%s5 + $0x78] sm:$0xff]
    %v1290 = vld [vmem:[%s5 + $0x80] sm:$0xff]
    %v1291 = vld [vmem:[%s5 + $0x88] sm:$0xff]
    %v1292 = vld [vmem:[%s5 + $0x90] sm:$0xff]
    %v1293 = vld [vmem:[%s5 + $0x98] sm:$0xff]
    %v1294 = vld [vmem:[%s5 + $0xa0] sm:$0xff]
    %v1295 = vld [vmem:[%s5 + $0xa8] sm:$0xff]
    %v1296 = vld [vmem:[%s5 + $0xb0] sm:$0xff]
    %v1297 = vld [vmem:[%s5 + $0xb8] sm:$0xff]
    %v1298 = vld [vmem:[%s5 + $0xc0] sm:$0xff]
    %v1299 = vld [vmem:[%s5 + $0xc8] sm:$0xff]
    %v1300 = vld [vmem:[%s5 + $0xd0] sm:$0xff]
    %v1301 = vld [vmem:[%s5 + $0xd8] sm:$0xff]
    %v1302 = vld [vmem:[%s5 + $0xe0] sm:$0xff]
    %v1303 = vld [vmem:[%s5 + $0xe8] sm:$0xff]
    %v1304 = vld [vmem:[%s5 + $0xf0] sm:$0xff]
    %v1305 = vld [vmem:[%s5 + $0xf8] sm:$0xff]
    %v1306 = vlaneseq
    %v1307 = vshrl.u32 %v1306, 7
    %v1308 = vsub.s32 5, %v1307
    %v1309 = vrot.slane %v43, %v1308
    %1310 = vmatprep.subr.mxu0 0.0
    %1311 = vmatpush1.msra.mxu0 %v1289
    %1312 = vmatprep.subr.mxu0 0.0
    %1313 = vmatpush1.msra.mxu0 %v1288
    %1314 = vmatprep.subr.mxu0 0.0
    %1315 = vmatpush1.msra.mxu0 %v1287
    %1316 = vmatprep.subr.mxu0 0.0
    %1317 = vmatpush1.msra.mxu0 %v1286
    %1318 = vmatprep.subr.mxu0 0.0
    %1319 = vmatpush1.msra.mxu0 %v1285
    %1320 = vmatprep.subr.mxu0 0.0
    %1321 = vmatpush1.msra.mxu0 %v1284
    %1322 = vmatprep.subr.mxu0 0.0
    %1323 = vmatpush1.msra.mxu0 %v1283
    %1324 = vmatprep.subr.mxu0 0.0
    %1325 = vmatpush1.msra.mxu0 %v1282
    %1326 = vmatprep.subr.mxu0 0.0
    %1327 = vmatpush1.msra.mxu0 %v1281
    %1328 = vmatprep.subr.mxu0 0.0
    %1329 = vmatpush1.msra.mxu0 %v1280
    %1330 = vmatprep.subr.mxu0 0.0
    %1331 = vmatpush1.msra.mxu0 %v1279
    %1332 = vmatprep.subr.mxu0 0.0
    %1333 = vmatpush1.msra.mxu0 %v1278
    %1334 = vmatprep.subr.mxu0 0.0
    %1335 = vmatpush1.msra.mxu0 %v1277
    %1336 = vmatprep.subr.mxu0 0.0
    %1337 = vmatpush1.msra.mxu0 %v1276
    %1338 = vmatprep.subr.mxu0 0.0
    %1339 = vmatpush1.msra.mxu0 %v1275
    %1340 = vmatprep.subr.mxu0 0.0
    %1341 = vmatpush1.msra.mxu0 %v1274
    %1342 = vmatprep.subr.mxu0 0.0
    %1343 = vmatpush2.msra.mxu0 %v1305
    %1344 = vmatprep.subr.mxu0 0.0
    %1345 = vmatpush2.msra.mxu0 %v1304
    %1346 = vmatprep.subr.mxu0 0.0
    %1347 = vmatpush2.msra.mxu0 %v1303
    %1348 = vmatprep.subr.mxu0 0.0
    %1349 = vmatpush2.msra.mxu0 %v1302
    %1350 = vmatprep.subr.mxu0 0.0
    %1351 = vmatpush2.msra.mxu0 %v1301
    %1352 = vmatprep.subr.mxu0 0.0
    %1353 = vmatpush2.msra.mxu0 %v1300
    %1354 = vmatprep.subr.mxu0 0.0
    %1355 = vmatpush2.msra.mxu0 %v1299
    %1356 = vmatprep.subr.mxu0 0.0
    %1357 = vmatpush2.msra.mxu0 %v1298
    %1358 = vmatprep.subr.mxu0 0.0
    %1359 = vmatpush2.msra.mxu0 %v1297
    %1360 = vmatprep.subr.mxu0 0.0
    %1361 = vmatpush2.msra.mxu0 %v1296
    %1362 = vmatprep.subr.mxu0 0.0
    %1363 = vmatpush2.msra.mxu0 %v1295
    %1364 = vmatprep.subr.mxu0 0.0
    %1365 = vmatpush2.msra.mxu0 %v1294
    %1366 = vmatprep.subr.mxu0 0.0
    %1367 = vmatpush2.msra.mxu0 %v1293
    %1368 = vmatprep.subr.mxu0 0.0
    %1369 = vmatpush2.msra.mxu0 %v1292
    %1370 = vmatprep.subr.mxu0 0.0
    %1371 = vmatpush2.msra.mxu0 %v1291
    %1372 = vmatprep.subr.mxu0 0.0
    %1373 = vmatpush2.msra.mxu0 %v1290
    %1374 = vmatprep.mubr.f32.mxu0 %v1271
    %1375 = vmatmul.mubr.f32.gmra.mxu0 %v1270
    %v1376 = vpop.f32.mrf.mxu0
    %v1377 = vadd.f32 %v1309, %v1376
    %v1378 = vpop.f32.mrf.mxu0
    %1379 = vmatprep.mubr.f32.mxu0 %v1273
    %1380 = vmatmul.mubr.f32.gmra.mxu0 %v1272
    %v1381 = vpop.f32.mrf.mxu0
    %v1382 = vadd.f32 %v1309, %v1381
    %v1383 = vpop.f32.mrf.mxu0
    %1384 = vdwg.mxu0
    %v1385 = vadd.f32 %v1119, %v1377
    %v1386 = vadd.f32 %v1120, %v1382
    %s1387 = scalar_lea.vmem %s6, 8
    %v1388 = vld [vmem:[%s1387] sm:$0x3f]
    %v1389 = vsel %vm44, %v1385, 0.0
    %1390 = vadd.xlane.f32.xlu0 %v1389
    %v1391 = vpop.xlane.xlu0 %1390
    %v1392 = vsel %vm44, %v1386, 0.0
    %1393 = vadd.xlane.f32.xlu0 %v1392
    %v1394 = vpop.xlane.xlu0 %1393
    %v1395 = vmul.f32 %v1391, %v51
    %v1396 = vmul.f32 %v1394, %v51
    %v1397 = vsub.f32 %v1385, %v1395
    %v1398 = vsub.f32 %v1386, %v1396
    %v1399 = vmul.f32 %v1397, %v1397
    %v1400 = vmul.f32 %v1398, %v1398
    %v1401 = vsel %vm44, %v1399, 0.0
    %1402 = vadd.xlane.f32.xlu0 %v1401
    %v1403 = vpop.xlane.xlu0 %1402
    %v1404 = vsel %vm44, %v1400, 0.0
    %1405 = vadd.xlane.f32.xlu0 %v1404
    %v1406 = vpop.xlane.xlu0 %1405
    %v1407 = vmul.f32 %v1403, %v51
    %v1408 = vmul.f32 %v1406, %v51
    %v1409 = vadd.f32 %v1407, 1e-05
    %v1410 = vadd.f32 %v1408, 1e-05
    %v1411 = vrsqrt.pop %v1409
    %v1412 = vrsqrt.pop %v1410
    %v1413 = vmul.f32 %v1397, %v1411
    %v1414 = vmul.f32 %v1398, %v1412
    %v1415 = vlaneseq
    %v1416 = vshrl.u32 %v1415, 7
    %v1417 = vsub.s32 0, %v1416
    %v1418 = vrot.slane %v1388, %v1417
    %v1419 = vmul.f32 %v1413, %v1418
    %v1420 = vmul.f32 %v1414, %v1418
    %v1421 = vlaneseq
    %v1422 = vshrl.u32 %v1421, 7
    %v1423 = vsub.s32 1, %v1422
    %v1424 = vrot.slane %v1388, %v1423
    %v1425 = vadd.f32 %v1419, %v1424
    %v1426 = vadd.f32 %v1420, %v1424
    %s1427 = scalar_lea.vmem %s2, 128
    %v1428 = vld [vmem:[%s1427] sm:$0xff]
    %v1429 = vld [vmem:[%s1427 + $0x8] sm:$0xff]
    %v1430 = vld [vmem:[%s1427 + $0x10] sm:$0xff]
    %v1431 = vld [vmem:[%s1427 + $0x18] sm:$0xff]
    %v1432 = vld [vmem:[%s1427 + $0x20] sm:$0xff]
    %v1433 = vld [vmem:[%s1427 + $0x28] sm:$0xff]
    %v1434 = vld [vmem:[%s1427 + $0x30] sm:$0xff]
    %v1435 = vld [vmem:[%s1427 + $0x38] sm:$0xff]
    %v1436 = vld [vmem:[%s1427 + $0x40] sm:$0xff]
    %v1437 = vld [vmem:[%s1427 + $0x48] sm:$0xff]
    %v1438 = vld [vmem:[%s1427 + $0x50] sm:$0xff]
    %v1439 = vld [vmem:[%s1427 + $0x58] sm:$0xff]
    %v1440 = vld [vmem:[%s1427 + $0x60] sm:$0xff]
    %v1441 = vld [vmem:[%s1427 + $0x68] sm:$0xff]
    %v1442 = vld [vmem:[%s1427 + $0x70] sm:$0xff]
    %v1443 = vld [vmem:[%s1427 + $0x78] sm:$0xff]
    %v1445 = vsel %vm44, %v1425, 0
    %v1448 = vsel %vm44, %v1426, 0
    %1450 = vmatprep.subr.mxu0 0.0
    %1451 = vmatpush1.msra.mxu0 0.0
    %1452 = vmatprep.subr.mxu0 0.0
    %1453 = vmatpush1.msra.mxu0 0.0
    %1454 = vmatprep.subr.mxu0 0.0
    %1455 = vmatpush1.msra.mxu0 0.0
    %1456 = vmatprep.subr.mxu0 0.0
    %1457 = vmatpush1.msra.mxu0 0.0
    %1458 = vmatprep.subr.mxu0 0.0
    %1459 = vmatpush1.msra.mxu0 0.0
    %1460 = vmatprep.subr.mxu0 0.0
    %1461 = vmatpush1.msra.mxu0 0.0
    %1462 = vmatprep.subr.mxu0 0.0
    %1463 = vmatpush1.msra.mxu0 0.0
    %1464 = vmatprep.subr.mxu0 0.0
    %1465 = vmatpush1.msra.mxu0 0.0
    %1466 = vmatprep.subr.mxu0 %v1443
    %1467 = vmatpush1.msra.mxu0 %v1442
    %1468 = vmatprep.subr.mxu0 %v1441
    %1469 = vmatpush1.msra.mxu0 %v1440
    %1470 = vmatprep.subr.mxu0 %v1439
    %1471 = vmatpush1.msra.mxu0 %v1438
    %1472 = vmatprep.subr.mxu0 %v1437
    %1473 = vmatpush1.msra.mxu0 %v1436
    %1474 = vmatprep.subr.mxu0 %v1435
    %1475 = vmatpush1.msra.mxu0 %v1434
    %1476 = vmatprep.subr.mxu0 %v1433
    %1477 = vmatpush1.msra.mxu0 %v1432
    %1478 = vmatprep.subr.mxu0 %v1431
    %1479 = vmatpush1.msra.mxu0 %v1430
    %1480 = vmatprep.subr.mxu0 %v1429
    %1481 = vmatpush1.msra.mxu0 %v1428
    %1482 = vmatprep.subr.mxu0 0.0
    %1483 = vmatpush2.msra.mxu0 0.0
    %1484 = vmatprep.subr.mxu0 0.0
    %1485 = vmatpush2.msra.mxu0 0.0
    %1486 = vmatprep.subr.mxu0 0.0
    %1487 = vmatpush2.msra.mxu0 0.0
    %1488 = vmatprep.subr.mxu0 0.0
    %1489 = vmatpush2.msra.mxu0 0.0
    %1490 = vmatprep.subr.mxu0 0.0
    %1491 = vmatpush2.msra.mxu0 0.0
    %1492 = vmatprep.subr.mxu0 0.0
    %1493 = vmatpush2.msra.mxu0 0.0
    %1494 = vmatprep.subr.mxu0 0.0
    %1495 = vmatpush2.msra.mxu0 0.0
    %1496 = vmatprep.subr.mxu0 0.0
    %1497 = vmatpush2.msra.mxu0 0.0
    %1498 = vmatprep.subr.mxu0 0.0
    %1499 = vmatpush2.msra.mxu0 0.0
    %1500 = vmatprep.subr.mxu0 0.0
    %1501 = vmatpush2.msra.mxu0 0.0
    %1502 = vmatprep.subr.mxu0 0.0
    %1503 = vmatpush2.msra.mxu0 0.0
    %1504 = vmatprep.subr.mxu0 0.0
    %1505 = vmatpush2.msra.mxu0 0.0
    %1506 = vmatprep.subr.mxu0 0.0
    %1507 = vmatpush2.msra.mxu0 0.0
    %1508 = vmatprep.subr.mxu0 0.0
    %1509 = vmatpush2.msra.mxu0 0.0
    %1510 = vmatprep.subr.mxu0 0.0
    %1511 = vmatpush2.msra.mxu0 0.0
    %1512 = vmatprep.subr.mxu0 0.0
    %1513 = vmatpush2.msra.mxu0 0.0
    %1514 = vmatprep.mubr.f32.mxu0 0.0
    %1515 = vmatmul.mubr.f32.gmra.mxu0 %v1445
    %v1516 = vpop.f32.mrf.mxu0
    %v1517 = vadd.f32 0.0, %v1516
    %v1518 = vpop.f32.mrf.mxu0
    %v1519 = vadd.f32 0.0, %v1518
    %1520 = vmatprep.mubr.f32.mxu0 0.0
    %1521 = vmatmul.mubr.f32.gmra.mxu0 %v1448
    %v1522 = vpop.f32.mrf.mxu0
    %v1523 = vadd.f32 0.0, %v1522
    %v1524 = vpop.f32.mrf.mxu0
    %v1525 = vadd.f32 0.0, %v1524
    %1526 = vdwg.mxu0
    %1529 = vrot.lane.b32.xlu0 %v1517, 112
    %v1530 = vpop.permute.xlu0 %1529
    %1531 = vrot.lane.b32.xlu0 %v1523, 112
    %v1532 = vpop.permute.xlu0 %1531
    %1533 = vrot.lane.b32.xlu0 %v1517, 96
    %v1534 = vpop.permute.xlu0 %1533
    %1535 = vrot.lane.b32.xlu0 %v1523, 96
    %v1536 = vpop.permute.xlu0 %1535
    %1537 = vrot.lane.b32.xlu0 %v1517, 80
    %v1538 = vpop.permute.xlu0 %1537
    %1539 = vrot.lane.b32.xlu0 %v1523, 80
    %v1540 = vpop.permute.xlu0 %1539
    %1543 = vrot.lane.b32.xlu0 %v1519, 112
    %v1544 = vpop.permute.xlu0 %1543
    %1545 = vrot.lane.b32.xlu0 %v1525, 112
    %v1546 = vpop.permute.xlu0 %1545
    %1549 = vrot.lane.b32.xlu0 %v1519, 96
    %v1550 = vpop.permute.xlu0 %1549
    %1551 = vrot.lane.b32.xlu0 %v1525, 96
    %v1552 = vpop.permute.xlu0 %1551
    %1555 = vrot.lane.b32.xlu0 %v1519, 80
    %v1556 = vpop.permute.xlu0 %1555
    %1557 = vrot.lane.b32.xlu0 %v1525, 80
    %v1558 = vpop.permute.xlu0 %1557
    %1561 = vrot.lane.b32.xlu0 %v1517, 64
    %v1562 = vpop.permute.xlu0 %1561
    %1563 = vrot.lane.b32.xlu0 %v1523, 64
    %v1564 = vpop.permute.xlu0 %1563
    %v1565 = vsel %vm221, %v1517, 0
    %v1567 = vsel %vm221, %v1523, 0
    %v1569 = vsel %vm221, %v1562, 0
    %v1571 = vsel %vm221, %v1564, 0
    %1573 = vmatprep.subr.mxu0 0.0
    %1574 = vmatpush1.xpose.msra.mxu0 0.0
    %1575 = vmatprep.subr.mxu0 0.0
    %1576 = vmatpush1.xpose.msra.mxu0 0.0
    %1577 = vmatprep.subr.mxu0 0.0
    %1578 = vmatpush1.xpose.msra.mxu0 0.0
    %1579 = vmatprep.subr.mxu0 0.0
    %1580 = vmatpush1.xpose.msra.mxu0 0.0
    %1581 = vmatprep.subr.mxu0 0.0
    %1582 = vmatpush1.xpose.msra.mxu0 0.0
    %1583 = vmatprep.subr.mxu0 0.0
    %1584 = vmatpush1.xpose.msra.mxu0 0.0
    %1585 = vmatprep.subr.mxu0 0.0
    %1586 = vmatpush1.xpose.msra.mxu0 0.0
    %1587 = vmatprep.subr.mxu0 0.0
    %1588 = vmatpush1.xpose.msra.mxu0 0.0
    %1589 = vmatprep.subr.mxu0 0.0
    %1590 = vmatpush1.xpose.msra.mxu0 0.0
    %1591 = vmatprep.subr.mxu0 0.0
    %1592 = vmatpush1.xpose.msra.mxu0 0.0
    %1593 = vmatprep.subr.mxu0 0.0
    %1594 = vmatpush1.xpose.msra.mxu0 0.0
    %1595 = vmatprep.subr.mxu0 0.0
    %1596 = vmatpush1.xpose.msra.mxu0 0.0
    %1597 = vmatprep.subr.mxu0 0.0
    %1598 = vmatpush1.xpose.msra.mxu0 0.0
    %1599 = vmatprep.subr.mxu0 0.0
    %1600 = vmatpush1.xpose.msra.mxu0 0.0
    %1601 = vmatprep.subr.mxu0 0.0
    %1602 = vmatpush1.xpose.msra.mxu0 %v1571
    %1603 = vmatprep.subr.mxu0 0.0
    %1604 = vmatpush1.xpose.msra.mxu0 %v1569
    %1605 = vmatprep.subr.mxu0 0.0
    %1606 = vmatpush2.xpose.msra.mxu0 0.0
    %1607 = vmatprep.subr.mxu0 0.0
    %1608 = vmatpush2.xpose.msra.mxu0 0.0
    %1609 = vmatprep.subr.mxu0 0.0
    %1610 = vmatpush2.xpose.msra.mxu0 0.0
    %1611 = vmatprep.subr.mxu0 0.0
    %1612 = vmatpush2.xpose.msra.mxu0 0.0
    %1613 = vmatprep.subr.mxu0 0.0
    %1614 = vmatpush2.xpose.msra.mxu0 0.0
    %1615 = vmatprep.subr.mxu0 0.0
    %1616 = vmatpush2.xpose.msra.mxu0 0.0
    %1617 = vmatprep.subr.mxu0 0.0
    %1618 = vmatpush2.xpose.msra.mxu0 0.0
    %1619 = vmatprep.subr.mxu0 0.0
    %1620 = vmatpush2.xpose.msra.mxu0 0.0
    %1621 = vmatprep.subr.mxu0 0.0
    %1622 = vmatpush2.xpose.msra.mxu0 0.0
    %1623 = vmatprep.subr.mxu0 0.0
    %1624 = vmatpush2.xpose.msra.mxu0 0.0
    %1625 = vmatprep.subr.mxu0 0.0
    %1626 = vmatpush2.xpose.msra.mxu0 0.0
    %1627 = vmatprep.subr.mxu0 0.0
    %1628 = vmatpush2.xpose.msra.mxu0 0.0
    %1629 = vmatprep.subr.mxu0 0.0
    %1630 = vmatpush2.xpose.msra.mxu0 0.0
    %1631 = vmatprep.subr.mxu0 0.0
    %1632 = vmatpush2.xpose.msra.mxu0 0.0
    %1633 = vmatprep.subr.mxu0 0.0
    %1634 = vmatpush2.xpose.msra.mxu0 0.0
    %1635 = vmatprep.subr.mxu0 0.0
    %1636 = vmatpush2.xpose.msra.mxu0 0.0
    %1637 = vmatprep.mubr.f32.mxu0 0.0
    %1638 = vmatmul.mubr.f32.gmra.mxu0 %v1565
    %v1639 = vpop.f32.mrf.mxu0
    %v1640 = vadd.f32 0.0, %v1639
    %v1641 = vpop.f32.mrf.mxu0
    %1642 = vmatprep.mubr.f32.mxu0 0.0
    %1643 = vmatmul.mubr.f32.gmra.mxu0 %v1567
    %v1644 = vpop.f32.mrf.mxu0
    %v1645 = vadd.f32 0.0, %v1644
    %v1646 = vpop.f32.mrf.mxu0
    %1647 = vdwg.mxu0
    %1648 = vrot.lane.b32.xlu0 %v1530, 64
    %v1649 = vpop.permute.xlu0 %1648
    %1650 = vrot.lane.b32.xlu0 %v1532, 64
    %v1651 = vpop.permute.xlu0 %1650
    %v1652 = vsel %vm221, %v1530, 0
    %v1654 = vsel %vm221, %v1532, 0
    %v1656 = vsel %vm221, %v1649, 0
    %v1658 = vsel %vm221, %v1651, 0
    %1660 = vmatprep.subr.mxu0 0.0
    %1661 = vmatpush1.xpose.msra.mxu0 0.0
    %1662 = vmatprep.subr.mxu0 0.0
    %1663 = vmatpush1.xpose.msra.mxu0 0.0
    %1664 = vmatprep.subr.mxu0 0.0
    %1665 = vmatpush1.xpose.msra.mxu0 0.0
    %1666 = vmatprep.subr.mxu0 0.0
    %1667 = vmatpush1.xpose.msra.mxu0 0.0
    %1668 = vmatprep.subr.mxu0 0.0
    %1669 = vmatpush1.xpose.msra.mxu0 0.0
    %1670 = vmatprep.subr.mxu0 0.0
    %1671 = vmatpush1.xpose.msra.mxu0 0.0
    %1672 = vmatprep.subr.mxu0 0.0
    %1673 = vmatpush1.xpose.msra.mxu0 0.0
    %1674 = vmatprep.subr.mxu0 0.0
    %1675 = vmatpush1.xpose.msra.mxu0 0.0
    %1676 = vmatprep.subr.mxu0 0.0
    %1677 = vmatpush1.xpose.msra.mxu0 0.0
    %1678 = vmatprep.subr.mxu0 0.0
    %1679 = vmatpush1.xpose.msra.mxu0 0.0
    %1680 = vmatprep.subr.mxu0 0.0
    %1681 = vmatpush1.xpose.msra.mxu0 0.0
    %1682 = vmatprep.subr.mxu0 0.0
    %1683 = vmatpush1.xpose.msra.mxu0 0.0
    %1684 = vmatprep.subr.mxu0 0.0
    %1685 = vmatpush1.xpose.msra.mxu0 0.0
    %1686 = vmatprep.subr.mxu0 0.0
    %1687 = vmatpush1.xpose.msra.mxu0 0.0
    %1688 = vmatprep.subr.mxu0 0.0
    %1689 = vmatpush1.xpose.msra.mxu0 %v1658
    %1690 = vmatprep.subr.mxu0 0.0
    %1691 = vmatpush1.xpose.msra.mxu0 %v1656
    %1692 = vmatprep.subr.mxu0 0.0
    %1693 = vmatpush2.xpose.msra.mxu0 0.0
    %1694 = vmatprep.subr.mxu0 0.0
    %1695 = vmatpush2.xpose.msra.mxu0 0.0
    %1696 = vmatprep.subr.mxu0 0.0
    %1697 = vmatpush2.xpose.msra.mxu0 0.0
    %1698 = vmatprep.subr.mxu0 0.0
    %1699 = vmatpush2.xpose.msra.mxu0 0.0
    %1700 = vmatprep.subr.mxu0 0.0
    %1701 = vmatpush2.xpose.msra.mxu0 0.0
    %1702 = vmatprep.subr.mxu0 0.0
    %1703 = vmatpush2.xpose.msra.mxu0 0.0
    %1704 = vmatprep.subr.mxu0 0.0
    %1705 = vmatpush2.xpose.msra.mxu0 0.0
    %1706 = vmatprep.subr.mxu0 0.0
    %1707 = vmatpush2.xpose.msra.mxu0 0.0
    %1708 = vmatprep.subr.mxu0 0.0
    %1709 = vmatpush2.xpose.msra.mxu0 0.0
    %1710 = vmatprep.subr.mxu0 0.0
    %1711 = vmatpush2.xpose.msra.mxu0 0.0
    %1712 = vmatprep.subr.mxu0 0.0
    %1713 = vmatpush2.xpose.msra.mxu0 0.0
    %1714 = vmatprep.subr.mxu0 0.0
    %1715 = vmatpush2.xpose.msra.mxu0 0.0
    %1716 = vmatprep.subr.mxu0 0.0
    %1717 = vmatpush2.xpose.msra.mxu0 0.0
    %1718 = vmatprep.subr.mxu0 0.0
    %1719 = vmatpush2.xpose.msra.mxu0 0.0
    %1720 = vmatprep.subr.mxu0 0.0
    %1721 = vmatpush2.xpose.msra.mxu0 0.0
    %1722 = vmatprep.subr.mxu0 0.0
    %1723 = vmatpush2.xpose.msra.mxu0 0.0
    %1724 = vmatprep.mubr.f32.mxu0 0.0
    %1725 = vmatmul.mubr.f32.gmra.mxu0 %v1652
    %v1726 = vpop.f32.mrf.mxu0
    %v1727 = vadd.f32 0.0, %v1726
    %v1728 = vpop.f32.mrf.mxu0
    %1729 = vmatprep.mubr.f32.mxu0 0.0
    %1730 = vmatmul.mubr.f32.gmra.mxu0 %v1654
    %v1731 = vpop.f32.mrf.mxu0
    %v1732 = vadd.f32 0.0, %v1731
    %v1733 = vpop.f32.mrf.mxu0
    %1734 = vdwg.mxu0
    %1735 = vrot.lane.b32.xlu0 %v1534, 64
    %v1736 = vpop.permute.xlu0 %1735
    %1737 = vrot.lane.b32.xlu0 %v1536, 64
    %v1738 = vpop.permute.xlu0 %1737
    %v1739 = vsel %vm221, %v1534, 0
    %v1741 = vsel %vm221, %v1536, 0
    %v1743 = vsel %vm221, %v1736, 0
    %v1745 = vsel %vm221, %v1738, 0
    %1747 = vmatprep.subr.mxu0 0.0
    %1748 = vmatpush1.xpose.msra.mxu0 0.0
    %1749 = vmatprep.subr.mxu0 0.0
    %1750 = vmatpush1.xpose.msra.mxu0 0.0
    %1751 = vmatprep.subr.mxu0 0.0
    %1752 = vmatpush1.xpose.msra.mxu0 0.0
    %1753 = vmatprep.subr.mxu0 0.0
    %1754 = vmatpush1.xpose.msra.mxu0 0.0
    %1755 = vmatprep.subr.mxu0 0.0
    %1756 = vmatpush1.xpose.msra.mxu0 0.0
    %1757 = vmatprep.subr.mxu0 0.0
    %1758 = vmatpush1.xpose.msra.mxu0 0.0
    %1759 = vmatprep.subr.mxu0 0.0
    %1760 = vmatpush1.xpose.msra.mxu0 0.0
    %1761 = vmatprep.subr.mxu0 0.0
    %1762 = vmatpush1.xpose.msra.mxu0 0.0
    %1763 = vmatprep.subr.mxu0 0.0
    %1764 = vmatpush1.xpose.msra.mxu0 0.0
    %1765 = vmatprep.subr.mxu0 0.0
    %1766 = vmatpush1.xpose.msra.mxu0 0.0
    %1767 = vmatprep.subr.mxu0 0.0
    %1768 = vmatpush1.xpose.msra.mxu0 0.0
    %1769 = vmatprep.subr.mxu0 0.0
    %1770 = vmatpush1.xpose.msra.mxu0 0.0
    %1771 = vmatprep.subr.mxu0 0.0
    %1772 = vmatpush1.xpose.msra.mxu0 0.0
    %1773 = vmatprep.subr.mxu0 0.0
    %1774 = vmatpush1.xpose.msra.mxu0 0.0
    %1775 = vmatprep.subr.mxu0 0.0
    %1776 = vmatpush1.xpose.msra.mxu0 %v1745
    %1777 = vmatprep.subr.mxu0 0.0
    %1778 = vmatpush1.xpose.msra.mxu0 %v1743
    %1779 = vmatprep.subr.mxu0 0.0
    %1780 = vmatpush2.xpose.msra.mxu0 0.0
    %1781 = vmatprep.subr.mxu0 0.0
    %1782 = vmatpush2.xpose.msra.mxu0 0.0
    %1783 = vmatprep.subr.mxu0 0.0
    %1784 = vmatpush2.xpose.msra.mxu0 0.0
    %1785 = vmatprep.subr.mxu0 0.0
    %1786 = vmatpush2.xpose.msra.mxu0 0.0
    %1787 = vmatprep.subr.mxu0 0.0
    %1788 = vmatpush2.xpose.msra.mxu0 0.0
    %1789 = vmatprep.subr.mxu0 0.0
    %1790 = vmatpush2.xpose.msra.mxu0 0.0
    %1791 = vmatprep.subr.mxu0 0.0
    %1792 = vmatpush2.xpose.msra.mxu0 0.0
    %1793 = vmatprep.subr.mxu0 0.0
    %1794 = vmatpush2.xpose.msra.mxu0 0.0
    %1795 = vmatprep.subr.mxu0 0.0
    %1796 = vmatpush2.xpose.msra.mxu0 0.0
    %1797 = vmatprep.subr.mxu0 0.0
    %1798 = vmatpush2.xpose.msra.mxu0 0.0
    %1799 = vmatprep.subr.mxu0 0.0
    %1800 = vmatpush2.xpose.msra.mxu0 0.0
    %1801 = vmatprep.subr.mxu0 0.0
    %1802 = vmatpush2.xpose.msra.mxu0 0.0
    %1803 = vmatprep.subr.mxu0 0.0
    %1804 = vmatpush2.xpose.msra.mxu0 0.0
    %1805 = vmatprep.subr.mxu0 0.0
    %1806 = vmatpush2.xpose.msra.mxu0 0.0
    %1807 = vmatprep.subr.mxu0 0.0
    %1808 = vmatpush2.xpose.msra.mxu0 0.0
    %1809 = vmatprep.subr.mxu0 0.0
    %1810 = vmatpush2.xpose.msra.mxu0 0.0
    %1811 = vmatprep.mubr.f32.mxu0 0.0
    %1812 = vmatmul.mubr.f32.gmra.mxu0 %v1739
    %v1813 = vpop.f32.mrf.mxu0
    %v1814 = vadd.f32 0.0, %v1813
    %v1815 = vpop.f32.mrf.mxu0
    %1816 = vmatprep.mubr.f32.mxu0 0.0
    %1817 = vmatmul.mubr.f32.gmra.mxu0 %v1741
    %v1818 = vpop.f32.mrf.mxu0
    %v1819 = vadd.f32 0.0, %v1818
    %v1820 = vpop.f32.mrf.mxu0
    %1821 = vdwg.mxu0
    %1822 = vrot.lane.b32.xlu0 %v1538, 64
    %v1823 = vpop.permute.xlu0 %1822
    %1824 = vrot.lane.b32.xlu0 %v1540, 64
    %v1825 = vpop.permute.xlu0 %1824
    %v1826 = vsel %vm221, %v1538, 0
    %v1828 = vsel %vm221, %v1540, 0
    %v1830 = vsel %vm221, %v1823, 0
    %v1832 = vsel %vm221, %v1825, 0
    %1834 = vmatprep.subr.mxu0 0.0
    %1835 = vmatpush1.xpose.msra.mxu0 0.0
    %1836 = vmatprep.subr.mxu0 0.0
    %1837 = vmatpush1.xpose.msra.mxu0 0.0
    %1838 = vmatprep.subr.mxu0 0.0
    %1839 = vmatpush1.xpose.msra.mxu0 0.0
    %1840 = vmatprep.subr.mxu0 0.0
    %1841 = vmatpush1.xpose.msra.mxu0 0.0
    %1842 = vmatprep.subr.mxu0 0.0
    %1843 = vmatpush1.xpose.msra.mxu0 0.0
    %1844 = vmatprep.subr.mxu0 0.0
    %1845 = vmatpush1.xpose.msra.mxu0 0.0
    %1846 = vmatprep.subr.mxu0 0.0
    %1847 = vmatpush1.xpose.msra.mxu0 0.0
    %1848 = vmatprep.subr.mxu0 0.0
    %1849 = vmatpush1.xpose.msra.mxu0 0.0
    %1850 = vmatprep.subr.mxu0 0.0
    %1851 = vmatpush1.xpose.msra.mxu0 0.0
    %1852 = vmatprep.subr.mxu0 0.0
    %1853 = vmatpush1.xpose.msra.mxu0 0.0
    %1854 = vmatprep.subr.mxu0 0.0
    %1855 = vmatpush1.xpose.msra.mxu0 0.0
    %1856 = vmatprep.subr.mxu0 0.0
    %1857 = vmatpush1.xpose.msra.mxu0 0.0
    %1858 = vmatprep.subr.mxu0 0.0
    %1859 = vmatpush1.xpose.msra.mxu0 0.0
    %1860 = vmatprep.subr.mxu0 0.0
    %1861 = vmatpush1.xpose.msra.mxu0 0.0
    %1862 = vmatprep.subr.mxu0 0.0
    %1863 = vmatpush1.xpose.msra.mxu0 %v1832
    %1864 = vmatprep.subr.mxu0 0.0
    %1865 = vmatpush1.xpose.msra.mxu0 %v1830
    %1866 = vmatprep.subr.mxu0 0.0
    %1867 = vmatpush2.xpose.msra.mxu0 0.0
    %1868 = vmatprep.subr.mxu0 0.0
    %1869 = vmatpush2.xpose.msra.mxu0 0.0
    %1870 = vmatprep.subr.mxu0 0.0
    %1871 = vmatpush2.xpose.msra.mxu0 0.0
    %1872 = vmatprep.subr.mxu0 0.0
    %1873 = vmatpush2.xpose.msra.mxu0 0.0
    %1874 = vmatprep.subr.mxu0 0.0
    %1875 = vmatpush2.xpose.msra.mxu0 0.0
    %1876 = vmatprep.subr.mxu0 0.0
    %1877 = vmatpush2.xpose.msra.mxu0 0.0
    %1878 = vmatprep.subr.mxu0 0.0
    %1879 = vmatpush2.xpose.msra.mxu0 0.0
    %1880 = vmatprep.subr.mxu0 0.0
    %1881 = vmatpush2.xpose.msra.mxu0 0.0
    %1882 = vmatprep.subr.mxu0 0.0
    %1883 = vmatpush2.xpose.msra.mxu0 0.0
    %1884 = vmatprep.subr.mxu0 0.0
    %1885 = vmatpush2.xpose.msra.mxu0 0.0
    %1886 = vmatprep.subr.mxu0 0.0
    %1887 = vmatpush2.xpose.msra.mxu0 0.0
    %1888 = vmatprep.subr.mxu0 0.0
    %1889 = vmatpush2.xpose.msra.mxu0 0.0
    %1890 = vmatprep.subr.mxu0 0.0
    %1891 = vmatpush2.xpose.msra.mxu0 0.0
    %1892 = vmatprep.subr.mxu0 0.0
    %1893 = vmatpush2.xpose.msra.mxu0 0.0
    %1894 = vmatprep.subr.mxu0 0.0
    %1895 = vmatpush2.xpose.msra.mxu0 0.0
    %1896 = vmatprep.subr.mxu0 0.0
    %1897 = vmatpush2.xpose.msra.mxu0 0.0
    %1898 = vmatprep.mubr.f32.mxu0 0.0
    %1899 = vmatmul.mubr.f32.gmra.mxu0 %v1826
    %v1900 = vpop.f32.mrf.mxu0
    %v1901 = vadd.f32 0.0, %v1900
    %v1902 = vpop.f32.mrf.mxu0
    %1903 = vmatprep.mubr.f32.mxu0 0.0
    %1904 = vmatmul.mubr.f32.gmra.mxu0 %v1828
    %v1905 = vpop.f32.mrf.mxu0
    %v1906 = vadd.f32 0.0, %v1905
    %v1907 = vpop.f32.mrf.mxu0
    %1908 = vdwg.mxu0
    %v1909 = vmul.f32 %v1640, 0.125
    %v1910 = vmul.f32 %v1645, 0.125
    %v1911 = vmul.f32 %v1727, 0.125
    %v1912 = vmul.f32 %v1732, 0.125
    %v1913 = vmul.f32 %v1814, 0.125
    %v1914 = vmul.f32 %v1819, 0.125
    %v1915 = vmul.f32 %v1901, 0.125
    %v1916 = vmul.f32 %v1906, 0.125
    %v1917 = vadd.f32 %v1909, %v41
    %v1918 = vadd.f32 %v1910, %v42
    %v1919 = vadd.f32 %v1911, %v41
    %v1920 = vadd.f32 %v1912, %v42
    %v1921 = vadd.f32 %v1913, %v41
    %v1922 = vadd.f32 %v1914, %v42
    %v1923 = vadd.f32 %v1915, %v41
    %v1924 = vadd.f32 %v1916, %v42
    %v1925 = vsel %vm221, %v1917, -inf
    %1926 = vmax.xlane.f32.xlu0 %v1925
    %v1927 = vpop.xlane.xlu0 %1926
    %v1928 = vsel %vm221, %v1918, -inf
    %1929 = vmax.xlane.f32.xlu0 %v1928
    %v1930 = vpop.xlane.xlu0 %1929
    %v1931 = vsel %vm221, %v1919, -inf
    %1932 = vmax.xlane.f32.xlu0 %v1931
    %v1933 = vpop.xlane.xlu0 %1932
    %v1934 = vsel %vm221, %v1920, -inf
    %1935 = vmax.xlane.f32.xlu0 %v1934
    %v1936 = vpop.xlane.xlu0 %1935
    %v1937 = vsel %vm221, %v1921, -inf
    %1938 = vmax.xlane.f32.xlu0 %v1937
    %v1939 = vpop.xlane.xlu0 %1938
    %v1940 = vsel %vm221, %v1922, -inf
    %1941 = vmax.xlane.f32.xlu0 %v1940
    %v1942 = vpop.xlane.xlu0 %1941
    %v1943 = vsel %vm221, %v1923, -inf
    %1944 = vmax.xlane.f32.xlu0 %v1943
    %v1945 = vpop.xlane.xlu0 %1944
    %v1946 = vsel %vm221, %v1924, -inf
    %1947 = vmax.xlane.f32.xlu0 %v1946
    %v1948 = vpop.xlane.xlu0 %1947
    %v1949 = vsub.f32 %v1917, %v1927
    %v1950 = vsub.f32 %v1918, %v1930
    %v1951 = vsub.f32 %v1919, %v1933
    %v1952 = vsub.f32 %v1920, %v1936
    %v1953 = vsub.f32 %v1921, %v1939
    %v1954 = vsub.f32 %v1922, %v1942
    %v1955 = vsub.f32 %v1923, %v1945
    %v1956 = vsub.f32 %v1924, %v1948
    %v1957 = vmul.f32 %v1949, 1.442695
    %v1958 = vpow.pop %v1957
    %v1959 = vmul.f32 %v1950, 1.442695
    %v1960 = vpow.pop %v1959
    %v1961 = vmul.f32 %v1951, 1.442695
    %v1962 = vpow.pop %v1961
    %v1963 = vmul.f32 %v1952, 1.442695
    %v1964 = vpow.pop %v1963
    %v1965 = vmul.f32 %v1953, 1.442695
    %v1966 = vpow.pop %v1965
    %v1967 = vmul.f32 %v1954, 1.442695
    %v1968 = vpow.pop %v1967
    %v1969 = vmul.f32 %v1955, 1.442695
    %v1970 = vpow.pop %v1969
    %v1971 = vmul.f32 %v1956, 1.442695
    %v1972 = vpow.pop %v1971
    %v1973 = vsel %vm221, %v1958, 0.0
    %1974 = vadd.xlane.f32.xlu0 %v1973
    %v1975 = vpop.xlane.xlu0 %1974
    %v1976 = vsel %vm221, %v1960, 0.0
    %1977 = vadd.xlane.f32.xlu0 %v1976
    %v1978 = vpop.xlane.xlu0 %1977
    %v1979 = vsel %vm221, %v1962, 0.0
    %1980 = vadd.xlane.f32.xlu0 %v1979
    %v1981 = vpop.xlane.xlu0 %1980
    %v1982 = vsel %vm221, %v1964, 0.0
    %1983 = vadd.xlane.f32.xlu0 %v1982
    %v1984 = vpop.xlane.xlu0 %1983
    %v1985 = vsel %vm221, %v1966, 0.0
    %1986 = vadd.xlane.f32.xlu0 %v1985
    %v1987 = vpop.xlane.xlu0 %1986
    %v1988 = vsel %vm221, %v1968, 0.0
    %1989 = vadd.xlane.f32.xlu0 %v1988
    %v1990 = vpop.xlane.xlu0 %1989
    %v1991 = vsel %vm221, %v1970, 0.0
    %1992 = vadd.xlane.f32.xlu0 %v1991
    %v1993 = vpop.xlane.xlu0 %1992
    %v1994 = vsel %vm221, %v1972, 0.0
    %1995 = vadd.xlane.f32.xlu0 %v1994
    %v1996 = vpop.xlane.xlu0 %1995
    %v1997 = vrcp.pop %v1975
    %v1998 = vrcp.pop %v1978
    %v1999 = vrcp.pop %v1981
    %v2000 = vrcp.pop %v1984
    %v2001 = vrcp.pop %v1987
    %v2002 = vrcp.pop %v1990
    %v2003 = vrcp.pop %v1993
    %v2004 = vrcp.pop %v1996
    %v2005 = vmul.f32 %v1958, %v1997
    %v2006 = vmul.f32 %v1960, %v1998
    %v2007 = vmul.f32 %v1962, %v1999
    %v2008 = vmul.f32 %v1964, %v2000
    %v2009 = vmul.f32 %v1966, %v2001
    %v2010 = vmul.f32 %v1968, %v2002
    %v2011 = vmul.f32 %v1970, %v2003
    %v2012 = vmul.f32 %v1972, %v2004
    %v2014 = vsel %vm221, %v2005, 0
    %v2017 = vsel %vm221, %v2006, 0
    %2019 = vmatprep.subr.mxu0 0.0
    %2020 = vmatpush1.msra.mxu0 0.0
    %2021 = vmatprep.subr.mxu0 0.0
    %2022 = vmatpush1.msra.mxu0 0.0
    %2023 = vmatprep.subr.mxu0 0.0
    %2024 = vmatpush1.msra.mxu0 0.0
    %2025 = vmatprep.subr.mxu0 0.0
    %2026 = vmatpush1.msra.mxu0 0.0
    %2027 = vmatprep.subr.mxu0 0.0
    %2028 = vmatpush1.msra.mxu0 0.0
    %2029 = vmatprep.subr.mxu0 0.0
    %2030 = vmatpush1.msra.mxu0 0.0
    %2031 = vmatprep.subr.mxu0 0.0
    %2032 = vmatpush1.msra.mxu0 0.0
    %2033 = vmatprep.subr.mxu0 0.0
    %2034 = vmatpush1.msra.mxu0 0.0
    %2035 = vmatprep.subr.mxu0 0.0
    %2036 = vmatpush1.msra.mxu0 0.0
    %2037 = vmatprep.subr.mxu0 0.0
    %2038 = vmatpush1.msra.mxu0 0.0
    %2039 = vmatprep.subr.mxu0 0.0
    %2040 = vmatpush1.msra.mxu0 0.0
    %2041 = vmatprep.subr.mxu0 0.0
    %2042 = vmatpush1.msra.mxu0 0.0
    %2043 = vmatprep.subr.mxu0 0.0
    %2044 = vmatpush1.msra.mxu0 0.0
    %2045 = vmatprep.subr.mxu0 0.0
    %2046 = vmatpush1.msra.mxu0 0.0
    %2047 = vmatprep.subr.mxu0 0.0
    %2048 = vmatpush1.msra.mxu0 %v1525
    %2049 = vmatprep.subr.mxu0 0.0
    %2050 = vmatpush1.msra.mxu0 %v1519
    %2051 = vmatprep.subr.mxu0 0.0
    %2052 = vmatpush2.msra.mxu0 0.0
    %2053 = vmatprep.subr.mxu0 0.0
    %2054 = vmatpush2.msra.mxu0 0.0
    %2055 = vmatprep.subr.mxu0 0.0
    %2056 = vmatpush2.msra.mxu0 0.0
    %2057 = vmatprep.subr.mxu0 0.0
    %2058 = vmatpush2.msra.mxu0 0.0
    %2059 = vmatprep.subr.mxu0 0.0
    %2060 = vmatpush2.msra.mxu0 0.0
    %2061 = vmatprep.subr.mxu0 0.0
    %2062 = vmatpush2.msra.mxu0 0.0
    %2063 = vmatprep.subr.mxu0 0.0
    %2064 = vmatpush2.msra.mxu0 0.0
    %2065 = vmatprep.subr.mxu0 0.0
    %2066 = vmatpush2.msra.mxu0 0.0
    %2067 = vmatprep.subr.mxu0 0.0
    %2068 = vmatpush2.msra.mxu0 0.0
    %2069 = vmatprep.subr.mxu0 0.0
    %2070 = vmatpush2.msra.mxu0 0.0
    %2071 = vmatprep.subr.mxu0 0.0
    %2072 = vmatpush2.msra.mxu0 0.0
    %2073 = vmatprep.subr.mxu0 0.0
    %2074 = vmatpush2.msra.mxu0 0.0
    %2075 = vmatprep.subr.mxu0 0.0
    %2076 = vmatpush2.msra.mxu0 0.0
    %2077 = vmatprep.subr.mxu0 0.0
    %2078 = vmatpush2.msra.mxu0 0.0
    %2079 = vmatprep.subr.mxu0 0.0
    %2080 = vmatpush2.msra.mxu0 0.0
    %2081 = vmatprep.subr.mxu0 0.0
    %2082 = vmatpush2.msra.mxu0 0.0
    %2083 = vmatprep.mubr.f32.mxu0 0.0
    %2084 = vmatmul.mubr.f32.gmra.mxu0 %v2014
    %v2085 = vpop.f32.mrf.mxu0
    %v2086 = vadd.f32 0.0, %v2085
    %v2087 = vpop.f32.mrf.mxu0
    %2088 = vmatprep.mubr.f32.mxu0 0.0
    %2089 = vmatmul.mubr.f32.gmra.mxu0 %v2017
    %v2090 = vpop.f32.mrf.mxu0
    %v2091 = vadd.f32 0.0, %v2090
    %v2092 = vpop.f32.mrf.mxu0
    %2093 = vdwg.mxu0
    %v2095 = vsel %vm221, %v2007, 0
    %v2098 = vsel %vm221, %v2008, 0
    %2100 = vmatprep.subr.mxu0 0.0
    %2101 = vmatpush1.msra.mxu0 0.0
    %2102 = vmatprep.subr.mxu0 0.0
    %2103 = vmatpush1.msra.mxu0 0.0
    %2104 = vmatprep.subr.mxu0 0.0
    %2105 = vmatpush1.msra.mxu0 0.0
    %2106 = vmatprep.subr.mxu0 0.0
    %2107 = vmatpush1.msra.mxu0 0.0
    %2108 = vmatprep.subr.mxu0 0.0
    %2109 = vmatpush1.msra.mxu0 0.0
    %2110 = vmatprep.subr.mxu0 0.0
    %2111 = vmatpush1.msra.mxu0 0.0
    %2112 = vmatprep.subr.mxu0 0.0
    %2113 = vmatpush1.msra.mxu0 0.0
    %2114 = vmatprep.subr.mxu0 0.0
    %2115 = vmatpush1.msra.mxu0 0.0
    %2116 = vmatprep.subr.mxu0 0.0
    %2117 = vmatpush1.msra.mxu0 0.0
    %2118 = vmatprep.subr.mxu0 0.0
    %2119 = vmatpush1.msra.mxu0 0.0
    %2120 = vmatprep.subr.mxu0 0.0
    %2121 = vmatpush1.msra.mxu0 0.0
    %2122 = vmatprep.subr.mxu0 0.0
    %2123 = vmatpush1.msra.mxu0 0.0
    %2124 = vmatprep.subr.mxu0 0.0
    %2125 = vmatpush1.msra.mxu0 0.0
    %2126 = vmatprep.subr.mxu0 0.0
    %2127 = vmatpush1.msra.mxu0 0.0
    %2128 = vmatprep.subr.mxu0 0.0
    %2129 = vmatpush1.msra.mxu0 %v1546
    %2130 = vmatprep.subr.mxu0 0.0
    %2131 = vmatpush1.msra.mxu0 %v1544
    %2132 = vmatprep.subr.mxu0 0.0
    %2133 = vmatpush2.msra.mxu0 0.0
    %2134 = vmatprep.subr.mxu0 0.0
    %2135 = vmatpush2.msra.mxu0 0.0
    %2136 = vmatprep.subr.mxu0 0.0
    %2137 = vmatpush2.msra.mxu0 0.0
    %2138 = vmatprep.subr.mxu0 0.0
    %2139 = vmatpush2.msra.mxu0 0.0
    %2140 = vmatprep.subr.mxu0 0.0
    %2141 = vmatpush2.msra.mxu0 0.0
    %2142 = vmatprep.subr.mxu0 0.0
    %2143 = vmatpush2.msra.mxu0 0.0
    %2144 = vmatprep.subr.mxu0 0.0
    %2145 = vmatpush2.msra.mxu0 0.0
    %2146 = vmatprep.subr.mxu0 0.0
    %2147 = vmatpush2.msra.mxu0 0.0
    %2148 = vmatprep.subr.mxu0 0.0
    %2149 = vmatpush2.msra.mxu0 0.0
    %2150 = vmatprep.subr.mxu0 0.0
    %2151 = vmatpush2.msra.mxu0 0.0
    %2152 = vmatprep.subr.mxu0 0.0
    %2153 = vmatpush2.msra.mxu0 0.0
    %2154 = vmatprep.subr.mxu0 0.0
    %2155 = vmatpush2.msra.mxu0 0.0
    %2156 = vmatprep.subr.mxu0 0.0
    %2157 = vmatpush2.msra.mxu0 0.0
    %2158 = vmatprep.subr.mxu0 0.0
    %2159 = vmatpush2.msra.mxu0 0.0
    %2160 = vmatprep.subr.mxu0 0.0
    %2161 = vmatpush2.msra.mxu0 0.0
    %2162 = vmatprep.subr.mxu0 0.0
    %2163 = vmatpush2.msra.mxu0 0.0
    %2164 = vmatprep.mubr.f32.mxu0 0.0
    %2165 = vmatmul.mubr.f32.gmra.mxu0 %v2095
    %v2166 = vpop.f32.mrf.mxu0
    %v2167 = vadd.f32 0.0, %v2166
    %v2168 = vpop.f32.mrf.mxu0
    %2169 = vmatprep.mubr.f32.mxu0 0.0
    %2170 = vmatmul.mubr.f32.gmra.mxu0 %v2098
    %v2171 = vpop.f32.mrf.mxu0
    %v2172 = vadd.f32 0.0, %v2171
    %v2173 = vpop.f32.mrf.mxu0
    %2174 = vdwg.mxu0
    %v2176 = vsel %vm221, %v2009, 0
    %v2179 = vsel %vm221, %v2010, 0
    %2181 = vmatprep.subr.mxu0 0.0
    %2182 = vmatpush1.msra.mxu0 0.0
    %2183 = vmatprep.subr.mxu0 0.0
    %2184 = vmatpush1.msra.mxu0 0.0
    %2185 = vmatprep.subr.mxu0 0.0
    %2186 = vmatpush1.msra.mxu0 0.0
    %2187 = vmatprep.subr.mxu0 0.0
    %2188 = vmatpush1.msra.mxu0 0.0
    %2189 = vmatprep.subr.mxu0 0.0
    %2190 = vmatpush1.msra.mxu0 0.0
    %2191 = vmatprep.subr.mxu0 0.0
    %2192 = vmatpush1.msra.mxu0 0.0
    %2193 = vmatprep.subr.mxu0 0.0
    %2194 = vmatpush1.msra.mxu0 0.0
    %2195 = vmatprep.subr.mxu0 0.0
    %2196 = vmatpush1.msra.mxu0 0.0
    %2197 = vmatprep.subr.mxu0 0.0
    %2198 = vmatpush1.msra.mxu0 0.0
    %2199 = vmatprep.subr.mxu0 0.0
    %2200 = vmatpush1.msra.mxu0 0.0
    %2201 = vmatprep.subr.mxu0 0.0
    %2202 = vmatpush1.msra.mxu0 0.0
    %2203 = vmatprep.subr.mxu0 0.0
    %2204 = vmatpush1.msra.mxu0 0.0
    %2205 = vmatprep.subr.mxu0 0.0
    %2206 = vmatpush1.msra.mxu0 0.0
    %2207 = vmatprep.subr.mxu0 0.0
    %2208 = vmatpush1.msra.mxu0 0.0
    %2209 = vmatprep.subr.mxu0 0.0
    %2210 = vmatpush1.msra.mxu0 %v1552
    %2211 = vmatprep.subr.mxu0 0.0
    %2212 = vmatpush1.msra.mxu0 %v1550
    %2213 = vmatprep.subr.mxu0 0.0
    %2214 = vmatpush2.msra.mxu0 0.0
    %2215 = vmatprep.subr.mxu0 0.0
    %2216 = vmatpush2.msra.mxu0 0.0
    %2217 = vmatprep.subr.mxu0 0.0
    %2218 = vmatpush2.msra.mxu0 0.0
    %2219 = vmatprep.subr.mxu0 0.0
    %2220 = vmatpush2.msra.mxu0 0.0
    %2221 = vmatprep.subr.mxu0 0.0
    %2222 = vmatpush2.msra.mxu0 0.0
    %2223 = vmatprep.subr.mxu0 0.0
    %2224 = vmatpush2.msra.mxu0 0.0
    %2225 = vmatprep.subr.mxu0 0.0
    %2226 = vmatpush2.msra.mxu0 0.0
    %2227 = vmatprep.subr.mxu0 0.0
    %2228 = vmatpush2.msra.mxu0 0.0
    %2229 = vmatprep.subr.mxu0 0.0
    %2230 = vmatpush2.msra.mxu0 0.0
    %2231 = vmatprep.subr.mxu0 0.0
    %2232 = vmatpush2.msra.mxu0 0.0
    %2233 = vmatprep.subr.mxu0 0.0
    %2234 = vmatpush2.msra.mxu0 0.0
    %2235 = vmatprep.subr.mxu0 0.0
    %2236 = vmatpush2.msra.mxu0 0.0
    %2237 = vmatprep.subr.mxu0 0.0
    %2238 = vmatpush2.msra.mxu0 0.0
    %2239 = vmatprep.subr.mxu0 0.0
    %2240 = vmatpush2.msra.mxu0 0.0
    %2241 = vmatprep.subr.mxu0 0.0
    %2242 = vmatpush2.msra.mxu0 0.0
    %2243 = vmatprep.subr.mxu0 0.0
    %2244 = vmatpush2.msra.mxu0 0.0
    %2245 = vmatprep.mubr.f32.mxu0 0.0
    %2246 = vmatmul.mubr.f32.gmra.mxu0 %v2176
    %v2247 = vpop.f32.mrf.mxu0
    %v2248 = vadd.f32 0.0, %v2247
    %v2249 = vpop.f32.mrf.mxu0
    %2250 = vmatprep.mubr.f32.mxu0 0.0
    %2251 = vmatmul.mubr.f32.gmra.mxu0 %v2179
    %v2252 = vpop.f32.mrf.mxu0
    %v2253 = vadd.f32 0.0, %v2252
    %v2254 = vpop.f32.mrf.mxu0
    %2255 = vdwg.mxu0
    %v2257 = vsel %vm221, %v2011, 0
    %v2260 = vsel %vm221, %v2012, 0
    %2262 = vmatprep.subr.mxu0 0.0
    %2263 = vmatpush1.msra.mxu0 0.0
    %2264 = vmatprep.subr.mxu0 0.0
    %2265 = vmatpush1.msra.mxu0 0.0
    %2266 = vmatprep.subr.mxu0 0.0
    %2267 = vmatpush1.msra.mxu0 0.0
    %2268 = vmatprep.subr.mxu0 0.0
    %2269 = vmatpush1.msra.mxu0 0.0
    %2270 = vmatprep.subr.mxu0 0.0
    %2271 = vmatpush1.msra.mxu0 0.0
    %2272 = vmatprep.subr.mxu0 0.0
    %2273 = vmatpush1.msra.mxu0 0.0
    %2274 = vmatprep.subr.mxu0 0.0
    %2275 = vmatpush1.msra.mxu0 0.0
    %2276 = vmatprep.subr.mxu0 0.0
    %2277 = vmatpush1.msra.mxu0 0.0
    %2278 = vmatprep.subr.mxu0 0.0
    %2279 = vmatpush1.msra.mxu0 0.0
    %2280 = vmatprep.subr.mxu0 0.0
    %2281 = vmatpush1.msra.mxu0 0.0
    %2282 = vmatprep.subr.mxu0 0.0
    %2283 = vmatpush1.msra.mxu0 0.0
    %2284 = vmatprep.subr.mxu0 0.0
    %2285 = vmatpush1.msra.mxu0 0.0
    %2286 = vmatprep.subr.mxu0 0.0
    %2287 = vmatpush1.msra.mxu0 0.0
    %2288 = vmatprep.subr.mxu0 0.0
    %2289 = vmatpush1.msra.mxu0 0.0
    %2290 = vmatprep.subr.mxu0 0.0
    %2291 = vmatpush1.msra.mxu0 %v1558
    %2292 = vmatprep.subr.mxu0 0.0
    %2293 = vmatpush1.msra.mxu0 %v1556
    %2294 = vmatprep.subr.mxu0 0.0
    %2295 = vmatpush2.msra.mxu0 0.0
    %2296 = vmatprep.subr.mxu0 0.0
    %2297 = vmatpush2.msra.mxu0 0.0
    %2298 = vmatprep.subr.mxu0 0.0
    %2299 = vmatpush2.msra.mxu0 0.0
    %2300 = vmatprep.subr.mxu0 0.0
    %2301 = vmatpush2.msra.mxu0 0.0
    %2302 = vmatprep.subr.mxu0 0.0
    %2303 = vmatpush2.msra.mxu0 0.0
    %2304 = vmatprep.subr.mxu0 0.0
    %2305 = vmatpush2.msra.mxu0 0.0
    %2306 = vmatprep.subr.mxu0 0.0
    %2307 = vmatpush2.msra.mxu0 0.0
    %2308 = vmatprep.subr.mxu0 0.0
    %2309 = vmatpush2.msra.mxu0 0.0
    %2310 = vmatprep.subr.mxu0 0.0
    %2311 = vmatpush2.msra.mxu0 0.0
    %2312 = vmatprep.subr.mxu0 0.0
    %2313 = vmatpush2.msra.mxu0 0.0
    %2314 = vmatprep.subr.mxu0 0.0
    %2315 = vmatpush2.msra.mxu0 0.0
    %2316 = vmatprep.subr.mxu0 0.0
    %2317 = vmatpush2.msra.mxu0 0.0
    %2318 = vmatprep.subr.mxu0 0.0
    %2319 = vmatpush2.msra.mxu0 0.0
    %2320 = vmatprep.subr.mxu0 0.0
    %2321 = vmatpush2.msra.mxu0 0.0
    %2322 = vmatprep.subr.mxu0 0.0
    %2323 = vmatpush2.msra.mxu0 0.0
    %2324 = vmatprep.subr.mxu0 0.0
    %2325 = vmatpush2.msra.mxu0 0.0
    %2326 = vmatprep.mubr.f32.mxu0 0.0
    %2327 = vmatmul.mubr.f32.gmra.mxu0 %v2257
    %v2328 = vpop.f32.mrf.mxu0
    %v2329 = vadd.f32 0.0, %v2328
    %v2330 = vpop.f32.mrf.mxu0
    %2331 = vmatprep.mubr.f32.mxu0 0.0
    %2332 = vmatmul.mubr.f32.gmra.mxu0 %v2260
    %v2333 = vpop.f32.mrf.mxu0
    %v2334 = vadd.f32 0.0, %v2333
    %v2335 = vpop.f32.mrf.mxu0
    %2336 = vdwg.mxu0
    %2339 = vrot.lane.b32.xlu0 %v2167, 16
    %v2340 = vpop.permute.xlu0 %2339
    %2341 = vrot.lane.b32.xlu0 %v2172, 16
    %v2342 = vpop.permute.xlu0 %2341
    %2347 = vrot.lane.b32.xlu0 %v2248, 32
    %v2348 = vpop.permute.xlu0 %2347
    %2349 = vrot.lane.b32.xlu0 %v2253, 32
    %v2350 = vpop.permute.xlu0 %2349
    %2355 = vrot.lane.b32.xlu0 %v2329, 48
    %v2356 = vpop.permute.xlu0 %2355
    %2357 = vrot.lane.b32.xlu0 %v2334, 48
    %v2358 = vpop.permute.xlu0 %2357
    %v2361 = vsel %vm221, %v2086, %v2340
    %v2362 = vsel %vm221, %v2091, %v2342
    %v2363 = vsel %vm1020, %v2361, %v2348
    %v2364 = vsel %vm1020, %v2362, %v2350
    %v2365 = vsel %vm1023, %v2363, %v2356
    %v2366 = vsel %vm1023, %v2364, %v2358
    %s2367 = scalar_lea.vmem %s3, 64
    %v2368 = vld [vmem:[%s2367] sm:$0xff]
    %v2369 = vld [vmem:[%s2367 + $0x8] sm:$0xff]
    %v2370 = vld [vmem:[%s2367 + $0x10] sm:$0xff]
    %v2371 = vld [vmem:[%s2367 + $0x18] sm:$0xff]
    %v2372 = vld [vmem:[%s2367 + $0x20] sm:$0xff]
    %v2373 = vld [vmem:[%s2367 + $0x28] sm:$0xff]
    %v2374 = vld [vmem:[%s2367 + $0x30] sm:$0xff]
    %v2375 = vld [vmem:[%s2367 + $0x38] sm:$0xff]
    %v2376 = vlaneseq
    %v2377 = vshrl.u32 %v2376, 7
    %v2378 = vsub.s32 2, %v2377
    %v2379 = vrot.slane %v1388, %v2378
    %v2381 = vsel %vm44, %v2365, 0
    %v2384 = vsel %vm44, %v2366, 0
    %2386 = vmatprep.subr.mxu0 0.0
    %2387 = vmatpush1.msra.mxu0 0.0
    %2388 = vmatprep.subr.mxu0 0.0
    %2389 = vmatpush1.msra.mxu0 0.0
    %2390 = vmatprep.subr.mxu0 0.0
    %2391 = vmatpush1.msra.mxu0 0.0
    %2392 = vmatprep.subr.mxu0 0.0
    %2393 = vmatpush1.msra.mxu0 0.0
    %2394 = vmatprep.subr.mxu0 0.0
    %2395 = vmatpush1.msra.mxu0 0.0
    %2396 = vmatprep.subr.mxu0 0.0
    %2397 = vmatpush1.msra.mxu0 0.0
    %2398 = vmatprep.subr.mxu0 0.0
    %2399 = vmatpush1.msra.mxu0 0.0
    %2400 = vmatprep.subr.mxu0 0.0
    %2401 = vmatpush1.msra.mxu0 0.0
    %2402 = vmatprep.subr.mxu0 0.0
    %2403 = vmatpush1.msra.mxu0 %v2375
    %2404 = vmatprep.subr.mxu0 0.0
    %2405 = vmatpush1.msra.mxu0 %v2374
    %2406 = vmatprep.subr.mxu0 0.0
    %2407 = vmatpush1.msra.mxu0 %v2373
    %2408 = vmatprep.subr.mxu0 0.0
    %2409 = vmatpush1.msra.mxu0 %v2372
    %2410 = vmatprep.subr.mxu0 0.0
    %2411 = vmatpush1.msra.mxu0 %v2371
    %2412 = vmatprep.subr.mxu0 0.0
    %2413 = vmatpush1.msra.mxu0 %v2370
    %2414 = vmatprep.subr.mxu0 0.0
    %2415 = vmatpush1.msra.mxu0 %v2369
    %2416 = vmatprep.subr.mxu0 0.0
    %2417 = vmatpush1.msra.mxu0 %v2368
    %2418 = vmatprep.subr.mxu0 0.0
    %2419 = vmatpush2.msra.mxu0 0.0
    %2420 = vmatprep.subr.mxu0 0.0
    %2421 = vmatpush2.msra.mxu0 0.0
    %2422 = vmatprep.subr.mxu0 0.0
    %2423 = vmatpush2.msra.mxu0 0.0
    %2424 = vmatprep.subr.mxu0 0.0
    %2425 = vmatpush2.msra.mxu0 0.0
    %2426 = vmatprep.subr.mxu0 0.0
    %2427 = vmatpush2.msra.mxu0 0.0
    %2428 = vmatprep.subr.mxu0 0.0
    %2429 = vmatpush2.msra.mxu0 0.0
    %2430 = vmatprep.subr.mxu0 0.0
    %2431 = vmatpush2.msra.mxu0 0.0
    %2432 = vmatprep.subr.mxu0 0.0
    %2433 = vmatpush2.msra.mxu0 0.0
    %2434 = vmatprep.subr.mxu0 0.0
    %2435 = vmatpush2.msra.mxu0 0.0
    %2436 = vmatprep.subr.mxu0 0.0
    %2437 = vmatpush2.msra.mxu0 0.0
    %2438 = vmatprep.subr.mxu0 0.0
    %2439 = vmatpush2.msra.mxu0 0.0
    %2440 = vmatprep.subr.mxu0 0.0
    %2441 = vmatpush2.msra.mxu0 0.0
    %2442 = vmatprep.subr.mxu0 0.0
    %2443 = vmatpush2.msra.mxu0 0.0
    %2444 = vmatprep.subr.mxu0 0.0
    %2445 = vmatpush2.msra.mxu0 0.0
    %2446 = vmatprep.subr.mxu0 0.0
    %2447 = vmatpush2.msra.mxu0 0.0
    %2448 = vmatprep.subr.mxu0 0.0
    %2449 = vmatpush2.msra.mxu0 0.0
    %2450 = vmatprep.mubr.f32.mxu0 0.0
    %2451 = vmatmul.mubr.f32.gmra.mxu0 %v2381
    %v2452 = vpop.f32.mrf.mxu0
    %v2453 = vadd.f32 %v2379, %v2452
    %v2454 = vpop.f32.mrf.mxu0
    %2455 = vmatprep.mubr.f32.mxu0 0.0
    %2456 = vmatmul.mubr.f32.gmra.mxu0 %v2384
    %v2457 = vpop.f32.mrf.mxu0
    %v2458 = vadd.f32 %v2379, %v2457
    %v2459 = vpop.f32.mrf.mxu0
    %2460 = vdwg.mxu0
    %v2461 = vadd.f32 %v1385, %v2453
    %v2462 = vadd.f32 %v1386, %v2458
    %v2463 = vsel %vm44, %v2461, 0.0
    %2464 = vadd.xlane.f32.xlu0 %v2463
    %v2465 = vpop.xlane.xlu0 %2464
    %v2466 = vsel %vm44, %v2462, 0.0
    %2467 = vadd.xlane.f32.xlu0 %v2466
    %v2468 = vpop.xlane.xlu0 %2467
    %v2469 = vmul.f32 %v2465, %v51
    %v2470 = vmul.f32 %v2468, %v51
    %v2471 = vsub.f32 %v2461, %v2469
    %v2472 = vsub.f32 %v2462, %v2470
    %v2473 = vmul.f32 %v2471, %v2471
    %v2474 = vmul.f32 %v2472, %v2472
    %v2475 = vsel %vm44, %v2473, 0.0
    %2476 = vadd.xlane.f32.xlu0 %v2475
    %v2477 = vpop.xlane.xlu0 %2476
    %v2478 = vsel %vm44, %v2474, 0.0
    %2479 = vadd.xlane.f32.xlu0 %v2478
    %v2480 = vpop.xlane.xlu0 %2479
    %v2481 = vmul.f32 %v2477, %v51
    %v2482 = vmul.f32 %v2480, %v51
    %v2483 = vadd.f32 %v2481, 1e-05
    %v2484 = vadd.f32 %v2482, 1e-05
    %v2485 = vrsqrt.pop %v2483
    %v2486 = vrsqrt.pop %v2484
    %v2487 = vmul.f32 %v2471, %v2485
    %v2488 = vmul.f32 %v2472, %v2486
    %v2489 = vlaneseq
    %v2490 = vshrl.u32 %v2489, 7
    %v2491 = vsub.s32 3, %v2490
    %v2492 = vrot.slane %v1388, %v2491
    %v2493 = vmul.f32 %v2487, %v2492
    %v2494 = vmul.f32 %v2488, %v2492
    %v2495 = vlaneseq
    %v2496 = vshrl.u32 %v2495, 7
    %v2497 = vsub.s32 4, %v2496
    %v2498 = vrot.slane %v1388, %v2497
    %v2499 = vadd.f32 %v2493, %v2498
    %v2500 = vadd.f32 %v2494, %v2498
    %s2501 = scalar_lea.vmem %s4, 128
    %v2502 = vld [vmem:[%s2501] sm:$0xff]
    %v2503 = vld [vmem:[%s2501 + $0x8] sm:$0xff]
    %v2504 = vld [vmem:[%s2501 + $0x10] sm:$0xff]
    %v2505 = vld [vmem:[%s2501 + $0x18] sm:$0xff]
    %v2506 = vld [vmem:[%s2501 + $0x20] sm:$0xff]
    %v2507 = vld [vmem:[%s2501 + $0x28] sm:$0xff]
    %v2508 = vld [vmem:[%s2501 + $0x30] sm:$0xff]
    %v2509 = vld [vmem:[%s2501 + $0x38] sm:$0xff]
    %v2510 = vld [vmem:[%s2501 + $0x40] sm:$0xff]
    %v2511 = vld [vmem:[%s2501 + $0x48] sm:$0xff]
    %v2512 = vld [vmem:[%s2501 + $0x50] sm:$0xff]
    %v2513 = vld [vmem:[%s2501 + $0x58] sm:$0xff]
    %v2514 = vld [vmem:[%s2501 + $0x60] sm:$0xff]
    %v2515 = vld [vmem:[%s2501 + $0x68] sm:$0xff]
    %v2516 = vld [vmem:[%s2501 + $0x70] sm:$0xff]
    %v2517 = vld [vmem:[%s2501 + $0x78] sm:$0xff]
    %s2518 = scalar_lea.vmem %s7, 1
    %v2519 = vld [vmem:[%s2518] ss:$2 sm:$0x3]
    %v2521 = vlaneseq
    %v2522 = vshrl.u32 %v2521, 7
    %v2523 = vsub.s32 0, %v2522
    %v2524 = vrot.slane %v2519, %v2523
    %v2525 = vlaneseq
    %v2526 = vshrl.u32 %v2525, 7
    %v2527 = vsub.s32 1, %v2526
    %v2528 = vrot.slane %v2519, %v2527
    %v2532 = vsel %vm44, %v2499, 0
    %v2535 = vsel %vm44, %v2500, 0
    %2537 = vmatprep.subr.mxu0 0.0
    %2538 = vmatpush1.msra.mxu0 0.0
    %2539 = vmatprep.subr.mxu0 0.0
    %2540 = vmatpush1.msra.mxu0 0.0
    %2541 = vmatprep.subr.mxu0 0.0
    %2542 = vmatpush1.msra.mxu0 0.0
    %2543 = vmatprep.subr.mxu0 0.0
    %2544 = vmatpush1.msra.mxu0 0.0
    %2545 = vmatprep.subr.mxu0 0.0
    %2546 = vmatpush1.msra.mxu0 0.0
    %2547 = vmatprep.subr.mxu0 0.0
    %2548 = vmatpush1.msra.mxu0 0.0
    %2549 = vmatprep.subr.mxu0 0.0
    %2550 = vmatpush1.msra.mxu0 0.0
    %2551 = vmatprep.subr.mxu0 0.0
    %2552 = vmatpush1.msra.mxu0 0.0
    %2553 = vmatprep.subr.mxu0 %v2517
    %2554 = vmatpush1.msra.mxu0 %v2516
    %2555 = vmatprep.subr.mxu0 %v2515
    %2556 = vmatpush1.msra.mxu0 %v2514
    %2557 = vmatprep.subr.mxu0 %v2513
    %2558 = vmatpush1.msra.mxu0 %v2512
    %2559 = vmatprep.subr.mxu0 %v2511
    %2560 = vmatpush1.msra.mxu0 %v2510
    %2561 = vmatprep.subr.mxu0 %v2509
    %2562 = vmatpush1.msra.mxu0 %v2508
    %2563 = vmatprep.subr.mxu0 %v2507
    %2564 = vmatpush1.msra.mxu0 %v2506
    %2565 = vmatprep.subr.mxu0 %v2505
    %2566 = vmatpush1.msra.mxu0 %v2504
    %2567 = vmatprep.subr.mxu0 %v2503
    %2568 = vmatpush1.msra.mxu0 %v2502
    %2569 = vmatprep.subr.mxu0 0.0
    %2570 = vmatpush2.msra.mxu0 0.0
    %2571 = vmatprep.subr.mxu0 0.0
    %2572 = vmatpush2.msra.mxu0 0.0
    %2573 = vmatprep.subr.mxu0 0.0
    %2574 = vmatpush2.msra.mxu0 0.0
    %2575 = vmatprep.subr.mxu0 0.0
    %2576 = vmatpush2.msra.mxu0 0.0
    %2577 = vmatprep.subr.mxu0 0.0
    %2578 = vmatpush2.msra.mxu0 0.0
    %2579 = vmatprep.subr.mxu0 0.0
    %2580 = vmatpush2.msra.mxu0 0.0
    %2581 = vmatprep.subr.mxu0 0.0
    %2582 = vmatpush2.msra.mxu0 0.0
    %2583 = vmatprep.subr.mxu0 0.0
    %2584 = vmatpush2.msra.mxu0 0.0
    %2585 = vmatprep.subr.mxu0 0.0
    %2586 = vmatpush2.msra.mxu0 0.0
    %2587 = vmatprep.subr.mxu0 0.0
    %2588 = vmatpush2.msra.mxu0 0.0
    %2589 = vmatprep.subr.mxu0 0.0
    %2590 = vmatpush2.msra.mxu0 0.0
    %2591 = vmatprep.subr.mxu0 0.0
    %2592 = vmatpush2.msra.mxu0 0.0
    %2593 = vmatprep.subr.mxu0 0.0
    %2594 = vmatpush2.msra.mxu0 0.0
    %2595 = vmatprep.subr.mxu0 0.0
    %2596 = vmatpush2.msra.mxu0 0.0
    %2597 = vmatprep.subr.mxu0 0.0
    %2598 = vmatpush2.msra.mxu0 0.0
    %2599 = vmatprep.subr.mxu0 0.0
    %2600 = vmatpush2.msra.mxu0 0.0
    %2601 = vmatprep.mubr.f32.mxu0 0.0
    %2602 = vmatmul.mubr.f32.gmra.mxu0 %v2532
    %v2603 = vpop.f32.mrf.mxu0
    %v2604 = vadd.f32 %v2524, %v2603
    %v2605 = vpop.f32.mrf.mxu0
    %v2606 = vadd.f32 %v2528, %v2605
    %2607 = vmatprep.mubr.f32.mxu0 0.0
    %2608 = vmatmul.mubr.f32.gmra.mxu0 %v2535
    %v2609 = vpop.f32.mrf.mxu0
    %v2610 = vadd.f32 %v2524, %v2609
    %v2611 = vpop.f32.mrf.mxu0
    %v2612 = vadd.f32 %v2528, %v2611
    %2613 = vdwg.mxu0
    %v2614 = vmax.f32 %v2604, 0.0
    %v2615 = vmax.f32 %v2606, 0.0
    %v2616 = vmax.f32 %v2610, 0.0
    %v2617 = vmax.f32 %v2612, 0.0
    %s2618 = scalar_lea.vmem %s5, 256
    %v2619 = vld [vmem:[%s2618] sm:$0xff]
    %v2620 = vld [vmem:[%s2618 + $0x8] sm:$0xff]
    %v2621 = vld [vmem:[%s2618 + $0x10] sm:$0xff]
    %v2622 = vld [vmem:[%s2618 + $0x18] sm:$0xff]
    %v2623 = vld [vmem:[%s2618 + $0x20] sm:$0xff]
    %v2624 = vld [vmem:[%s2618 + $0x28] sm:$0xff]
    %v2625 = vld [vmem:[%s2618 + $0x30] sm:$0xff]
    %v2626 = vld [vmem:[%s2618 + $0x38] sm:$0xff]
    %v2627 = vld [vmem:[%s2618 + $0x40] sm:$0xff]
    %v2628 = vld [vmem:[%s2618 + $0x48] sm:$0xff]
    %v2629 = vld [vmem:[%s2618 + $0x50] sm:$0xff]
    %v2630 = vld [vmem:[%s2618 + $0x58] sm:$0xff]
    %v2631 = vld [vmem:[%s2618 + $0x60] sm:$0xff]
    %v2632 = vld [vmem:[%s2618 + $0x68] sm:$0xff]
    %v2633 = vld [vmem:[%s2618 + $0x70] sm:$0xff]
    %v2634 = vld [vmem:[%s2618 + $0x78] sm:$0xff]
    %v2635 = vld [vmem:[%s2618 + $0x80] sm:$0xff]
    %v2636 = vld [vmem:[%s2618 + $0x88] sm:$0xff]
    %v2637 = vld [vmem:[%s2618 + $0x90] sm:$0xff]
    %v2638 = vld [vmem:[%s2618 + $0x98] sm:$0xff]
    %v2639 = vld [vmem:[%s2618 + $0xa0] sm:$0xff]
    %v2640 = vld [vmem:[%s2618 + $0xa8] sm:$0xff]
    %v2641 = vld [vmem:[%s2618 + $0xb0] sm:$0xff]
    %v2642 = vld [vmem:[%s2618 + $0xb8] sm:$0xff]
    %v2643 = vld [vmem:[%s2618 + $0xc0] sm:$0xff]
    %v2644 = vld [vmem:[%s2618 + $0xc8] sm:$0xff]
    %v2645 = vld [vmem:[%s2618 + $0xd0] sm:$0xff]
    %v2646 = vld [vmem:[%s2618 + $0xd8] sm:$0xff]
    %v2647 = vld [vmem:[%s2618 + $0xe0] sm:$0xff]
    %v2648 = vld [vmem:[%s2618 + $0xe8] sm:$0xff]
    %v2649 = vld [vmem:[%s2618 + $0xf0] sm:$0xff]
    %v2650 = vld [vmem:[%s2618 + $0xf8] sm:$0xff]
    %v2651 = vlaneseq
    %v2652 = vshrl.u32 %v2651, 7
    %v2653 = vsub.s32 5, %v2652
    %v2654 = vrot.slane %v1388, %v2653
    %2655 = vmatprep.subr.mxu0 0.0
    %2656 = vmatpush1.msra.mxu0 %v2634
    %2657 = vmatprep.subr.mxu0 0.0
    %2658 = vmatpush1.msra.mxu0 %v2633
    %2659 = vmatprep.subr.mxu0 0.0
    %2660 = vmatpush1.msra.mxu0 %v2632
    %2661 = vmatprep.subr.mxu0 0.0
    %2662 = vmatpush1.msra.mxu0 %v2631
    %2663 = vmatprep.subr.mxu0 0.0
    %2664 = vmatpush1.msra.mxu0 %v2630
    %2665 = vmatprep.subr.mxu0 0.0
    %2666 = vmatpush1.msra.mxu0 %v2629
    %2667 = vmatprep.subr.mxu0 0.0
    %2668 = vmatpush1.msra.mxu0 %v2628
    %2669 = vmatprep.subr.mxu0 0.0
    %2670 = vmatpush1.msra.mxu0 %v2627
    %2671 = vmatprep.subr.mxu0 0.0
    %2672 = vmatpush1.msra.mxu0 %v2626
    %2673 = vmatprep.subr.mxu0 0.0
    %2674 = vmatpush1.msra.mxu0 %v2625
    %2675 = vmatprep.subr.mxu0 0.0
    %2676 = vmatpush1.msra.mxu0 %v2624
    %2677 = vmatprep.subr.mxu0 0.0
    %2678 = vmatpush1.msra.mxu0 %v2623
    %2679 = vmatprep.subr.mxu0 0.0
    %2680 = vmatpush1.msra.mxu0 %v2622
    %2681 = vmatprep.subr.mxu0 0.0
    %2682 = vmatpush1.msra.mxu0 %v2621
    %2683 = vmatprep.subr.mxu0 0.0
    %2684 = vmatpush1.msra.mxu0 %v2620
    %2685 = vmatprep.subr.mxu0 0.0
    %2686 = vmatpush1.msra.mxu0 %v2619
    %2687 = vmatprep.subr.mxu0 0.0
    %2688 = vmatpush2.msra.mxu0 %v2650
    %2689 = vmatprep.subr.mxu0 0.0
    %2690 = vmatpush2.msra.mxu0 %v2649
    %2691 = vmatprep.subr.mxu0 0.0
    %2692 = vmatpush2.msra.mxu0 %v2648
    %2693 = vmatprep.subr.mxu0 0.0
    %2694 = vmatpush2.msra.mxu0 %v2647
    %2695 = vmatprep.subr.mxu0 0.0
    %2696 = vmatpush2.msra.mxu0 %v2646
    %2697 = vmatprep.subr.mxu0 0.0
    %2698 = vmatpush2.msra.mxu0 %v2645
    %2699 = vmatprep.subr.mxu0 0.0
    %2700 = vmatpush2.msra.mxu0 %v2644
    %2701 = vmatprep.subr.mxu0 0.0
    %2702 = vmatpush2.msra.mxu0 %v2643
    %2703 = vmatprep.subr.mxu0 0.0
    %2704 = vmatpush2.msra.mxu0 %v2642
    %2705 = vmatprep.subr.mxu0 0.0
    %2706 = vmatpush2.msra.mxu0 %v2641
    %2707 = vmatprep.subr.mxu0 0.0
    %2708 = vmatpush2.msra.mxu0 %v2640
    %2709 = vmatprep.subr.mxu0 0.0
    %2710 = vmatpush2.msra.mxu0 %v2639
    %2711 = vmatprep.subr.mxu0 0.0
    %2712 = vmatpush2.msra.mxu0 %v2638
    %2713 = vmatprep.subr.mxu0 0.0
    %2714 = vmatpush2.msra.mxu0 %v2637
    %2715 = vmatprep.subr.mxu0 0.0
    %2716 = vmatpush2.msra.mxu0 %v2636
    %2717 = vmatprep.subr.mxu0 0.0
    %2718 = vmatpush2.msra.mxu0 %v2635
    %2719 = vmatprep.mubr.f32.mxu0 %v2615
    %2720 = vmatmul.mubr.f32.gmra.mxu0 %v2614
    %v2721 = vpop.f32.mrf.mxu0
    %v2722 = vadd.f32 %v2654, %v2721
    %v2723 = vpop.f32.mrf.mxu0
    %2724 = vmatprep.mubr.f32.mxu0 %v2617
    %2725 = vmatmul.mubr.f32.gmra.mxu0 %v2616
    %v2726 = vpop.f32.mrf.mxu0
    %v2727 = vadd.f32 %v2654, %v2726
    %v2728 = vpop.f32.mrf.mxu0
    %2729 = vdwg.mxu0
    %v2730 = vadd.f32 %v2461, %v2722
    %v2731 = vadd.f32 %v2462, %v2727
    %v2732 = vld [vmem:[%s8] sm:$0x1]
    %v2733 = vld [vmem:[%s8 + $0x1] sm:$0x1]
    %v2734 = vsel %vm44, %v2730, 0.0
    %2735 = vadd.xlane.f32.xlu0 %v2734
    %v2736 = vpop.xlane.xlu0 %2735
    %v2737 = vsel %vm44, %v2731, 0.0
    %2738 = vadd.xlane.f32.xlu0 %v2737
    %v2739 = vpop.xlane.xlu0 %2738
    %v2740 = vmul.f32 %v2736, %v51
    %v2741 = vmul.f32 %v2739, %v51
    %v2742 = vsub.f32 %v2730, %v2740
    %v2743 = vsub.f32 %v2731, %v2741
    %v2744 = vmul.f32 %v2742, %v2742
    %v2745 = vmul.f32 %v2743, %v2743
    %v2746 = vsel %vm44, %v2744, 0.0
    %2747 = vadd.xlane.f32.xlu0 %v2746
    %v2748 = vpop.xlane.xlu0 %2747
    %v2749 = vsel %vm44, %v2745, 0.0
    %2750 = vadd.xlane.f32.xlu0 %v2749
    %v2751 = vpop.xlane.xlu0 %2750
    %v2752 = vmul.f32 %v2748, %v51
    %v2753 = vmul.f32 %v2751, %v51
    %v2754 = vadd.f32 %v2752, 1e-05
    %v2755 = vadd.f32 %v2753, 1e-05
    %v2756 = vrsqrt.pop %v2754
    %v2757 = vrsqrt.pop %v2755
    %v2758 = vmul.f32 %v2742, %v2756
    %v2759 = vmul.f32 %v2743, %v2757
    %v2760 = vlaneseq
    %v2761 = vshrl.u32 %v2760, 7
    %v2762 = vsub.s32 0, %v2761
    %v2763 = vrot.slane %v2732, %v2762
    %v2764 = vmul.f32 %v2758, %v2763
    %v2765 = vmul.f32 %v2759, %v2763
    %v2766 = vlaneseq
    %v2767 = vshrl.u32 %v2766, 7
    %v2768 = vsub.s32 0, %v2767
    %v2769 = vrot.slane %v2733, %v2768
    %v2770 = vadd.f32 %v2764, %v2769
    %v2771 = vadd.f32 %v2765, %v2769
    %v2772 = vld [vmem:[%s9] sm:$0xff]
    %v2773 = vld [vmem:[%s9 + $0x8] sm:$0xff]
    %v2774 = vld [vmem:[%s9 + $0x10] sm:$0xff]
    %v2775 = vld [vmem:[%s9 + $0x18] sm:$0xff]
    %v2776 = vld [vmem:[%s9 + $0x20] sm:$0xff]
    %v2777 = vld [vmem:[%s9 + $0x28] sm:$0xff]
    %v2778 = vld [vmem:[%s9 + $0x30] sm:$0xff]
    %v2779 = vld [vmem:[%s9 + $0x38] sm:$0xff]
    %v2780 = vld [vmem:[%s10] sm:$0x1]
    %v2782 = vlaneseq
    %v2783 = vshrl.u32 %v2782, 7
    %v2784 = vsub.s32 0, %v2783
    %v2785 = vrot.slane %v2780, %v2784
    %v2788 = vsel %vm44, %v2770, 0
    %v2791 = vsel %vm44, %v2771, 0
    %2793 = vmatprep.subr.mxu0 0.0
    %2794 = vmatpush1.msra.mxu0 0.0
    %2795 = vmatprep.subr.mxu0 0.0
    %2796 = vmatpush1.msra.mxu0 0.0
    %2797 = vmatprep.subr.mxu0 0.0
    %2798 = vmatpush1.msra.mxu0 0.0
    %2799 = vmatprep.subr.mxu0 0.0
    %2800 = vmatpush1.msra.mxu0 0.0
    %2801 = vmatprep.subr.mxu0 0.0
    %2802 = vmatpush1.msra.mxu0 0.0
    %2803 = vmatprep.subr.mxu0 0.0
    %2804 = vmatpush1.msra.mxu0 0.0
    %2805 = vmatprep.subr.mxu0 0.0
    %2806 = vmatpush1.msra.mxu0 0.0
    %2807 = vmatprep.subr.mxu0 0.0
    %2808 = vmatpush1.msra.mxu0 0.0
    %2809 = vmatprep.subr.mxu0 0.0
    %2810 = vmatpush1.msra.mxu0 %v2779
    %2811 = vmatprep.subr.mxu0 0.0
    %2812 = vmatpush1.msra.mxu0 %v2778
    %2813 = vmatprep.subr.mxu0 0.0
    %2814 = vmatpush1.msra.mxu0 %v2777
    %2815 = vmatprep.subr.mxu0 0.0
    %2816 = vmatpush1.msra.mxu0 %v2776
    %2817 = vmatprep.subr.mxu0 0.0
    %2818 = vmatpush1.msra.mxu0 %v2775
    %2819 = vmatprep.subr.mxu0 0.0
    %2820 = vmatpush1.msra.mxu0 %v2774
    %2821 = vmatprep.subr.mxu0 0.0
    %2822 = vmatpush1.msra.mxu0 %v2773
    %2823 = vmatprep.subr.mxu0 0.0
    %2824 = vmatpush1.msra.mxu0 %v2772
    %2825 = vmatprep.subr.mxu0 0.0
    %2826 = vmatpush2.msra.mxu0 0.0
    %2827 = vmatprep.subr.mxu0 0.0
    %2828 = vmatpush2.msra.mxu0 0.0
    %2829 = vmatprep.subr.mxu0 0.0
    %2830 = vmatpush2.msra.mxu0 0.0
    %2831 = vmatprep.subr.mxu0 0.0
    %2832 = vmatpush2.msra.mxu0 0.0
    %2833 = vmatprep.subr.mxu0 0.0
    %2834 = vmatpush2.msra.mxu0 0.0
    %2835 = vmatprep.subr.mxu0 0.0
    %2836 = vmatpush2.msra.mxu0 0.0
    %2837 = vmatprep.subr.mxu0 0.0
    %2838 = vmatpush2.msra.mxu0 0.0
    %2839 = vmatprep.subr.mxu0 0.0
    %2840 = vmatpush2.msra.mxu0 0.0
    %2841 = vmatprep.subr.mxu0 0.0
    %2842 = vmatpush2.msra.mxu0 0.0
    %2843 = vmatprep.subr.mxu0 0.0
    %2844 = vmatpush2.msra.mxu0 0.0
    %2845 = vmatprep.subr.mxu0 0.0
    %2846 = vmatpush2.msra.mxu0 0.0
    %2847 = vmatprep.subr.mxu0 0.0
    %2848 = vmatpush2.msra.mxu0 0.0
    %2849 = vmatprep.subr.mxu0 0.0
    %2850 = vmatpush2.msra.mxu0 0.0
    %2851 = vmatprep.subr.mxu0 0.0
    %2852 = vmatpush2.msra.mxu0 0.0
    %2853 = vmatprep.subr.mxu0 0.0
    %2854 = vmatpush2.msra.mxu0 0.0
    %2855 = vmatprep.subr.mxu0 0.0
    %2856 = vmatpush2.msra.mxu0 0.0
    %2857 = vmatprep.mubr.f32.mxu0 0.0
    %2858 = vmatmul.mubr.f32.gmra.mxu0 %v2788
    %v2859 = vpop.f32.mrf.mxu0
    %v2860 = vadd.f32 %v2785, %v2859
    %v2861 = vpop.f32.mrf.mxu0
    %2862 = vmatprep.mubr.f32.mxu0 0.0
    %2863 = vmatmul.mubr.f32.gmra.mxu0 %v2791
    %v2864 = vpop.f32.mrf.mxu0
    %v2865 = vadd.f32 %v2785, %v2864
    %v2866 = vpop.f32.mrf.mxu0
    %2867 = vdwg.mxu0
    %2868 = vst [vmem:[#allocation2] sm:$0xff] %v2860
    %2869 = vst [vmem:[#allocation2 + $0x8] sm:$0xff] %v2865
    // Predicated region
    $region46: #{bigram_lm_forward.1} parent=1 // pred_check
      _
    $region47: #{bigram_lm_forward.1} parent=1 // pred_check_branch
      %2871 = sbr.rel (0) target = $region49
    $region48: #{bigram_lm_forward.1} parent=1 // pred_region
      %s2873 = ssub.s32 256, 256
      %2874 = vsyncadd [#allocation3], %s2873
      %s2875 = sshll.u32 [#allocation2], 4
      %s2876 = int_to_ptr.vmem [resolvable:$true] %s2875
      %2881 = dma.vmem_to_hbm [thread:$0]  %s2876, 256, %s11, [#allocation3], 128, 128, 8
    $region49: #{bigram_lm_forward.1} parent=1 // pred_fallthru
      _
    // Predicated region
    $region50: #{bigram_lm_forward.1} parent=1 // pred_check
      _
    $region51: #{bigram_lm_forward.1} parent=1 // pred_check_branch
      %2883 = sbr.rel (0) target = $region53
    $region52: #{bigram_lm_forward.1} parent=1 // pred_region
      %2884 = dma.done [#allocation3], 256
    $region53: #{bigram_lm_forward.1} parent=1 // pred_fallthru
      _
    %2885 = vsyncpa [#allocation3], 1

</llo_original>
